<compile_context>
chip_gen: v6e
topology: v6e:2x2x1
jax: 0.10.0
libtpu: 0.0.40
codegen_flags: <defaults>
</compile_context>

<pallas_src>
import numpy as np
import jax
import jax.numpy as jnp
from jax.experimental import pallas as pl
from jax.experimental.pallas import tpu as pltpu

_SQRT2 = 1.4142135623730951
_K, _S, _P = 2, 2, 2          # every conv in the model: kernel 2, stride 2, padding 2
_T = _K * _K                  # taps per conv window


def _conv_out(n):
    return (n + 2 * _P - _K) // _S + 1


def _round_up(n, m):
    return ((n + m - 1) // m) * m


# ---------------------------------------------------------------------------
# activations (traced inside the Pallas kernel; VPU/EUP elementwise, f32)
# ---------------------------------------------------------------------------
def _hardshrink(x):                       # nn.Hardshrink(lambda=0.5)
    return jnp.where(jnp.abs(x) > 0.5, x, jnp.zeros_like(x))


def _gelu_exact(x):                       # nn.GELU() default (erf-based, exact)
    return 0.5 * x * (1.0 + jax.lax.erf(x / _SQRT2))


def _tanhshrink(x):                       # nn.Tanhshrink()
    return x - jnp.tanh(x)


def _mish(x):                             # nn.Mish(): x * tanh(softplus(x))
    return x * jnp.tanh(jax.nn.softplus(x))


# ---------------------------------------------------------------------------
# single fused kernel: conv1..conv5 + folded BN + all activations + Softmax2d
# ---------------------------------------------------------------------------
def _conv_stage(x, g_ref, w_ref, b_ref):
    """One k=2/s=2/p=2 conv as two MXU GEMMs.

    g_ref : (4*M_out_pad, M_in_pad) bf16 row-stacked 0/1 tap-gather matrices.
    w_ref : (Cin, 4*Cout) f32 lane-concatenated per-tap weights (BN scale folded).
    Y = sum_t (G_t @ X) @ W_t  ==  sum of the diagonal tap blocks of (G_V @ X) @ W_cat.
    """
    m_pad = g_ref.shape[0] // _T
    cout = w_ref.shape[1] // _T
    gx = jnp.dot(g_ref[...], x.astype(jnp.bfloat16),
                 preferred_element_type=jnp.float32)                 # (4*M_pad, Cin)
    z = jnp.dot(gx, w_ref[...], preferred_element_type=jnp.float32)  # (4*M_pad, 4*Cout)
    y = (z[0 * m_pad:1 * m_pad, 0 * cout:1 * cout]
         + z[1 * m_pad:2 * m_pad, 1 * cout:2 * cout]
         + z[2 * m_pad:3 * m_pad, 2 * cout:3 * cout]
         + z[3 * m_pad:4 * m_pad, 3 * cout:4 * cout])                # (M_pad, Cout)
    return y + b_ref[...]


def _fused_net_kernel(p1_ref, w1_ref, b1_ref,
                      g2_ref, w2_ref, b2_ref,
                      g3_ref, w3_ref, b3_ref,
                      g4_ref, w4_ref, b4_ref,
                      g5_ref, w5_ref, b5_ref,
                      o_ref):
    # stage 1: conv1 (host-side im2col patches, BN1 scale folded) + shift + hardshrink
    x = jnp.dot(p1_ref[...], w1_ref[...], preferred_element_type=jnp.float32)
    x = _hardshrink(x + b1_ref[...])                                   # (M1, 64)
    # stage 2: conv2 (+ folded BN2) + exact GELU
    x = _gelu_exact(_conv_stage(x, g2_ref, w2_ref, b2_ref))            # (M2p, 32)
    # stage 3: conv3 + bias + tanhshrink
    x = _tanhshrink(_conv_stage(x, g3_ref, w3_ref, b3_ref))            # (M3p, 16)
    # stage 4: conv4 + bias + mish
    x = _mish(_conv_stage(x, g4_ref, w4_ref, b4_ref))                  # (M4p, 8)
    # stage 5: conv5 + bias + Softmax2d (channel dim is the last axis here)
    x = _conv_stage(x, g5_ref, w5_ref, b5_ref)                         # (M5p, 4)
    m = jnp.max(x, axis=-1, keepdims=True)
    e = jnp.exp(x - m)
    x = e / jnp.sum(e, axis=-1, keepdims=True)     # exact divide: channel sums == 1
    o_ref[...] = x.astype(o_ref.dtype)


# ---------------------------------------------------------------------------
# host-side constant construction (runs once, outside the kernel)
# ---------------------------------------------------------------------------
def _im2col_input(x_nchw):
    """im2col of the network input only (k=2, s=2, p=2); column order = c*4 + kh*2 + kw,
    matching PyTorch's (Cout, Cin, kh, kw) weight flattening."""
    n, c, h, w = x_nchw.shape
    ho, wo = _conv_out(h), _conv_out(w)
    xp = jnp.pad(x_nchw, ((0, 0), (0, 0), (_P, _P), (_P, _P)))
    xp = xp[:, :, : _S * ho, : _S * wo]
    patches = xp.reshape(n, c, ho, _K, wo, _K).transpose(0, 2, 4, 1, 3, 5)
    return patches.reshape(n * ho * wo, c * _K * _K)


def _gather_stack(n, h_in, w_in, m_in_pad):
    """Row-stacked 0/1 tap-gather matrices for one k=2/s=2/p=2 conv stage.

    Block t (= kh*2 + kw) of the (4*M_out_pad, M_in_pad) result selects, for every
    output position (b, i, j), the input row (b, 2i+kh-2, 2j+kw-2); rows whose source
    lies in the zero-padding ring stay all-zero (bias-only output — matches PyTorch).
    NOTE: footprint scales as O((N*H*W)^2); replace with in-kernel strided row
    selection / scalar-prefetch DMA gather before scaling batch or resolution
    (v7x has only 64 MiB VMEM).
    """
    ho, wo = _conv_out(h_in), _conv_out(w_in)
    m_out = n * ho * wo
    m_pad = _round_up(m_out, 8)
    g = np.zeros((_T * m_pad, m_in_pad), np.float32)
    for dh in range(_K):
        for dw in range(_K):
            t = dh * _K + dw
            for b in range(n):
                for i in range(ho):
                    r = _S * i + dh - _P
                    if r < 0 or r >= h_in:
                        continue
                    for j in range(wo):
                        s = _S * j + dw - _P
                        if s < 0 or s >= w_in:
                            continue
                        g[t * m_pad + (b * ho + i) * wo + j,
                          (b * h_in + r) * w_in + s] = 1.0
    return g, ho, wo, m_pad


def _tap_weights_cat(w_oihw, scale=None):
    """(Cout, Cin, 2, 2) -> (Cin, 4*Cout): per-tap matrices lane-concatenated,
    tap order t = kh*2 + kw, optional per-Cout BN scale fold."""
    cout, cin = w_oihw.shape[0], w_oihw.shape[1]
    w = jnp.transpose(w_oihw, (2, 3, 1, 0)).reshape(_T, cin, cout)
    if scale is not None:
        w = w * scale.reshape(1, 1, cout)
    return jnp.concatenate([w[t] for t in range(_T)], axis=1)


def _fold_bn(gamma, beta, mean, var, eps=1e-5):
    scale = gamma / jnp.sqrt(var + eps)
    shift = beta - mean * scale
    return scale, shift


def build_constants(p, input_shape):
    n, _, h, w = input_shape
    s1, t1 = _fold_bn(p["bn1_gamma"], p["bn1_beta"], p["bn1_mean"], p["bn1_var"])
    s2, t2 = _fold_bn(p["bn2_gamma"], p["bn2_beta"], p["bn2_mean"], p["bn2_var"])

    consts = {}
    # stage 1: (K, Cout) weight with BN1 scale folded in; K zero-padded to a multiple
    # of 8 (extra rows multiply zero-padded patch columns -> numerically free).
    w1m = jnp.transpose(p["w1"].reshape(p["w1"].shape[0], -1)) * s1[None, :]
    kpad = (-w1m.shape[0]) % 8
    consts["w1"] = jnp.pad(w1m, ((0, kpad), (0, 0)))
    consts["b1"] = t1.reshape(1, -1)

    h1, w1_ = _conv_out(h), _conv_out(w)
    m1_pad = _round_up(n * h1 * w1_, 8)
    g2, h2, w2_, m2_pad = _gather_stack(n, h1, w1_, m1_pad)
    g3, h3, w3_, m3_pad = _gather_stack(n, h2, w2_, m2_pad)
    g4, h4, w4_, m4_pad = _gather_stack(n, h3, w3_, m3_pad)
    g5, _, _, _ = _gather_stack(n, h4, w4_, m4_pad)
    # bf16 storage: 0/1 is exact in bf16 and halves the dominant HBM->VMEM traffic.
    consts["g2"] = jnp.asarray(g2, jnp.bfloat16)
    consts["g3"] = jnp.asarray(g3, jnp.bfloat16)
    consts["g4"] = jnp.asarray(g4, jnp.bfloat16)
    consts["g5"] = jnp.asarray(g5, jnp.bfloat16)

    consts["w2"] = _tap_weights_cat(p["w2"], s2)
    consts["b2"] = t2.reshape(1, -1)
    consts["w3"] = _tap_weights_cat(p["w3"])
    consts["b3"] = p["b3"].reshape(1, -1)
    consts["w4"] = _tap_weights_cat(p["w4"])
    consts["b4"] = p["b4"].reshape(1, -1)
    consts["w5"] = _tap_weights_cat(p["w5"])
    consts["b5"] = p["b5"].reshape(1, -1)
    return consts


# ---------------------------------------------------------------------------
# forward pass (matches ModelWithMultipleActivations.forward, inference BN)
# ---------------------------------------------------------------------------
def _cost_estimate(patches, consts):
    flops = 2 * patches.shape[0] * patches.shape[1] * consts["w1"].shape[1]
    trans = 0
    prev_c = consts["w1"].shape[1]
    for s in ("2", "3", "4", "5"):
        g, wc = consts["g" + s], consts["w" + s]
        flops += 2 * g.shape[0] * g.shape[1] * prev_c              # gather GEMM
        flops += 2 * g.shape[0] * wc.shape[0] * wc.shape[1]        # weight GEMM
        out_c = wc.shape[1] // _T
        trans += 2 * (g.shape[0] // _T) * out_c                    # erf/tanh/exp etc.
        prev_c = out_c
    in_bytes = patches.size * patches.dtype.itemsize + sum(
        int(v.size) * v.dtype.itemsize for v in consts.values())
    out_bytes = 4 * (consts["g5"].shape[0] // _T) * (consts["w5"].shape[1] // _T)
    return pl.CostEstimate(flops=int(flops), transcendentals=int(trans),
                           bytes_accessed=int(in_bytes + out_bytes))


def model_forward(x_nchw, consts):
    n = x_nchw.shape[0]
    patches = _im2col_input(x_nchw)                        # (n*h1*w1, Cin*4)
    m1_pad = consts["g2"].shape[1]                          # padded stage-1 row count
    k1 = consts["w1"].shape[0]                              # padded patch K
    patches = jnp.pad(patches, ((0, m1_pad - patches.shape[0]),
                                (0, k1 - patches.shape[1])))

    m5_pad = consts["g5"].shape[0] // _T
    cout = consts["w5"].shape[1] // _T
    out = pl.pallas_call(
        _fused_net_kernel,
        out_shape=jax.ShapeDtypeStruct((m5_pad, cout), jnp.float32),
        in_specs=[pl.BlockSpec(memory_space=pltpu.MemorySpace.VMEM)] * 15,
        out_specs=pl.BlockSpec(memory_space=pltpu.MemorySpace.VMEM),
        compiler_params=pltpu.CompilerParams(vmem_limit_bytes=16 * 1024 * 1024),
        cost_estimate=_cost_estimate(patches, consts),
    )(patches, consts["w1"], consts["b1"],
      consts["g2"], consts["w2"], consts["b2"],
      consts["g3"], consts["w3"], consts["b3"],
      consts["g4"], consts["w4"], consts["b4"],
      consts["g5"], consts["w5"], consts["b5"])

    # kernel rows are (b, i, j) row-major; drop alignment pad rows, emit NCHW
    hh, ww = x_nchw.shape[2], x_nchw.shape[3]
    for _ in range(5):
        hh, ww = _conv_out(hh), _conv_out(ww)
    out = out[: n * hh * ww]
    return jnp.transpose(out.reshape(n, hh, ww, cout), (0, 3, 1, 2))


# ---------------------------------------------------------------------------
# pure-XLA reference of the PyTorch module (inference-mode BN)
# ---------------------------------------------------------------------------
def _reference_forward(x, p, eps=1e-5):
    dn = ("NCHW", "OIHW", "NCHW")

    def conv(y, w, b=None):
        y = jax.lax.conv_general_dilated(y, w, window_strides=(_S, _S),
                                         padding=((_P, _P), (_P, _P)),
                                         dimension_numbers=dn)
        return y if b is None else y + b.reshape(1, -1, 1, 1)

    def bn(y, g, b, m, v):
        s = (g / jnp.sqrt(v + eps)).reshape(1, -1, 1, 1)
        return (y - m.reshape(1, -1, 1, 1)) * s + b.reshape(1, -1, 1, 1)

    x = _hardshrink(bn(conv(x, p["w1"]), p["bn1_gamma"], p["bn1_beta"],
                       p["bn1_mean"], p["bn1_var"]))
    x = _gelu_exact(bn(conv(x, p["w2"]), p["bn2_gamma"], p["bn2_beta"],
                       p["bn2_mean"], p["bn2_var"]))
    x = _tanhshrink(conv(x, p["w3"], p["b3"]))
    x = _mish(conv(x, p["w4"], p["b4"]))
    x = conv(x, p["w5"], p["b5"])
    return jax.nn.softmax(x, axis=1)


# ---------------------------------------------------------------------------
# deterministic parameter construction (shapes from the module's __init__)
# ---------------------------------------------------------------------------
def _init_params(key):
    ks = jax.random.split(key, 18)
    p = {}
    p["w1"] = 0.1 * jax.random.normal(ks[0], (64, 3, 2, 2), jnp.float32)
    p["w2"] = 0.1 * jax.random.normal(ks[1], (32, 64, 2, 2), jnp.float32)
    p["w3"] = 0.1 * jax.random.normal(ks[2], (16, 32, 2, 2), jnp.float32)
    p["b3"] = 0.1 * jax.random.normal(ks[3], (16,), jnp.float32)
    p["w4"] = 0.1 * jax.random.normal(ks[4], (8, 16, 2, 2), jnp.float32)
    p["b4"] = 0.1 * jax.random.normal(ks[5], (8,), jnp.float32)
    p["w5"] = 0.1 * jax.random.normal(ks[6], (4, 8, 2, 2), jnp.float32)
    p["b5"] = 0.1 * jax.random.normal(ks[7], (4,), jnp.float32)
    # BatchNorm2d(64) / BatchNorm2d(32), inference mode, eps=1e-5
    p["bn1_gamma"] = 0.5 + jax.random.uniform(ks[8], (64,), jnp.float32)
    p["bn1_beta"] = 0.1 * jax.random.normal(ks[9], (64,), jnp.float32)
    p["bn1_mean"] = 0.1 * jax.random.normal(ks[10], (64,), jnp.float32)
    p["bn1_var"] = 0.5 + jax.random.uniform(ks[11], (64,), jnp.float32)
    p["bn2_gamma"] = 0.5 + jax.random.uniform(ks[12], (32,), jnp.float32)
    p["bn2_beta"] = 0.1 * jax.random.normal(ks[13], (32,), jnp.float32)
    p["bn2_mean"] = 0.1 * jax.random.normal(ks[14], (32,), jnp.float32)
    p["bn2_var"] = 0.5 + jax.random.uniform(ks[15], (32,), jnp.float32)
    return p


if __name__ == "__main__":
    key = jax.random.PRNGKey(0)
    k_x, k_p = jax.random.split(key)
    x = jax.random.normal(k_x, (2, 3, 16, 16), jnp.float32)   # NCHW like PyTorch
    params = _init_params(k_p)
    consts = build_constants(params, x.shape)

    fwd = jax.jit(model_forward)
    out = jax.block_until_ready(fwd(x, consts))

    assert out.shape == (2, 4, 4, 4), out.shape
    # Softmax2d: channel sums == 1 (exact division now — tight tolerance)
    sum_err = float(jnp.max(jnp.abs(jnp.sum(out, axis=1) - 1.0)))
    assert sum_err < 1e-5, sum_err
    # Cross-check against a pure-XLA reference of the module (loose tolerance
    # accommodates the bf16 gather-GEMM operands from the perf review).
    ref = _reference_forward(x, params)
    max_err = float(jnp.max(jnp.abs(out - ref)))
    assert max_err < 2e-2, max_err
    print("KERNEL_OK")
</pallas_src>

<mosaic_0001>
module attributes {stable_mosaic.version = 11 : i64} {
  func.func @_fused_net_kernel(%arg0: memref<200x16xf32, #tpu.memory_space<vmem>>, %arg1: memref<16x64xf32, #tpu.memory_space<vmem>>, %arg2: memref<1x64xf32, #tpu.memory_space<vmem>>, %arg3: memref<416x200xbf16, #tpu.memory_space<vmem>>, %arg4: memref<64x128xf32, #tpu.memory_space<vmem>>, %arg5: memref<1x32xf32, #tpu.memory_space<vmem>>, %arg6: memref<224x104xbf16, #tpu.memory_space<vmem>>, %arg7: memref<32x64xf32, #tpu.memory_space<vmem>>, %arg8: memref<1x16xf32, #tpu.memory_space<vmem>>, %arg9: memref<128x56xbf16, #tpu.memory_space<vmem>>, %arg10: memref<16x32xf32, #tpu.memory_space<vmem>>, %arg11: memref<1x8xf32, #tpu.memory_space<vmem>>, %arg12: memref<128x32xbf16, #tpu.memory_space<vmem>>, %arg13: memref<8x16xf32, #tpu.memory_space<vmem>>, %arg14: memref<1x4xf32, #tpu.memory_space<vmem>>, %arg15: memref<32x4xf32, #tpu.memory_space<vmem>>) attributes {dimension_semantics = [], scalar_prefetch = 0 : i64, scratch_operands = 0 : i64, tpu.core_type = #tpu.core_type<tc>} {
    %c0 = arith.constant 0 : index
    %c0_0 = arith.constant 0 : index
    %0 = vector.load %arg0[%c0, %c0_0] : memref<200x16xf32, #tpu.memory_space<vmem>>, vector<200x16xf32>
    %c0_1 = arith.constant 0 : index
    %c0_2 = arith.constant 0 : index
    %1 = vector.load %arg1[%c0_1, %c0_2] : memref<16x64xf32, #tpu.memory_space<vmem>>, vector<16x64xf32>
    %cst = arith.constant dense<0.000000e+00> : vector<200x64xf32>
    %2 = tpu.matmul %0, %1, %cst {dimension_numbers = #tpu.dot_dimension_numbers<[1], [0], [0], [1], [0, 0, 1, 1], [], []>} : vector<200x16xf32>, vector<16x64xf32>, vector<200x64xf32> -> vector<200x64xf32>
    %c0_3 = arith.constant 0 : index
    %c0_4 = arith.constant 0 : index
    %3 = vector.load %arg2[%c0_3, %c0_4] : memref<1x64xf32, #tpu.memory_space<vmem>>, vector<1x64xf32>
    %4 = vector.broadcast %3 : vector<1x64xf32> to vector<200x64xf32>
    %5 = arith.addf %2, %4 : vector<200x64xf32>
    %6 = math.absf %5 : vector<200x64xf32>
    %cst_5 = arith.constant 5.000000e-01 : f32
    %7 = vector.broadcast %cst_5 : f32 to vector<200x64xf32>
    %8 = arith.cmpf ogt, %6, %7 : vector<200x64xf32>
    %cst_6 = arith.constant 0.000000e+00 : f32
    %9 = vector.broadcast %cst_6 : f32 to vector<200x64xf32>
    %10 = arith.select %8, %5, %9 : vector<200x64xi1>, vector<200x64xf32>
    %c0_7 = arith.constant 0 : index
    %c0_8 = arith.constant 0 : index
    %11 = vector.load %arg3[%c0_7, %c0_8] : memref<416x200xbf16, #tpu.memory_space<vmem>>, vector<416x200xbf16>
    %12 = arith.truncf %10 : vector<200x64xf32> to vector<200x64xbf16>
    %cst_9 = arith.constant dense<0.000000e+00> : vector<416x64xf32>
    %13 = tpu.matmul %11, %12, %cst_9 {dimension_numbers = #tpu.dot_dimension_numbers<[1], [0], [0], [1], [0, 0, 1, 1], [], []>} : vector<416x200xbf16>, vector<200x64xbf16>, vector<416x64xf32> -> vector<416x64xf32>
    %c0_10 = arith.constant 0 : index
    %c0_11 = arith.constant 0 : index
    %14 = vector.load %arg4[%c0_10, %c0_11] : memref<64x128xf32, #tpu.memory_space<vmem>>, vector<64x128xf32>
    %cst_12 = arith.constant dense<0.000000e+00> : vector<416x128xf32>
    %15 = tpu.matmul %13, %14, %cst_12 {dimension_numbers = #tpu.dot_dimension_numbers<[1], [0], [0], [1], [0, 0, 1, 1], [], []>} : vector<416x64xf32>, vector<64x128xf32>, vector<416x128xf32> -> vector<416x128xf32>
    %16 = vector.extract_strided_slice %15 {offsets = [0, 0], sizes = [104, 32], strides = [1, 1]} : vector<416x128xf32> to vector<104x32xf32>
    %17 = vector.extract_strided_slice %15 {offsets = [104, 32], sizes = [104, 32], strides = [1, 1]} : vector<416x128xf32> to vector<104x32xf32>
    %18 = arith.addf %16, %17 : vector<104x32xf32>
    %19 = vector.extract_strided_slice %15 {offsets = [208, 64], sizes = [104, 32], strides = [1, 1]} : vector<416x128xf32> to vector<104x32xf32>
    %20 = arith.addf %18, %19 : vector<104x32xf32>
    %21 = vector.extract_strided_slice %15 {offsets = [312, 96], sizes = [104, 32], strides = [1, 1]} : vector<416x128xf32> to vector<104x32xf32>
    %22 = arith.addf %20, %21 : vector<104x32xf32>
    %c0_13 = arith.constant 0 : index
    %c0_14 = arith.constant 0 : index
    %23 = vector.load %arg5[%c0_13, %c0_14] : memref<1x32xf32, #tpu.memory_space<vmem>>, vector<1x32xf32>
    %24 = vector.broadcast %23 : vector<1x32xf32> to vector<104x32xf32>
    %25 = arith.addf %22, %24 : vector<104x32xf32>
    %cst_15 = arith.constant 5.000000e-01 : f32
    %26 = vector.broadcast %cst_15 : f32 to vector<104x32xf32>
    %27 = arith.mulf %26, %25 : vector<104x32xf32>
    %cst_16 = arith.constant 1.41421354 : f32
    %28 = vector.broadcast %cst_16 : f32 to vector<104x32xf32>
    %29 = arith.divf %25, %28 : vector<104x32xf32>
    %30 = math.erf %29 : vector<104x32xf32>
    %cst_17 = arith.constant 1.000000e+00 : f32
    %31 = vector.broadcast %cst_17 : f32 to vector<104x32xf32>
    %32 = arith.addf %31, %30 : vector<104x32xf32>
    %33 = arith.mulf %27, %32 : vector<104x32xf32>
    %c0_18 = arith.constant 0 : index
    %c0_19 = arith.constant 0 : index
    %34 = vector.load %arg6[%c0_18, %c0_19] : memref<224x104xbf16, #tpu.memory_space<vmem>>, vector<224x104xbf16>
    %35 = arith.truncf %33 : vector<104x32xf32> to vector<104x32xbf16>
    %cst_20 = arith.constant dense<0.000000e+00> : vector<224x32xf32>
    %36 = tpu.matmul %34, %35, %cst_20 {dimension_numbers = #tpu.dot_dimension_numbers<[1], [0], [0], [1], [0, 0, 1, 1], [], []>} : vector<224x104xbf16>, vector<104x32xbf16>, vector<224x32xf32> -> vector<224x32xf32>
    %c0_21 = arith.constant 0 : index
    %c0_22 = arith.constant 0 : index
    %37 = vector.load %arg7[%c0_21, %c0_22] : memref<32x64xf32, #tpu.memory_space<vmem>>, vector<32x64xf32>
    %cst_23 = arith.constant dense<0.000000e+00> : vector<224x64xf32>
    %38 = tpu.matmul %36, %37, %cst_23 {dimension_numbers = #tpu.dot_dimension_numbers<[1], [0], [0], [1], [0, 0, 1, 1], [], []>} : vector<224x32xf32>, vector<32x64xf32>, vector<224x64xf32> -> vector<224x64xf32>
    %39 = vector.extract_strided_slice %38 {offsets = [0, 0], sizes = [56, 16], strides = [1, 1]} : vector<224x64xf32> to vector<56x16xf32>
    %40 = vector.extract_strided_slice %38 {offsets = [56, 16], sizes = [56, 16], strides = [1, 1]} : vector<224x64xf32> to vector<56x16xf32>
    %41 = arith.addf %39, %40 : vector<56x16xf32>
    %42 = vector.extract_strided_slice %38 {offsets = [112, 32], sizes = [56, 16], strides = [1, 1]} : vector<224x64xf32> to vector<56x16xf32>
    %43 = arith.addf %41, %42 : vector<56x16xf32>
    %44 = vector.extract_strided_slice %38 {offsets = [168, 48], sizes = [56, 16], strides = [1, 1]} : vector<224x64xf32> to vector<56x16xf32>
    %45 = arith.addf %43, %44 : vector<56x16xf32>
    %c0_24 = arith.constant 0 : index
    %c0_25 = arith.constant 0 : index
    %46 = vector.load %arg8[%c0_24, %c0_25] : memref<1x16xf32, #tpu.memory_space<vmem>>, vector<1x16xf32>
    %47 = vector.broadcast %46 : vector<1x16xf32> to vector<56x16xf32>
    %48 = arith.addf %45, %47 : vector<56x16xf32>
    %49 = math.tanh %48 : vector<56x16xf32>
    %50 = arith.subf %48, %49 : vector<56x16xf32>
    %c0_26 = arith.constant 0 : index
    %c0_27 = arith.constant 0 : index
    %51 = vector.load %arg9[%c0_26, %c0_27] : memref<128x56xbf16, #tpu.memory_space<vmem>>, vector<128x56xbf16>
    %52 = arith.truncf %50 : vector<56x16xf32> to vector<56x16xbf16>
    %cst_28 = arith.constant dense<0.000000e+00> : vector<128x16xf32>
    %53 = tpu.matmul %51, %52, %cst_28 {dimension_numbers = #tpu.dot_dimension_numbers<[1], [0], [0], [1], [0, 0, 1, 1], [], []>} : vector<128x56xbf16>, vector<56x16xbf16>, vector<128x16xf32> -> vector<128x16xf32>
    %c0_29 = arith.constant 0 : index
    %c0_30 = arith.constant 0 : index
    %54 = vector.load %arg10[%c0_29, %c0_30] : memref<16x32xf32, #tpu.memory_space<vmem>>, vector<16x32xf32>
    %cst_31 = arith.constant dense<0.000000e+00> : vector<128x32xf32>
    %55 = tpu.matmul %53, %54, %cst_31 {dimension_numbers = #tpu.dot_dimension_numbers<[1], [0], [0], [1], [0, 0, 1, 1], [], []>} : vector<128x16xf32>, vector<16x32xf32>, vector<128x32xf32> -> vector<128x32xf32>
    %56 = vector.extract_strided_slice %55 {offsets = [0, 0], sizes = [32, 8], strides = [1, 1]} : vector<128x32xf32> to vector<32x8xf32>
    %57 = vector.extract_strided_slice %55 {offsets = [32, 8], sizes = [32, 8], strides = [1, 1]} : vector<128x32xf32> to vector<32x8xf32>
    %58 = arith.addf %56, %57 : vector<32x8xf32>
    %59 = vector.extract_strided_slice %55 {offsets = [64, 16], sizes = [32, 8], strides = [1, 1]} : vector<128x32xf32> to vector<32x8xf32>
    %60 = arith.addf %58, %59 : vector<32x8xf32>
    %61 = vector.extract_strided_slice %55 {offsets = [96, 24], sizes = [32, 8], strides = [1, 1]} : vector<128x32xf32> to vector<32x8xf32>
    %62 = arith.addf %60, %61 : vector<32x8xf32>
    %c0_32 = arith.constant 0 : index
    %c0_33 = arith.constant 0 : index
    %63 = vector.load %arg11[%c0_32, %c0_33] : memref<1x8xf32, #tpu.memory_space<vmem>>, vector<1x8xf32>
    %64 = vector.broadcast %63 : vector<1x8xf32> to vector<32x8xf32>
    %65 = arith.addf %62, %64 : vector<32x8xf32>
    %cst_34 = arith.constant 0.000000e+00 : f32
    %66 = vector.broadcast %cst_34 : f32 to vector<32x8xf32>
    %67 = arith.maximumf %65, %66 : vector<32x8xf32>
    %68 = vector.broadcast %cst_34 : f32 to vector<32x8xf32>
    %69 = arith.subf %65, %68 : vector<32x8xf32>
    %70 = arith.cmpf one, %69, %69 : vector<32x8xf32>
    %71 = vector.broadcast %cst_34 : f32 to vector<32x8xf32>
    %72 = arith.addf %65, %71 : vector<32x8xf32>
    %73 = math.absf %69 : vector<32x8xf32>
    %cst_35 = arith.constant 0.000000e+00 : f32
    %74 = vector.broadcast %cst_35 : f32 to vector<32x8xf32>
    %75 = arith.subf %74, %73 : vector<32x8xf32>
    %76 = math.exp %75 : vector<32x8xf32>
    %77 = math.log1p %76 : vector<32x8xf32>
    %78 = arith.addf %67, %77 : vector<32x8xf32>
    %79 = arith.select %70, %72, %78 : vector<32x8xi1>, vector<32x8xf32>
    %80 = math.tanh %79 : vector<32x8xf32>
    %81 = arith.mulf %65, %80 : vector<32x8xf32>
    %c0_36 = arith.constant 0 : index
    %c0_37 = arith.constant 0 : index
    %82 = vector.load %arg12[%c0_36, %c0_37] : memref<128x32xbf16, #tpu.memory_space<vmem>>, vector<128x32xbf16>
    %83 = arith.truncf %81 : vector<32x8xf32> to vector<32x8xbf16>
    %cst_38 = arith.constant dense<0.000000e+00> : vector<128x8xf32>
    %84 = tpu.matmul %82, %83, %cst_38 {dimension_numbers = #tpu.dot_dimension_numbers<[1], [0], [0], [1], [0, 0, 1, 1], [], []>} : vector<128x32xbf16>, vector<32x8xbf16>, vector<128x8xf32> -> vector<128x8xf32>
    %c0_39 = arith.constant 0 : index
    %c0_40 = arith.constant 0 : index
    %85 = vector.load %arg13[%c0_39, %c0_40] : memref<8x16xf32, #tpu.memory_space<vmem>>, vector<8x16xf32>
    %cst_41 = arith.constant dense<0.000000e+00> : vector<128x16xf32>
    %86 = tpu.matmul %84, %85, %cst_41 {dimension_numbers = #tpu.dot_dimension_numbers<[1], [0], [0], [1], [0, 0, 1, 1], [], []>} : vector<128x8xf32>, vector<8x16xf32>, vector<128x16xf32> -> vector<128x16xf32>
    %87 = vector.extract_strided_slice %86 {offsets = [0, 0], sizes = [32, 4], strides = [1, 1]} : vector<128x16xf32> to vector<32x4xf32>
    %88 = vector.extract_strided_slice %86 {offsets = [32, 4], sizes = [32, 4], strides = [1, 1]} : vector<128x16xf32> to vector<32x4xf32>
    %89 = arith.addf %87, %88 : vector<32x4xf32>
    %90 = vector.extract_strided_slice %86 {offsets = [64, 8], sizes = [32, 4], strides = [1, 1]} : vector<128x16xf32> to vector<32x4xf32>
    %91 = arith.addf %89, %90 : vector<32x4xf32>
    %92 = vector.extract_strided_slice %86 {offsets = [96, 12], sizes = [32, 4], strides = [1, 1]} : vector<128x16xf32> to vector<32x4xf32>
    %93 = arith.addf %91, %92 : vector<32x4xf32>
    %c0_42 = arith.constant 0 : index
    %c0_43 = arith.constant 0 : index
    %94 = vector.load %arg14[%c0_42, %c0_43] : memref<1x4xf32, #tpu.memory_space<vmem>>, vector<1x4xf32>
    %95 = vector.broadcast %94 : vector<1x4xf32> to vector<32x4xf32>
    %96 = arith.addf %93, %95 : vector<32x4xf32>
    %cst_44 = arith.constant dense<0xFF800000> : vector<32xf32>
    %97 = vector.multi_reduction <maximumf>, %96, %cst_44 [1] : vector<32x4xf32> to vector<32xf32>
    %98 = vector.shape_cast %97 : vector<32xf32> to vector<32x1xf32>
    %99 = vector.broadcast %98 : vector<32x1xf32> to vector<32x4xf32>
    %100 = arith.subf %96, %99 : vector<32x4xf32>
    %101 = math.exp %100 : vector<32x4xf32>
    %cst_45 = arith.constant dense<0.000000e+00> : vector<32xf32>
    %102 = vector.multi_reduction <add>, %101, %cst_45 [1] : vector<32x4xf32> to vector<32xf32>
    %103 = vector.shape_cast %102 : vector<32xf32> to vector<32x1xf32>
    %104 = vector.broadcast %103 : vector<32x1xf32> to vector<32x4xf32>
    %105 = arith.divf %101, %104 : vector<32x4xf32>
    %c0_46 = arith.constant 0 : index
    %c0_47 = arith.constant 0 : index
    %106 = vector.load %arg15[%c0_46, %c0_47] : memref<32x4xf32, #tpu.memory_space<vmem>>, vector<32x4xf32>
    tpu.vector_store %arg15[%c0_46, %c0_47], %105 {strides = array<i32>} : memref<32x4xf32, #tpu.memory_space<vmem>>, vector<32x4xf32>,
    return
  }
}

</mosaic_0001>

<llo_original>
// kernel: model_forward.1
$region0: #{model_forward.1}
  #allocation0 [shape = 'u32[]', space=smem, size = 0x4, offset = 0x4, fixed_abs, tag = 'smem constant byte address 0x4 - core index']
  #allocation1 [shape = 'u32[144,128]{1,0:T(1,128)}', space=vmem, size = 0x12000, scoped, tag = 'internal scratch']
  %s0 = inlined_call_operand.vmem [shape: f32[200,16], index: 0, kind: input, shape index: {}]
  %s1 = inlined_call_operand.vmem [shape: f32[16,64], index: 1, kind: input, shape index: {}]
  %s2 = inlined_call_operand.vmem [shape: f32[1,64], index: 2, kind: input, shape index: {}]
  %s3 = inlined_call_operand.vmem [shape: bf16[416,200], index: 3, kind: input, shape index: {}]
  %s4 = inlined_call_operand.vmem [shape: f32[64,128], index: 4, kind: input, shape index: {}]
  %s5 = inlined_call_operand.vmem [shape: f32[1,32], index: 5, kind: input, shape index: {}]
  %s6 = inlined_call_operand.vmem [shape: bf16[224,104], index: 6, kind: input, shape index: {}]
  %s7 = inlined_call_operand.vmem [shape: f32[32,64], index: 7, kind: input, shape index: {}]
  %s8 = inlined_call_operand.vmem [shape: f32[1,16], index: 8, kind: input, shape index: {}]
  %s9 = inlined_call_operand.vmem [shape: bf16[128,56], index: 9, kind: input, shape index: {}]
  %s10 = inlined_call_operand.vmem [shape: f32[16,32], index: 10, kind: input, shape index: {}]
  %s11 = inlined_call_operand.vmem [shape: f32[1,8], index: 11, kind: input, shape index: {}]
  %s12 = inlined_call_operand.vmem [shape: bf16[128,32], index: 12, kind: input, shape index: {}]
  %s13 = inlined_call_operand.vmem [shape: f32[8,16], index: 13, kind: input, shape index: {}]
  %s14 = inlined_call_operand.vmem [shape: f32[1,4], index: 14, kind: input, shape index: {}]
  %s15 = inlined_call_operand.vmem [shape: f32[32,4], index: 15, kind: output, shape index: {}]
  %s16 = sld [smem:[#allocation0]]
  $region70: #{model_forward.1} parent=0
    _
  %s18 = ssub.s32 1, %s16
  %s19 = scalar_select 0, %s18, %s16
  // Predicated region
  $region2: #{model_forward.1} parent=0 // pred_check
    _
  $region3: #{model_forward.1} parent=0 // pred_check_branch
    %21 = sbr.rel (0) target = $region5
  $region4: #{model_forward.1} parent=0 // pred_region
    _
  $region5: #{model_forward.1} parent=0 // pred_fallthru
    _
  // Predicated region
  $region6: #{model_forward.1} parent=0 // pred_check
    _
  $region7: #{model_forward.1} parent=0 // pred_check_branch
    %23 = sbr.rel (0) target = $region9
  $region8: #{model_forward.1} parent=0 // pred_region
    _
  $region9: #{model_forward.1} parent=0 // pred_fallthru
    _
  // Predicated region
  $region10: #{model_forward.1} parent=0 // pred_check
    _
  $region11: #{model_forward.1} parent=0 // pred_check_branch
    %25 = sbr.rel (0) target = $region13
  $region12: #{model_forward.1} parent=0 // pred_region
    _
  $region13: #{model_forward.1} parent=0 // pred_fallthru
    _
  // Predicated region
  $region14: #{model_forward.1} parent=0 // pred_check
    _
  $region15: #{model_forward.1} parent=0 // pred_check_branch
    %27 = sbr.rel (0) target = $region17
  $region16: #{model_forward.1} parent=0 // pred_region
    _
  $region17: #{model_forward.1} parent=0 // pred_fallthru
    _
  // Predicated region
  $region18: #{model_forward.1} parent=0 // pred_check
    _
  $region19: #{model_forward.1} parent=0 // pred_check_branch
    %29 = sbr.rel (0) target = $region21
  $region20: #{model_forward.1} parent=0 // pred_region
    _
  $region21: #{model_forward.1} parent=0 // pred_fallthru
    _
  // Predicated region
  $region22: #{model_forward.1} parent=0 // pred_check
    _
  $region23: #{model_forward.1} parent=0 // pred_check_branch
    %31 = sbr.rel (0) target = $region25
  $region24: #{model_forward.1} parent=0 // pred_region
    _
  $region25: #{model_forward.1} parent=0 // pred_fallthru
    _
  // Predicated region
  $region26: #{model_forward.1} parent=0 // pred_check
    _
  $region27: #{model_forward.1} parent=0 // pred_check_branch
    %33 = sbr.rel (0) target = $region29
  $region28: #{model_forward.1} parent=0 // pred_region
    _
  $region29: #{model_forward.1} parent=0 // pred_fallthru
    _
  // Predicated region
  $region30: #{model_forward.1} parent=0 // pred_check
    _
  $region31: #{model_forward.1} parent=0 // pred_check_branch
    %35 = sbr.rel (0) target = $region33
  $region32: #{model_forward.1} parent=0 // pred_region
    _
  $region33: #{model_forward.1} parent=0 // pred_fallthru
    _
  // Predicated region
  $region34: #{model_forward.1} parent=0 // pred_check
    _
  $region35: #{model_forward.1} parent=0 // pred_check_branch
    %37 = sbr.rel (0) target = $region37
  $region36: #{model_forward.1} parent=0 // pred_region
    _
  $region37: #{model_forward.1} parent=0 // pred_fallthru
    _
  // Predicated region
  $region38: #{model_forward.1} parent=0 // pred_check
    _
  $region39: #{model_forward.1} parent=0 // pred_check_branch
    %39 = sbr.rel (0) target = $region41
  $region40: #{model_forward.1} parent=0 // pred_region
    _
  $region41: #{model_forward.1} parent=0 // pred_fallthru
    _
  // Predicated region
  $region42: #{model_forward.1} parent=0 // pred_check
    _
  $region43: #{model_forward.1} parent=0 // pred_check_branch
    %41 = sbr.rel (0) target = $region45
  $region44: #{model_forward.1} parent=0 // pred_region
    _
  $region45: #{model_forward.1} parent=0 // pred_fallthru
    _
  // Predicated region
  $region46: #{model_forward.1} parent=0 // pred_check
    _
  $region47: #{model_forward.1} parent=0 // pred_check_branch
    %43 = sbr.rel (0) target = $region49
  $region48: #{model_forward.1} parent=0 // pred_region
    _
  $region49: #{model_forward.1} parent=0 // pred_fallthru
    _
  // Predicated region
  $region50: #{model_forward.1} parent=0 // pred_check
    _
  $region51: #{model_forward.1} parent=0 // pred_check_branch
    %45 = sbr.rel (0) target = $region53
  $region52: #{model_forward.1} parent=0 // pred_region
    _
  $region53: #{model_forward.1} parent=0 // pred_fallthru
    _
  // Predicated region
  $region54: #{model_forward.1} parent=0 // pred_check
    _
  $region55: #{model_forward.1} parent=0 // pred_check_branch
    %47 = sbr.rel (0) target = $region57
  $region56: #{model_forward.1} parent=0 // pred_region
    _
  $region57: #{model_forward.1} parent=0 // pred_fallthru
    _
  // Predicated region
  $region58: #{model_forward.1} parent=0 // pred_check
    _
  $region59: #{model_forward.1} parent=0 // pred_check_branch
    %49 = sbr.rel (0) target = $region61
  $region60: #{model_forward.1} parent=0 // pred_region
    _
  $region61: #{model_forward.1} parent=0 // pred_fallthru
    _
  %v51 = vld [vmem:[%s0] sm:$0xff]
  %v52 = vld [vmem:[%s0 + $0x8] sm:$0xff]
  %v53 = vld [vmem:[%s0 + $0x10] sm:$0xff]
  %v54 = vld [vmem:[%s0 + $0x18] sm:$0xff]
  %v55 = vld [vmem:[%s0 + $0x20] sm:$0xff]
  %v56 = vld [vmem:[%s0 + $0x28] sm:$0xff]
  %v57 = vld [vmem:[%s0 + $0x30] sm:$0xff]
  %v58 = vld [vmem:[%s0 + $0x38] sm:$0xff]
  %v59 = vld [vmem:[%s0 + $0x40] sm:$0xff]
  %v60 = vld [vmem:[%s0 + $0x48] sm:$0xff]
  %v61 = vld [vmem:[%s0 + $0x50] sm:$0xff]
  %v62 = vld [vmem:[%s0 + $0x58] sm:$0xff]
  %v63 = vld [vmem:[%s0 + $0x60] sm:$0xff]
  %v64 = vld [vmem:[%s0 + $0x68] sm:$0xff]
  %v65 = vld [vmem:[%s0 + $0x70] sm:$0xff]
  %v66 = vld [vmem:[%s0 + $0x78] sm:$0xff]
  %v67 = vld [vmem:[%s0 + $0x80] sm:$0xff]
  %v68 = vld [vmem:[%s0 + $0x88] sm:$0xff]
  %v69 = vld [vmem:[%s0 + $0x90] sm:$0xff]
  %v70 = vld [vmem:[%s0 + $0x98] sm:$0xff]
  %v71 = vld [vmem:[%s0 + $0xa0] sm:$0xff]
  %v72 = vld [vmem:[%s0 + $0xa8] sm:$0xff]
  %v73 = vld [vmem:[%s0 + $0xb0] sm:$0xff]
  %v74 = vld [vmem:[%s0 + $0xb8] sm:$0xff]
  %v75 = vld [vmem:[%s0 + $0xc0] sm:$0xff]
  %v76 = vld [vmem:[%s1] sm:$0xff]
  %v77 = vld [vmem:[%s1 + $0x8] sm:$0xff]
  %v78 = vld [vmem:[%s2] sm:$0x1]
  %v80 = vlaneseq
  %v81 = vshrl.u32 %v80, 7
  %v82 = vsub.s32 0, %v81
  %v83 = vrot.slane %v78, %v82
  %vm85 = vcmask 130048
  %v87 = vsel %vm85, %v51, 0
  %v90 = vsel %vm85, %v52, 0
  %v93 = vsel %vm85, %v53, 0
  %v96 = vsel %vm85, %v54, 0
  %v99 = vsel %vm85, %v55, 0
  %v102 = vsel %vm85, %v56, 0
  %v105 = vsel %vm85, %v57, 0
  %v108 = vsel %vm85, %v58, 0
  %v111 = vsel %vm85, %v59, 0
  %v114 = vsel %vm85, %v60, 0
  %v117 = vsel %vm85, %v61, 0
  %v120 = vsel %vm85, %v62, 0
  %v123 = vsel %vm85, %v63, 0
  %v126 = vsel %vm85, %v64, 0
  %v129 = vsel %vm85, %v65, 0
  %v132 = vsel %vm85, %v66, 0
  %v135 = vsel %vm85, %v67, 0
  %v138 = vsel %vm85, %v68, 0
  %v141 = vsel %vm85, %v69, 0
  %v144 = vsel %vm85, %v70, 0
  %v147 = vsel %vm85, %v71, 0
  %v150 = vsel %vm85, %v72, 0
  %v153 = vsel %vm85, %v73, 0
  %v156 = vsel %vm85, %v74, 0
  %v159 = vsel %vm85, %v75, 0
  %161 = vmatprep.subr.mxu0 0.0
  %162 = vmatpush1.msra.mxu0 0.0
  %163 = vmatprep.subr.mxu0 0.0
  %164 = vmatpush1.msra.mxu0 0.0
  %165 = vmatprep.subr.mxu0 0.0
  %166 = vmatpush1.msra.mxu0 0.0
  %167 = vmatprep.subr.mxu0 0.0
  %168 = vmatpush1.msra.mxu0 0.0
  %169 = vmatprep.subr.mxu0 0.0
  %170 = vmatpush1.msra.mxu0 0.0
  %171 = vmatprep.subr.mxu0 0.0
  %172 = vmatpush1.msra.mxu0 0.0
  %173 = vmatprep.subr.mxu0 0.0
  %174 = vmatpush1.msra.mxu0 0.0
  %175 = vmatprep.subr.mxu0 0.0
  %176 = vmatpush1.msra.mxu0 0.0
  %177 = vmatprep.subr.mxu0 0.0
  %178 = vmatpush1.msra.mxu0 0.0
  %179 = vmatprep.subr.mxu0 0.0
  %180 = vmatpush1.msra.mxu0 0.0
  %181 = vmatprep.subr.mxu0 0.0
  %182 = vmatpush1.msra.mxu0 0.0
  %183 = vmatprep.subr.mxu0 0.0
  %184 = vmatpush1.msra.mxu0 0.0
  %185 = vmatprep.subr.mxu0 0.0
  %186 = vmatpush1.msra.mxu0 0.0
  %187 = vmatprep.subr.mxu0 0.0
  %188 = vmatpush1.msra.mxu0 0.0
  %189 = vmatprep.subr.mxu0 0.0
  %190 = vmatpush1.msra.mxu0 %v77
  %191 = vmatprep.subr.mxu0 0.0
  %192 = vmatpush1.msra.mxu0 %v76
  %193 = vmatprep.subr.mxu0 0.0
  %194 = vmatpush2.msra.mxu0 0.0
  %195 = vmatprep.subr.mxu0 0.0
  %196 = vmatpush2.msra.mxu0 0.0
  %197 = vmatprep.subr.mxu0 0.0
  %198 = vmatpush2.msra.mxu0 0.0
  %199 = vmatprep.subr.mxu0 0.0
  %200 = vmatpush2.msra.mxu0 0.0
  %201 = vmatprep.subr.mxu0 0.0
  %202 = vmatpush2.msra.mxu0 0.0
  %203 = vmatprep.subr.mxu0 0.0
  %204 = vmatpush2.msra.mxu0 0.0
  %205 = vmatprep.subr.mxu0 0.0
  %206 = vmatpush2.msra.mxu0 0.0
  %207 = vmatprep.subr.mxu0 0.0
  %208 = vmatpush2.msra.mxu0 0.0
  %209 = vmatprep.subr.mxu0 0.0
  %210 = vmatpush2.msra.mxu0 0.0
  %211 = vmatprep.subr.mxu0 0.0
  %212 = vmatpush2.msra.mxu0 0.0
  %213 = vmatprep.subr.mxu0 0.0
  %214 = vmatpush2.msra.mxu0 0.0
  %215 = vmatprep.subr.mxu0 0.0
  %216 = vmatpush2.msra.mxu0 0.0
  %217 = vmatprep.subr.mxu0 0.0
  %218 = vmatpush2.msra.mxu0 0.0
  %219 = vmatprep.subr.mxu0 0.0
  %220 = vmatpush2.msra.mxu0 0.0
  %221 = vmatprep.subr.mxu0 0.0
  %222 = vmatpush2.msra.mxu0 0.0
  %223 = vmatprep.subr.mxu0 0.0
  %224 = vmatpush2.msra.mxu0 0.0
  %225 = vmatprep.mubr.f32.mxu0 0.0
  %226 = vmatmul.mubr.f32.gmra.mxu0 %v87
  %v227 = vpop.f32.mrf.mxu0
  %v228 = vadd.f32 %v83, %v227
  %v229 = vpop.f32.mrf.mxu0
  %230 = vmatprep.mubr.f32.mxu0 0.0
  %231 = vmatmul.mubr.f32.gmra.mxu0 %v90
  %v232 = vpop.f32.mrf.mxu0
  %v233 = vadd.f32 %v83, %v232
  %v234 = vpop.f32.mrf.mxu0
  %235 = vmatprep.mubr.f32.mxu0 0.0
  %236 = vmatmul.mubr.f32.gmra.mxu0 %v93
  %v237 = vpop.f32.mrf.mxu0
  %v238 = vadd.f32 %v83, %v237
  %v239 = vpop.f32.mrf.mxu0
  %240 = vmatprep.mubr.f32.mxu0 0.0
  %241 = vmatmul.mubr.f32.gmra.mxu0 %v96
  %v242 = vpop.f32.mrf.mxu0
  %v243 = vadd.f32 %v83, %v242
  %v244 = vpop.f32.mrf.mxu0
  %245 = vmatprep.mubr.f32.mxu0 0.0
  %246 = vmatmul.mubr.f32.gmra.mxu0 %v99
  %v247 = vpop.f32.mrf.mxu0
  %v248 = vadd.f32 %v83, %v247
  %v249 = vpop.f32.mrf.mxu0
  %250 = vmatprep.mubr.f32.mxu0 0.0
  %251 = vmatmul.mubr.f32.gmra.mxu0 %v102
  %v252 = vpop.f32.mrf.mxu0
  %v253 = vadd.f32 %v83, %v252
  %v254 = vpop.f32.mrf.mxu0
  %255 = vmatprep.mubr.f32.mxu0 0.0
  %256 = vmatmul.mubr.f32.gmra.mxu0 %v105
  %v257 = vpop.f32.mrf.mxu0
  %v258 = vadd.f32 %v83, %v257
  %v259 = vpop.f32.mrf.mxu0
  %260 = vmatprep.mubr.f32.mxu0 0.0
  %261 = vmatmul.mubr.f32.gmra.mxu0 %v108
  %v262 = vpop.f32.mrf.mxu0
  %v263 = vadd.f32 %v83, %v262
  %v264 = vpop.f32.mrf.mxu0
  %265 = vmatprep.mubr.f32.mxu0 0.0
  %266 = vmatmul.mubr.f32.gmra.mxu0 %v111
  %v267 = vpop.f32.mrf.mxu0
  %v268 = vadd.f32 %v83, %v267
  %v269 = vpop.f32.mrf.mxu0
  %270 = vmatprep.mubr.f32.mxu0 0.0
  %271 = vmatmul.mubr.f32.gmra.mxu0 %v114
  %v272 = vpop.f32.mrf.mxu0
  %v273 = vadd.f32 %v83, %v272
  %v274 = vpop.f32.mrf.mxu0
  %275 = vmatprep.mubr.f32.mxu0 0.0
  %276 = vmatmul.mubr.f32.gmra.mxu0 %v117
  %v277 = vpop.f32.mrf.mxu0
  %v278 = vadd.f32 %v83, %v277
  %v279 = vpop.f32.mrf.mxu0
  %280 = vmatprep.mubr.f32.mxu0 0.0
  %281 = vmatmul.mubr.f32.gmra.mxu0 %v120
  %v282 = vpop.f32.mrf.mxu0
  %v283 = vadd.f32 %v83, %v282
  %v284 = vpop.f32.mrf.mxu0
  %285 = vmatprep.mubr.f32.mxu0 0.0
  %286 = vmatmul.mubr.f32.gmra.mxu0 %v123
  %v287 = vpop.f32.mrf.mxu0
  %v288 = vadd.f32 %v83, %v287
  %v289 = vpop.f32.mrf.mxu0
  %290 = vmatprep.mubr.f32.mxu0 0.0
  %291 = vmatmul.mubr.f32.gmra.mxu0 %v126
  %v292 = vpop.f32.mrf.mxu0
  %v293 = vadd.f32 %v83, %v292
  %v294 = vpop.f32.mrf.mxu0
  %295 = vmatprep.mubr.f32.mxu0 0.0
  %296 = vmatmul.mubr.f32.gmra.mxu0 %v129
  %v297 = vpop.f32.mrf.mxu0
  %v298 = vadd.f32 %v83, %v297
  %v299 = vpop.f32.mrf.mxu0
  %300 = vmatprep.mubr.f32.mxu0 0.0
  %301 = vmatmul.mubr.f32.gmra.mxu0 %v132
  %v302 = vpop.f32.mrf.mxu0
  %v303 = vadd.f32 %v83, %v302
  %v304 = vpop.f32.mrf.mxu0
  %305 = vmatprep.mubr.f32.mxu0 0.0
  %306 = vmatmul.mubr.f32.gmra.mxu0 %v135
  %v307 = vpop.f32.mrf.mxu0
  %v308 = vadd.f32 %v83, %v307
  %v309 = vpop.f32.mrf.mxu0
  %310 = vmatprep.mubr.f32.mxu0 0.0
  %311 = vmatmul.mubr.f32.gmra.mxu0 %v138
  %v312 = vpop.f32.mrf.mxu0
  %v313 = vadd.f32 %v83, %v312
  %v314 = vpop.f32.mrf.mxu0
  %315 = vmatprep.mubr.f32.mxu0 0.0
  %316 = vmatmul.mubr.f32.gmra.mxu0 %v141
  %v317 = vpop.f32.mrf.mxu0
  %v318 = vadd.f32 %v83, %v317
  %v319 = vpop.f32.mrf.mxu0
  %320 = vmatprep.mubr.f32.mxu0 0.0
  %321 = vmatmul.mubr.f32.gmra.mxu0 %v144
  %v322 = vpop.f32.mrf.mxu0
  %v323 = vadd.f32 %v83, %v322
  %v324 = vpop.f32.mrf.mxu0
  %325 = vmatprep.mubr.f32.mxu0 0.0
  %326 = vmatmul.mubr.f32.gmra.mxu0 %v147
  %v327 = vpop.f32.mrf.mxu0
  %v328 = vadd.f32 %v83, %v327
  %v329 = vpop.f32.mrf.mxu0
  %330 = vmatprep.mubr.f32.mxu0 0.0
  %331 = vmatmul.mubr.f32.gmra.mxu0 %v150
  %v332 = vpop.f32.mrf.mxu0
  %v333 = vadd.f32 %v83, %v332
  %v334 = vpop.f32.mrf.mxu0
  %335 = vmatprep.mubr.f32.mxu0 0.0
  %336 = vmatmul.mubr.f32.gmra.mxu0 %v153
  %v337 = vpop.f32.mrf.mxu0
  %v338 = vadd.f32 %v83, %v337
  %v339 = vpop.f32.mrf.mxu0
  %340 = vmatprep.mubr.f32.mxu0 0.0
  %341 = vmatmul.mubr.f32.gmra.mxu0 %v156
  %v342 = vpop.f32.mrf.mxu0
  %v343 = vadd.f32 %v83, %v342
  %v344 = vpop.f32.mrf.mxu0
  %345 = vmatprep.mubr.f32.mxu0 0.0
  %346 = vmatmul.mubr.f32.gmra.mxu0 %v159
  %v347 = vpop.f32.mrf.mxu0
  %v348 = vadd.f32 %v83, %v347
  %v349 = vpop.f32.mrf.mxu0
  %350 = vdwg.mxu0
  %v351 = vand.u32 2147483647, %v228
  %v352 = vand.u32 2147483647, %v233
  %v353 = vand.u32 2147483647, %v238
  %v354 = vand.u32 2147483647, %v243
  %v355 = vand.u32 2147483647, %v248
  %v356 = vand.u32 2147483647, %v253
  %v357 = vand.u32 2147483647, %v258
  %v358 = vand.u32 2147483647, %v263
  %v359 = vand.u32 2147483647, %v268
  %v360 = vand.u32 2147483647, %v273
  %v361 = vand.u32 2147483647, %v278
  %v362 = vand.u32 2147483647, %v283
  %v363 = vand.u32 2147483647, %v288
  %v364 = vand.u32 2147483647, %v293
  %v365 = vand.u32 2147483647, %v298
  %v366 = vand.u32 2147483647, %v303
  %v367 = vand.u32 2147483647, %v308
  %v368 = vand.u32 2147483647, %v313
  %v369 = vand.u32 2147483647, %v318
  %v370 = vand.u32 2147483647, %v323
  %v371 = vand.u32 2147483647, %v328
  %v372 = vand.u32 2147483647, %v333
  %v373 = vand.u32 2147483647, %v338
  %v374 = vand.u32 2147483647, %v343
  %v375 = vand.u32 2147483647, %v348
  %vm376 = vcmp.gt.f32.partialorder %v351, 0.5
  %vm377 = vcmp.gt.f32.partialorder %v352, 0.5
  %vm378 = vcmp.gt.f32.partialorder %v353, 0.5
  %vm379 = vcmp.gt.f32.partialorder %v354, 0.5
  %vm380 = vcmp.gt.f32.partialorder %v355, 0.5
  %vm381 = vcmp.gt.f32.partialorder %v356, 0.5
  %vm382 = vcmp.gt.f32.partialorder %v357, 0.5
  %vm383 = vcmp.gt.f32.partialorder %v358, 0.5
  %vm384 = vcmp.gt.f32.partialorder %v359, 0.5
  %vm385 = vcmp.gt.f32.partialorder %v360, 0.5
  %vm386 = vcmp.gt.f32.partialorder %v361, 0.5
  %vm387 = vcmp.gt.f32.partialorder %v362, 0.5
  %vm388 = vcmp.gt.f32.partialorder %v363, 0.5
  %vm389 = vcmp.gt.f32.partialorder %v364, 0.5
  %vm390 = vcmp.gt.f32.partialorder %v365, 0.5
  %vm391 = vcmp.gt.f32.partialorder %v366, 0.5
  %vm392 = vcmp.gt.f32.partialorder %v367, 0.5
  %vm393 = vcmp.gt.f32.partialorder %v368, 0.5
  %vm394 = vcmp.gt.f32.partialorder %v369, 0.5
  %vm395 = vcmp.gt.f32.partialorder %v370, 0.5
  %vm396 = vcmp.gt.f32.partialorder %v371, 0.5
  %vm397 = vcmp.gt.f32.partialorder %v372, 0.5
  %vm398 = vcmp.gt.f32.partialorder %v373, 0.5
  %vm399 = vcmp.gt.f32.partialorder %v374, 0.5
  %vm400 = vcmp.gt.f32.partialorder %v375, 0.5
  %v401 = vsel %vm376, %v228, 0.0
  %v402 = vsel %vm377, %v233, 0.0
  %v403 = vsel %vm378, %v238, 0.0
  %v404 = vsel %vm379, %v243, 0.0
  %v405 = vsel %vm380, %v248, 0.0
  %v406 = vsel %vm381, %v253, 0.0
  %v407 = vsel %vm382, %v258, 0.0
  %v408 = vsel %vm383, %v263, 0.0
  %v409 = vsel %vm384, %v268, 0.0
  %v410 = vsel %vm385, %v273, 0.0
  %v411 = vsel %vm386, %v278, 0.0
  %v412 = vsel %vm387, %v283, 0.0
  %v413 = vsel %vm388, %v288, 0.0
  %v414 = vsel %vm389, %v293, 0.0
  %v415 = vsel %vm390, %v298, 0.0
  %v416 = vsel %vm391, %v303, 0.0
  %v417 = vsel %vm392, %v308, 0.0
  %v418 = vsel %vm393, %v313, 0.0
  %v419 = vsel %vm394, %v318, 0.0
  %v420 = vsel %vm395, %v323, 0.0
  %v421 = vsel %vm396, %v328, 0.0
  %v422 = vsel %vm397, %v333, 0.0
  %v423 = vsel %vm398, %v338, 0.0
  %v424 = vsel %vm399, %v343, 0.0
  %v425 = vsel %vm400, %v348, 0.0
  %v426 = vld [vmem:[%s3] sm:$0xff]
  %v427 = vld [vmem:[%s3 + $0x8] sm:$0xff]
  %v428 = vld [vmem:[%s3 + $0x10] sm:$0xff]
  %v429 = vld [vmem:[%s3 + $0x18] sm:$0xff]
  %v430 = vld [vmem:[%s3 + $0x20] sm:$0xff]
  %v431 = vld [vmem:[%s3 + $0x28] sm:$0xff]
  %v432 = vld [vmem:[%s3 + $0x30] sm:$0xff]
  %v433 = vld [vmem:[%s3 + $0x38] sm:$0xff]
  %v434 = vld [vmem:[%s3 + $0x40] sm:$0xff]
  %v435 = vld [vmem:[%s3 + $0x48] sm:$0xff]
  %v436 = vld [vmem:[%s3 + $0x50] sm:$0xff]
  %v437 = vld [vmem:[%s3 + $0x58] sm:$0xff]
  %v438 = vld [vmem:[%s3 + $0x60] sm:$0xff]
  %v439 = vld [vmem:[%s3 + $0x68] sm:$0xff]
  %v440 = vld [vmem:[%s3 + $0x70] sm:$0xff]
  %v441 = vld [vmem:[%s3 + $0x78] sm:$0xff]
  %v442 = vld [vmem:[%s3 + $0x80] sm:$0xff]
  %v443 = vld [vmem:[%s3 + $0x88] sm:$0xff]
  %v444 = vld [vmem:[%s3 + $0x90] sm:$0xff]
  %v445 = vld [vmem:[%s3 + $0x98] sm:$0xff]
  %v446 = vld [vmem:[%s3 + $0xa0] sm:$0xff]
  %v447 = vld [vmem:[%s3 + $0xa8] sm:$0xff]
  %v448 = vld [vmem:[%s3 + $0xb0] sm:$0xff]
  %v449 = vld [vmem:[%s3 + $0xb8] sm:$0xff]
  %v450 = vld [vmem:[%s3 + $0xc0] sm:$0xff]
  %v451 = vld [vmem:[%s3 + $0xc8] sm:$0xff]
  %v452 = vld [vmem:[%s3 + $0xd0] sm:$0xff]
  %v453 = vld [vmem:[%s3 + $0xd8] sm:$0xff]
  %v454 = vld [vmem:[%s3 + $0xe0] sm:$0xff]
  %v455 = vld [vmem:[%s3 + $0xe8] sm:$0xff]
  %v456 = vld [vmem:[%s3 + $0xf0] sm:$0xff]
  %v457 = vld [vmem:[%s3 + $0xf8] sm:$0xff]
  %v458 = vld [vmem:[%s3 + $0x100] sm:$0xff]
  %v459 = vld [vmem:[%s3 + $0x108] sm:$0xff]
  %v460 = vld [vmem:[%s3 + $0x110] sm:$0xff]
  %v461 = vld [vmem:[%s3 + $0x118] sm:$0xff]
  %v462 = vld [vmem:[%s3 + $0x120] sm:$0xff]
  %v463 = vld [vmem:[%s3 + $0x128] sm:$0xff]
  %v464 = vld [vmem:[%s3 + $0x130] sm:$0xff]
  %v465 = vld [vmem:[%s3 + $0x138] sm:$0xff]
  %v466 = vld [vmem:[%s3 + $0x140] sm:$0xff]
  %v467 = vld [vmem:[%s3 + $0x148] sm:$0xff]
  %v468 = vld [vmem:[%s3 + $0x150] sm:$0xff]
  %v469 = vld [vmem:[%s3 + $0x158] sm:$0xff]
  %v470 = vld [vmem:[%s3 + $0x160] sm:$0xff]
  %v471 = vld [vmem:[%s3 + $0x168] sm:$0xff]
  %v472 = vld [vmem:[%s3 + $0x170] sm:$0xff]
  %v473 = vld [vmem:[%s3 + $0x178] sm:$0xff]
  %v474 = vld [vmem:[%s3 + $0x180] sm:$0xff]
  %v475 = vld [vmem:[%s3 + $0x188] sm:$0xff]
  %v476 = vld [vmem:[%s3 + $0x190] sm:$0xff]
  %v477 = vld [vmem:[%s3 + $0x198] sm:$0xff]
  %v478 = vpack.c.bf16 %v402, %v401
  %v479 = vpack.c.bf16 %v404, %v403
  %v480 = vpack.c.bf16 %v406, %v405
  %v481 = vpack.c.bf16 %v408, %v407
  %v482 = vpack.c.bf16 %v410, %v409
  %v483 = vpack.c.bf16 %v412, %v411
  %v484 = vpack.c.bf16 %v414, %v413
  %v485 = vpack.c.bf16 %v416, %v415
  %v486 = vpack.c.bf16 %v418, %v417
  %v487 = vpack.c.bf16 %v420, %v419
  %v488 = vpack.c.bf16 %v422, %v421
  %v489 = vpack.c.bf16 %v424, %v423
  %v490 = vpack.c.bf16 %v425, %v425
  %v543 = vunpack.c.l.b16 %v426
  %v544 = vunpack.c.h.b16 %v426
  %v545 = vunpack.c.l.b16 %v427
  %v546 = vunpack.c.h.b16 %v427
  %v547 = vunpack.c.l.b16 %v428
  %v548 = vunpack.c.h.b16 %v428
  %v549 = vunpack.c.l.b16 %v429
  %v550 = vunpack.c.h.b16 %v429
  %v551 = vunpack.c.l.b16 %v430
  %v552 = vunpack.c.h.b16 %v430
  %v553 = vunpack.c.l.b16 %v431
  %v554 = vunpack.c.h.b16 %v431
  %v555 = vunpack.c.l.b16 %v432
  %v556 = vunpack.c.h.b16 %v432
  %v557 = vunpack.c.l.b16 %v433
  %v558 = vunpack.c.h.b16 %v433
  %v559 = vunpack.c.l.b16 %v434
  %v560 = vunpack.c.h.b16 %v434
  %v561 = vunpack.c.l.b16 %v435
  %v562 = vunpack.c.h.b16 %v435
  %v563 = vunpack.c.l.b16 %v436
  %v564 = vunpack.c.h.b16 %v436
  %v565 = vunpack.c.l.b16 %v437
  %v566 = vunpack.c.h.b16 %v437
  %v567 = vunpack.c.l.b16 %v438
  %v568 = vunpack.c.h.b16 %v438
  %v569 = vunpack.c.l.b16 %v439
  %v570 = vunpack.c.h.b16 %v439
  %v571 = vunpack.c.l.b16 %v440
  %v572 = vunpack.c.h.b16 %v440
  %v573 = vunpack.c.l.b16 %v441
  %v574 = vunpack.c.h.b16 %v441
  %v575 = vunpack.c.l.b16 %v442
  %v576 = vunpack.c.h.b16 %v442
  %v577 = vunpack.c.l.b16 %v443
  %v578 = vunpack.c.h.b16 %v443
  %v579 = vunpack.c.l.b16 %v444
  %v580 = vunpack.c.h.b16 %v444
  %v581 = vunpack.c.l.b16 %v445
  %v582 = vunpack.c.h.b16 %v445
  %v583 = vunpack.c.l.b16 %v446
  %v584 = vunpack.c.h.b16 %v446
  %v585 = vunpack.c.l.b16 %v447
  %v586 = vunpack.c.h.b16 %v447
  %v587 = vunpack.c.l.b16 %v448
  %v588 = vunpack.c.h.b16 %v448
  %v589 = vunpack.c.l.b16 %v449
  %v590 = vunpack.c.h.b16 %v449
  %v591 = vunpack.c.l.b16 %v450
  %v592 = vunpack.c.h.b16 %v450
  %v593 = vunpack.c.l.b16 %v451
  %v594 = vunpack.c.h.b16 %v451
  %v595 = vunpack.c.l.b16 %v452
  %v596 = vunpack.c.h.b16 %v452
  %v597 = vunpack.c.l.b16 %v453
  %v598 = vunpack.c.h.b16 %v453
  %v599 = vunpack.c.l.b16 %v454
  %v600 = vunpack.c.h.b16 %v454
  %v601 = vunpack.c.l.b16 %v455
  %v602 = vunpack.c.h.b16 %v455
  %v603 = vunpack.c.l.b16 %v456
  %v604 = vunpack.c.h.b16 %v456
  %v605 = vunpack.c.l.b16 %v457
  %v606 = vunpack.c.h.b16 %v457
  %v607 = vunpack.c.l.b16 %v458
  %v608 = vunpack.c.h.b16 %v458
  %v609 = vunpack.c.l.b16 %v459
  %v610 = vunpack.c.h.b16 %v459
  %v611 = vunpack.c.l.b16 %v460
  %v612 = vunpack.c.h.b16 %v460
  %v613 = vunpack.c.l.b16 %v461
  %v614 = vunpack.c.h.b16 %v461
  %v615 = vunpack.c.l.b16 %v462
  %v616 = vunpack.c.h.b16 %v462
  %v617 = vunpack.c.l.b16 %v463
  %v618 = vunpack.c.h.b16 %v463
  %v619 = vunpack.c.l.b16 %v464
  %v620 = vunpack.c.h.b16 %v464
  %v621 = vunpack.c.l.b16 %v465
  %v622 = vunpack.c.h.b16 %v465
  %v623 = vunpack.c.l.b16 %v466
  %v624 = vunpack.c.h.b16 %v466
  %v625 = vunpack.c.l.b16 %v467
  %v626 = vunpack.c.h.b16 %v467
  %v627 = vunpack.c.l.b16 %v468
  %v628 = vunpack.c.h.b16 %v468
  %v629 = vunpack.c.l.b16 %v469
  %v630 = vunpack.c.h.b16 %v469
  %v631 = vunpack.c.l.b16 %v470
  %v632 = vunpack.c.h.b16 %v470
  %v633 = vunpack.c.l.b16 %v471
  %v634 = vunpack.c.h.b16 %v471
  %v635 = vunpack.c.l.b16 %v472
  %v636 = vunpack.c.h.b16 %v472
  %v637 = vunpack.c.l.b16 %v473
  %v638 = vunpack.c.h.b16 %v473
  %v639 = vunpack.c.l.b16 %v474
  %v640 = vunpack.c.h.b16 %v474
  %v641 = vunpack.c.l.b16 %v475
  %v642 = vunpack.c.h.b16 %v475
  %v643 = vunpack.c.l.b16 %v476
  %v644 = vunpack.c.h.b16 %v476
  %v645 = vunpack.c.l.b16 %v477
  %v646 = vunpack.c.h.b16 %v477
  %v647 = vpack.c.b16 %v545, %v543
  %v648 = vpack.c.b16 %v546, %v544
  %v649 = vpack.c.b16 %v549, %v547
  %v650 = vpack.c.b16 %v550, %v548
  %v651 = vpack.c.b16 %v553, %v551
  %v652 = vpack.c.b16 %v554, %v552
  %v653 = vpack.c.b16 %v557, %v555
  %v654 = vpack.c.b16 %v558, %v556
  %v655 = vpack.c.b16 %v561, %v559
  %v656 = vpack.c.b16 %v562, %v560
  %v657 = vpack.c.b16 %v565, %v563
  %v658 = vpack.c.b16 %v566, %v564
  %v659 = vpack.c.b16 %v569, %v567
  %v660 = vpack.c.b16 %v570, %v568
  %v661 = vpack.c.b16 %v573, %v571
  %v662 = vpack.c.b16 %v574, %v572
  %v663 = vpack.c.b16 %v577, %v575
  %v664 = vpack.c.b16 %v578, %v576
  %v665 = vpack.c.b16 %v581, %v579
  %v666 = vpack.c.b16 %v582, %v580
  %v667 = vpack.c.b16 %v585, %v583
  %v668 = vpack.c.b16 %v586, %v584
  %v669 = vpack.c.b16 %v589, %v587
  %v670 = vpack.c.b16 %v590, %v588
  %v671 = vpack.c.b16 %v593, %v591
  %v672 = vpack.c.b16 %v594, %v592
  %v673 = vpack.c.b16 %v597, %v595
  %v674 = vpack.c.b16 %v598, %v596
  %v675 = vpack.c.b16 %v601, %v599
  %v676 = vpack.c.b16 %v602, %v600
  %v677 = vpack.c.b16 %v605, %v603
  %v678 = vpack.c.b16 %v606, %v604
  %v679 = vpack.c.b16 %v609, %v607
  %v680 = vpack.c.b16 %v610, %v608
  %v681 = vpack.c.b16 %v613, %v611
  %v682 = vpack.c.b16 %v614, %v612
  %v683 = vpack.c.b16 %v617, %v615
  %v684 = vpack.c.b16 %v618, %v616
  %v685 = vpack.c.b16 %v621, %v619
  %v686 = vpack.c.b16 %v622, %v620
  %v687 = vpack.c.b16 %v625, %v623
  %v688 = vpack.c.b16 %v626, %v624
  %v689 = vpack.c.b16 %v629, %v627
  %v690 = vpack.c.b16 %v630, %v628
  %v691 = vpack.c.b16 %v633, %v631
  %v692 = vpack.c.b16 %v634, %v632
  %v693 = vpack.c.b16 %v637, %v635
  %v694 = vpack.c.b16 %v638, %v636
  %v695 = vpack.c.b16 %v641, %v639
  %v696 = vpack.c.b16 %v642, %v640
  %v697 = vpack.c.b16 %v645, %v643
  %v698 = vpack.c.b16 %v646, %v644
  %vm725 = vcmask 588800
  %v727 = vsel %vm725, %v648, 0
  %v730 = vsel %vm725, %v650, 0
  %v733 = vsel %vm725, %v652, 0
  %v736 = vsel %vm725, %v654, 0
  %v739 = vsel %vm725, %v656, 0
  %v742 = vsel %vm725, %v658, 0
  %v745 = vsel %vm725, %v660, 0
  %v748 = vsel %vm725, %v662, 0
  %v751 = vsel %vm725, %v664, 0
  %v754 = vsel %vm725, %v666, 0
  %v757 = vsel %vm725, %v668, 0
  %v760 = vsel %vm725, %v670, 0
  %v763 = vsel %vm725, %v672, 0
  %v766 = vsel %vm725, %v674, 0
  %v769 = vsel %vm725, %v676, 0
  %v772 = vsel %vm725, %v678, 0
  %v775 = vsel %vm725, %v680, 0
  %v778 = vsel %vm725, %v682, 0
  %v781 = vsel %vm725, %v684, 0
  %v784 = vsel %vm725, %v686, 0
  %v787 = vsel %vm725, %v688, 0
  %v790 = vsel %vm725, %v690, 0
  %v793 = vsel %vm725, %v692, 0
  %v796 = vsel %vm725, %v694, 0
  %v799 = vsel %vm725, %v696, 0
  %v802 = vsel %vm725, %v698, 0
  %vm804 = vcmask 1043456
  %v806 = vsel %vm804, %v490, 0
  %808 = vmatprep.subr.bf16.mxu0 0
  %809 = vmatpush1.bf16.msra.mxu0 %v485
  %810 = vmatprep.subr.bf16.mxu0 0
  %811 = vmatpush1.bf16.msra.mxu0 %v484
  %812 = vmatprep.subr.bf16.mxu0 0
  %813 = vmatpush1.bf16.msra.mxu0 %v483
  %814 = vmatprep.subr.bf16.mxu0 0
  %815 = vmatpush1.bf16.msra.mxu0 %v482
  %816 = vmatprep.subr.bf16.mxu0 0
  %817 = vmatpush1.bf16.msra.mxu0 %v481
  %818 = vmatprep.subr.bf16.mxu0 0
  %819 = vmatpush1.bf16.msra.mxu0 %v480
  %820 = vmatprep.subr.bf16.mxu0 0
  %821 = vmatpush1.bf16.msra.mxu0 %v479
  %822 = vmatprep.subr.bf16.mxu0 0
  %823 = vmatpush1.bf16.msra.mxu0 %v478
  %824 = vmatprep.subr.bf16.mxu0 0
  %825 = vmatpush2.bf16.msra.mxu0 0
  %826 = vmatprep.subr.bf16.mxu0 0
  %827 = vmatpush2.bf16.msra.mxu0 0
  %828 = vmatprep.subr.bf16.mxu0 0
  %829 = vmatpush2.bf16.msra.mxu0 0
  %830 = vmatprep.subr.bf16.mxu0 0
  %831 = vmatpush2.bf16.msra.mxu0 %v806
  %832 = vmatprep.subr.bf16.mxu0 0
  %833 = vmatpush2.bf16.msra.mxu0 %v489
  %834 = vmatprep.subr.bf16.mxu0 0
  %835 = vmatpush2.bf16.msra.mxu0 %v488
  %836 = vmatprep.subr.bf16.mxu0 0
  %837 = vmatpush2.bf16.msra.mxu0 %v487
  %838 = vmatprep.subr.bf16.mxu0 0
  %839 = vmatpush2.bf16.msra.mxu0 %v486
  %840 = vmatprep.mubr.bf16.mxu0 %v727
  %841 = vmatmul.mubr.bf16.gmra.mxu0 %v647
  %v842 = vpop.f32.mrf.mxu0
  %v843 = vadd.f32 0.0, %v842
  %v844 = vpop.f32.mrf.mxu0
  %v845 = vpop.f32.mrf.mxu0
  %v846 = vadd.f32 0.0, %v845
  %v847 = vpop.f32.mrf.mxu0
  %848 = vmatprep.mubr.bf16.mxu0 %v730
  %849 = vmatmul.mubr.bf16.gmra.mxu0 %v649
  %v850 = vpop.f32.mrf.mxu0
  %v851 = vadd.f32 0.0, %v850
  %v852 = vpop.f32.mrf.mxu0
  %v853 = vpop.f32.mrf.mxu0
  %v854 = vadd.f32 0.0, %v853
  %v855 = vpop.f32.mrf.mxu0
  %856 = vmatprep.mubr.bf16.mxu0 %v733
  %857 = vmatmul.mubr.bf16.gmra.mxu0 %v651
  %v858 = vpop.f32.mrf.mxu0
  %v859 = vadd.f32 0.0, %v858
  %v860 = vpop.f32.mrf.mxu0
  %v861 = vpop.f32.mrf.mxu0
  %v862 = vadd.f32 0.0, %v861
  %v863 = vpop.f32.mrf.mxu0
  %864 = vmatprep.mubr.bf16.mxu0 %v736
  %865 = vmatmul.mubr.bf16.gmra.mxu0 %v653
  %v866 = vpop.f32.mrf.mxu0
  %v867 = vadd.f32 0.0, %v866
  %v868 = vpop.f32.mrf.mxu0
  %v869 = vpop.f32.mrf.mxu0
  %v870 = vadd.f32 0.0, %v869
  %v871 = vpop.f32.mrf.mxu0
  %872 = vmatprep.mubr.bf16.mxu0 %v739
  %873 = vmatmul.mubr.bf16.gmra.mxu0 %v655
  %v874 = vpop.f32.mrf.mxu0
  %v875 = vadd.f32 0.0, %v874
  %v876 = vpop.f32.mrf.mxu0
  %v877 = vpop.f32.mrf.mxu0
  %v878 = vadd.f32 0.0, %v877
  %v879 = vpop.f32.mrf.mxu0
  %880 = vmatprep.mubr.bf16.mxu0 %v742
  %881 = vmatmul.mubr.bf16.gmra.mxu0 %v657
  %v882 = vpop.f32.mrf.mxu0
  %v883 = vadd.f32 0.0, %v882
  %v884 = vpop.f32.mrf.mxu0
  %v885 = vpop.f32.mrf.mxu0
  %v886 = vadd.f32 0.0, %v885
  %v887 = vpop.f32.mrf.mxu0
  %888 = vmatprep.mubr.bf16.mxu0 %v745
  %889 = vmatmul.mubr.bf16.gmra.mxu0 %v659
  %v890 = vpop.f32.mrf.mxu0
  %v891 = vadd.f32 0.0, %v890
  %v892 = vpop.f32.mrf.mxu0
  %v893 = vpop.f32.mrf.mxu0
  %v894 = vadd.f32 0.0, %v893
  %v895 = vpop.f32.mrf.mxu0
  %896 = vmatprep.mubr.bf16.mxu0 %v748
  %897 = vmatmul.mubr.bf16.gmra.mxu0 %v661
  %v898 = vpop.f32.mrf.mxu0
  %v899 = vadd.f32 0.0, %v898
  %v900 = vpop.f32.mrf.mxu0
  %v901 = vpop.f32.mrf.mxu0
  %v902 = vadd.f32 0.0, %v901
  %v903 = vpop.f32.mrf.mxu0
  %904 = vmatprep.mubr.bf16.mxu0 %v751
  %905 = vmatmul.mubr.bf16.gmra.mxu0 %v663
  %v906 = vpop.f32.mrf.mxu0
  %v907 = vadd.f32 0.0, %v906
  %v908 = vpop.f32.mrf.mxu0
  %v909 = vpop.f32.mrf.mxu0
  %v910 = vadd.f32 0.0, %v909
  %v911 = vpop.f32.mrf.mxu0
  %912 = vmatprep.mubr.bf16.mxu0 %v754
  %913 = vmatmul.mubr.bf16.gmra.mxu0 %v665
  %v914 = vpop.f32.mrf.mxu0
  %v915 = vadd.f32 0.0, %v914
  %v916 = vpop.f32.mrf.mxu0
  %v917 = vpop.f32.mrf.mxu0
  %v918 = vadd.f32 0.0, %v917
  %v919 = vpop.f32.mrf.mxu0
  %920 = vmatprep.mubr.bf16.mxu0 %v757
  %921 = vmatmul.mubr.bf16.gmra.mxu0 %v667
  %v922 = vpop.f32.mrf.mxu0
  %v923 = vadd.f32 0.0, %v922
  %v924 = vpop.f32.mrf.mxu0
  %v925 = vpop.f32.mrf.mxu0
  %v926 = vadd.f32 0.0, %v925
  %v927 = vpop.f32.mrf.mxu0
  %928 = vmatprep.mubr.bf16.mxu0 %v760
  %929 = vmatmul.mubr.bf16.gmra.mxu0 %v669
  %v930 = vpop.f32.mrf.mxu0
  %v931 = vadd.f32 0.0, %v930
  %v932 = vpop.f32.mrf.mxu0
  %v933 = vpop.f32.mrf.mxu0
  %v934 = vadd.f32 0.0, %v933
  %v935 = vpop.f32.mrf.mxu0
  %936 = vmatprep.mubr.bf16.mxu0 %v763
  %937 = vmatmul.mubr.bf16.gmra.mxu0 %v671
  %v938 = vpop.f32.mrf.mxu0
  %v939 = vadd.f32 0.0, %v938
  %v940 = vpop.f32.mrf.mxu0
  %v941 = vpop.f32.mrf.mxu0
  %v942 = vadd.f32 0.0, %v941
  %v943 = vpop.f32.mrf.mxu0
  %944 = vmatprep.mubr.bf16.mxu0 %v766
  %945 = vmatmul.mubr.bf16.gmra.mxu0 %v673
  %v946 = vpop.f32.mrf.mxu0
  %v947 = vadd.f32 0.0, %v946
  %v948 = vpop.f32.mrf.mxu0
  %v949 = vpop.f32.mrf.mxu0
  %v950 = vadd.f32 0.0, %v949
  %v951 = vpop.f32.mrf.mxu0
  %952 = vmatprep.mubr.bf16.mxu0 %v769
  %953 = vmatmul.mubr.bf16.gmra.mxu0 %v675
  %v954 = vpop.f32.mrf.mxu0
  %v955 = vadd.f32 0.0, %v954
  %v956 = vpop.f32.mrf.mxu0
  %v957 = vpop.f32.mrf.mxu0
  %v958 = vadd.f32 0.0, %v957
  %v959 = vpop.f32.mrf.mxu0
  %960 = vmatprep.mubr.bf16.mxu0 %v772
  %961 = vmatmul.mubr.bf16.gmra.mxu0 %v677
  %v962 = vpop.f32.mrf.mxu0
  %v963 = vadd.f32 0.0, %v962
  %v964 = vpop.f32.mrf.mxu0
  %v965 = vpop.f32.mrf.mxu0
  %v966 = vadd.f32 0.0, %v965
  %v967 = vpop.f32.mrf.mxu0
  %968 = vmatprep.mubr.bf16.mxu0 %v775
  %969 = vmatmul.mubr.bf16.gmra.mxu0 %v679
  %v970 = vpop.f32.mrf.mxu0
  %v971 = vadd.f32 0.0, %v970
  %v972 = vpop.f32.mrf.mxu0
  %v973 = vpop.f32.mrf.mxu0
  %v974 = vadd.f32 0.0, %v973
  %v975 = vpop.f32.mrf.mxu0
  %976 = vmatprep.mubr.bf16.mxu0 %v778
  %977 = vmatmul.mubr.bf16.gmra.mxu0 %v681
  %v978 = vpop.f32.mrf.mxu0
  %v979 = vadd.f32 0.0, %v978
  %v980 = vpop.f32.mrf.mxu0
  %v981 = vpop.f32.mrf.mxu0
  %v982 = vadd.f32 0.0, %v981
  %v983 = vpop.f32.mrf.mxu0
  %984 = vmatprep.mubr.bf16.mxu0 %v781
  %985 = vmatmul.mubr.bf16.gmra.mxu0 %v683
  %v986 = vpop.f32.mrf.mxu0
  %v987 = vadd.f32 0.0, %v986
  %v988 = vpop.f32.mrf.mxu0
  %v989 = vpop.f32.mrf.mxu0
  %v990 = vadd.f32 0.0, %v989
  %v991 = vpop.f32.mrf.mxu0
  %992 = vmatprep.mubr.bf16.mxu0 %v784
  %993 = vmatmul.mubr.bf16.gmra.mxu0 %v685
  %v994 = vpop.f32.mrf.mxu0
  %v995 = vadd.f32 0.0, %v994
  %v996 = vpop.f32.mrf.mxu0
  %v997 = vpop.f32.mrf.mxu0
  %v998 = vadd.f32 0.0, %v997
  %v999 = vpop.f32.mrf.mxu0
  %1000 = vmatprep.mubr.bf16.mxu0 %v787
  %1001 = vmatmul.mubr.bf16.gmra.mxu0 %v687
  %v1002 = vpop.f32.mrf.mxu0
  %v1003 = vadd.f32 0.0, %v1002
  %v1004 = vpop.f32.mrf.mxu0
  %v1005 = vpop.f32.mrf.mxu0
  %v1006 = vadd.f32 0.0, %v1005
  %v1007 = vpop.f32.mrf.mxu0
  %1008 = vmatprep.mubr.bf16.mxu0 %v790
  %1009 = vmatmul.mubr.bf16.gmra.mxu0 %v689
  %v1010 = vpop.f32.mrf.mxu0
  %v1011 = vadd.f32 0.0, %v1010
  %v1012 = vpop.f32.mrf.mxu0
  %v1013 = vpop.f32.mrf.mxu0
  %v1014 = vadd.f32 0.0, %v1013
  %v1015 = vpop.f32.mrf.mxu0
  %1016 = vmatprep.mubr.bf16.mxu0 %v793
  %1017 = vmatmul.mubr.bf16.gmra.mxu0 %v691
  %v1018 = vpop.f32.mrf.mxu0
  %v1019 = vadd.f32 0.0, %v1018
  %v1020 = vpop.f32.mrf.mxu0
  %v1021 = vpop.f32.mrf.mxu0
  %v1022 = vadd.f32 0.0, %v1021
  %v1023 = vpop.f32.mrf.mxu0
  %1024 = vmatprep.mubr.bf16.mxu0 %v796
  %1025 = vmatmul.mubr.bf16.gmra.mxu0 %v693
  %v1026 = vpop.f32.mrf.mxu0
  %v1027 = vadd.f32 0.0, %v1026
  %v1028 = vpop.f32.mrf.mxu0
  %v1029 = vpop.f32.mrf.mxu0
  %v1030 = vadd.f32 0.0, %v1029
  %v1031 = vpop.f32.mrf.mxu0
  %1032 = vmatprep.mubr.bf16.mxu0 %v799
  %1033 = vmatmul.mubr.bf16.gmra.mxu0 %v695
  %v1034 = vpop.f32.mrf.mxu0
  %v1035 = vadd.f32 0.0, %v1034
  %v1036 = vpop.f32.mrf.mxu0
  %v1037 = vpop.f32.mrf.mxu0
  %v1038 = vadd.f32 0.0, %v1037
  %v1039 = vpop.f32.mrf.mxu0
  %1040 = vmatprep.mubr.bf16.mxu0 %v802
  %1041 = vmatmul.mubr.bf16.gmra.mxu0 %v697
  %v1042 = vpop.f32.mrf.mxu0
  %v1043 = vadd.f32 0.0, %v1042
  %v1044 = vpop.f32.mrf.mxu0
  %v1045 = vpop.f32.mrf.mxu0
  %v1046 = vadd.f32 0.0, %v1045
  %v1047 = vpop.f32.mrf.mxu0
  %1048 = vdwg.mxu0
  %v1049 = vld [vmem:[%s4] sm:$0xff]
  %v1050 = vld [vmem:[%s4 + $0x8] sm:$0xff]
  %v1051 = vld [vmem:[%s4 + $0x10] sm:$0xff]
  %v1052 = vld [vmem:[%s4 + $0x18] sm:$0xff]
  %v1053 = vld [vmem:[%s4 + $0x20] sm:$0xff]
  %v1054 = vld [vmem:[%s4 + $0x28] sm:$0xff]
  %v1055 = vld [vmem:[%s4 + $0x30] sm:$0xff]
  %v1056 = vld [vmem:[%s4 + $0x38] sm:$0xff]
  %vm1057 = vcmask 523264
  %v1059 = vsel %vm1057, %v843, 0
  %v1062 = vsel %vm1057, %v846, 0
  %v1065 = vsel %vm1057, %v851, 0
  %v1068 = vsel %vm1057, %v854, 0
  %v1071 = vsel %vm1057, %v859, 0
  %v1074 = vsel %vm1057, %v862, 0
  %v1077 = vsel %vm1057, %v867, 0
  %v1080 = vsel %vm1057, %v870, 0
  %v1083 = vsel %vm1057, %v875, 0
  %v1086 = vsel %vm1057, %v878, 0
  %v1089 = vsel %vm1057, %v883, 0
  %v1092 = vsel %vm1057, %v886, 0
  %v1095 = vsel %vm1057, %v891, 0
  %v1098 = vsel %vm1057, %v894, 0
  %v1101 = vsel %vm1057, %v899, 0
  %v1104 = vsel %vm1057, %v902, 0
  %v1107 = vsel %vm1057, %v907, 0
  %v1110 = vsel %vm1057, %v910, 0
  %v1113 = vsel %vm1057, %v915, 0
  %v1116 = vsel %vm1057, %v918, 0
  %v1119 = vsel %vm1057, %v923, 0
  %v1122 = vsel %vm1057, %v926, 0
  %v1125 = vsel %vm1057, %v931, 0
  %v1128 = vsel %vm1057, %v934, 0
  %v1131 = vsel %vm1057, %v939, 0
  %v1134 = vsel %vm1057, %v942, 0
  %v1137 = vsel %vm1057, %v947, 0
  %v1140 = vsel %vm1057, %v950, 0
  %v1143 = vsel %vm1057, %v955, 0
  %v1146 = vsel %vm1057, %v958, 0
  %v1149 = vsel %vm1057, %v963, 0
  %v1152 = vsel %vm1057, %v966, 0
  %v1155 = vsel %vm1057, %v971, 0
  %v1158 = vsel %vm1057, %v974, 0
  %v1161 = vsel %vm1057, %v979, 0
  %v1164 = vsel %vm1057, %v982, 0
  %v1167 = vsel %vm1057, %v987, 0
  %v1170 = vsel %vm1057, %v990, 0
  %v1173 = vsel %vm1057, %v995, 0
  %v1176 = vsel %vm1057, %v998, 0
  %v1179 = vsel %vm1057, %v1003, 0
  %v1182 = vsel %vm1057, %v1006, 0
  %v1185 = vsel %vm1057, %v1011, 0
  %v1188 = vsel %vm1057, %v1014, 0
  %v1191 = vsel %vm1057, %v1019, 0
  %v1194 = vsel %vm1057, %v1022, 0
  %v1197 = vsel %vm1057, %v1027, 0
  %v1200 = vsel %vm1057, %v1030, 0
  %v1203 = vsel %vm1057, %v1035, 0
  %v1206 = vsel %vm1057, %v1038, 0
  %v1209 = vsel %vm1057, %v1043, 0
  %v1212 = vsel %vm1057, %v1046, 0
  %1214 = vmatprep.subr.mxu0 0.0
  %1215 = vmatpush1.msra.mxu0 0.0
  %1216 = vmatprep.subr.mxu0 0.0
  %1217 = vmatpush1.msra.mxu0 0.0
  %1218 = vmatprep.subr.mxu0 0.0
  %1219 = vmatpush1.msra.mxu0 0.0
  %1220 = vmatprep.subr.mxu0 0.0
  %1221 = vmatpush1.msra.mxu0 0.0
  %1222 = vmatprep.subr.mxu0 0.0
  %1223 = vmatpush1.msra.mxu0 0.0
  %1224 = vmatprep.subr.mxu0 0.0
  %1225 = vmatpush1.msra.mxu0 0.0
  %1226 = vmatprep.subr.mxu0 0.0
  %1227 = vmatpush1.msra.mxu0 0.0
  %1228 = vmatprep.subr.mxu0 0.0
  %1229 = vmatpush1.msra.mxu0 0.0
  %1230 = vmatprep.subr.mxu0 0.0
  %1231 = vmatpush1.msra.mxu0 %v1056
  %1232 = vmatprep.subr.mxu0 0.0
  %1233 = vmatpush1.msra.mxu0 %v1055
  %1234 = vmatprep.subr.mxu0 0.0
  %1235 = vmatpush1.msra.mxu0 %v1054
  %1236 = vmatprep.subr.mxu0 0.0
  %1237 = vmatpush1.msra.mxu0 %v1053
  %1238 = vmatprep.subr.mxu0 0.0
  %1239 = vmatpush1.msra.mxu0 %v1052
  %1240 = vmatprep.subr.mxu0 0.0
  %1241 = vmatpush1.msra.mxu0 %v1051
  %1242 = vmatprep.subr.mxu0 0.0
  %1243 = vmatpush1.msra.mxu0 %v1050
  %1244 = vmatprep.subr.mxu0 0.0
  %1245 = vmatpush1.msra.mxu0 %v1049
  %1246 = vmatprep.subr.mxu0 0.0
  %1247 = vmatpush2.msra.mxu0 0.0
  %1248 = vmatprep.subr.mxu0 0.0
  %1249 = vmatpush2.msra.mxu0 0.0
  %1250 = vmatprep.subr.mxu0 0.0
  %1251 = vmatpush2.msra.mxu0 0.0
  %1252 = vmatprep.subr.mxu0 0.0
  %1253 = vmatpush2.msra.mxu0 0.0
  %1254 = vmatprep.subr.mxu0 0.0
  %1255 = vmatpush2.msra.mxu0 0.0
  %1256 = vmatprep.subr.mxu0 0.0
  %1257 = vmatpush2.msra.mxu0 0.0
  %1258 = vmatprep.subr.mxu0 0.0
  %1259 = vmatpush2.msra.mxu0 0.0
  %1260 = vmatprep.subr.mxu0 0.0
  %1261 = vmatpush2.msra.mxu0 0.0
  %1262 = vmatprep.subr.mxu0 0.0
  %1263 = vmatpush2.msra.mxu0 0.0
  %1264 = vmatprep.subr.mxu0 0.0
  %1265 = vmatpush2.msra.mxu0 0.0
  %1266 = vmatprep.subr.mxu0 0.0
  %1267 = vmatpush2.msra.mxu0 0.0
  %1268 = vmatprep.subr.mxu0 0.0
  %1269 = vmatpush2.msra.mxu0 0.0
  %1270 = vmatprep.subr.mxu0 0.0
  %1271 = vmatpush2.msra.mxu0 0.0
  %1272 = vmatprep.subr.mxu0 0.0
  %1273 = vmatpush2.msra.mxu0 0.0
  %1274 = vmatprep.subr.mxu0 0.0
  %1275 = vmatpush2.msra.mxu0 0.0
  %1276 = vmatprep.subr.mxu0 0.0
  %1277 = vmatpush2.msra.mxu0 0.0
  %1278 = vmatprep.mubr.f32.mxu0 0.0
  %1279 = vmatmul.mubr.f32.gmra.mxu0 %v1059
  %v1280 = vpop.f32.mrf.mxu0
  %v1281 = vadd.f32 0.0, %v1280
  %v1282 = vpop.f32.mrf.mxu0
  %1283 = vmatprep.mubr.f32.mxu0 0.0
  %1284 = vmatmul.mubr.f32.gmra.mxu0 %v1062
  %v1285 = vpop.f32.mrf.mxu0
  %v1286 = vadd.f32 0.0, %v1285
  %v1287 = vpop.f32.mrf.mxu0
  %1288 = vmatprep.mubr.f32.mxu0 0.0
  %1289 = vmatmul.mubr.f32.gmra.mxu0 %v1065
  %v1290 = vpop.f32.mrf.mxu0
  %v1291 = vadd.f32 0.0, %v1290
  %v1292 = vpop.f32.mrf.mxu0
  %1293 = vmatprep.mubr.f32.mxu0 0.0
  %1294 = vmatmul.mubr.f32.gmra.mxu0 %v1068
  %v1295 = vpop.f32.mrf.mxu0
  %v1296 = vadd.f32 0.0, %v1295
  %v1297 = vpop.f32.mrf.mxu0
  %1298 = vmatprep.mubr.f32.mxu0 0.0
  %1299 = vmatmul.mubr.f32.gmra.mxu0 %v1071
  %v1300 = vpop.f32.mrf.mxu0
  %v1301 = vadd.f32 0.0, %v1300
  %v1302 = vpop.f32.mrf.mxu0
  %1303 = vmatprep.mubr.f32.mxu0 0.0
  %1304 = vmatmul.mubr.f32.gmra.mxu0 %v1074
  %v1305 = vpop.f32.mrf.mxu0
  %v1306 = vadd.f32 0.0, %v1305
  %v1307 = vpop.f32.mrf.mxu0
  %1308 = vmatprep.mubr.f32.mxu0 0.0
  %1309 = vmatmul.mubr.f32.gmra.mxu0 %v1077
  %v1310 = vpop.f32.mrf.mxu0
  %v1311 = vadd.f32 0.0, %v1310
  %v1312 = vpop.f32.mrf.mxu0
  %1313 = vmatprep.mubr.f32.mxu0 0.0
  %1314 = vmatmul.mubr.f32.gmra.mxu0 %v1080
  %v1315 = vpop.f32.mrf.mxu0
  %v1316 = vadd.f32 0.0, %v1315
  %v1317 = vpop.f32.mrf.mxu0
  %1318 = vmatprep.mubr.f32.mxu0 0.0
  %1319 = vmatmul.mubr.f32.gmra.mxu0 %v1083
  %v1320 = vpop.f32.mrf.mxu0
  %v1321 = vadd.f32 0.0, %v1320
  %v1322 = vpop.f32.mrf.mxu0
  %1323 = vmatprep.mubr.f32.mxu0 0.0
  %1324 = vmatmul.mubr.f32.gmra.mxu0 %v1086
  %v1325 = vpop.f32.mrf.mxu0
  %v1326 = vadd.f32 0.0, %v1325
  %v1327 = vpop.f32.mrf.mxu0
  %1328 = vmatprep.mubr.f32.mxu0 0.0
  %1329 = vmatmul.mubr.f32.gmra.mxu0 %v1089
  %v1330 = vpop.f32.mrf.mxu0
  %v1331 = vadd.f32 0.0, %v1330
  %v1332 = vpop.f32.mrf.mxu0
  %1333 = vmatprep.mubr.f32.mxu0 0.0
  %1334 = vmatmul.mubr.f32.gmra.mxu0 %v1092
  %v1335 = vpop.f32.mrf.mxu0
  %v1336 = vadd.f32 0.0, %v1335
  %v1337 = vpop.f32.mrf.mxu0
  %1338 = vmatprep.mubr.f32.mxu0 0.0
  %1339 = vmatmul.mubr.f32.gmra.mxu0 %v1095
  %v1340 = vpop.f32.mrf.mxu0
  %v1341 = vadd.f32 0.0, %v1340
  %v1342 = vpop.f32.mrf.mxu0
  %1343 = vmatprep.mubr.f32.mxu0 0.0
  %1344 = vmatmul.mubr.f32.gmra.mxu0 %v1098
  %v1345 = vpop.f32.mrf.mxu0
  %v1346 = vadd.f32 0.0, %v1345
  %v1347 = vpop.f32.mrf.mxu0
  %1348 = vmatprep.mubr.f32.mxu0 0.0
  %1349 = vmatmul.mubr.f32.gmra.mxu0 %v1101
  %v1350 = vpop.f32.mrf.mxu0
  %v1351 = vadd.f32 0.0, %v1350
  %v1352 = vpop.f32.mrf.mxu0
  %1353 = vmatprep.mubr.f32.mxu0 0.0
  %1354 = vmatmul.mubr.f32.gmra.mxu0 %v1104
  %v1355 = vpop.f32.mrf.mxu0
  %v1356 = vadd.f32 0.0, %v1355
  %v1357 = vpop.f32.mrf.mxu0
  %1358 = vmatprep.mubr.f32.mxu0 0.0
  %1359 = vmatmul.mubr.f32.gmra.mxu0 %v1107
  %v1360 = vpop.f32.mrf.mxu0
  %v1361 = vadd.f32 0.0, %v1360
  %v1362 = vpop.f32.mrf.mxu0
  %1363 = vmatprep.mubr.f32.mxu0 0.0
  %1364 = vmatmul.mubr.f32.gmra.mxu0 %v1110
  %v1365 = vpop.f32.mrf.mxu0
  %v1366 = vadd.f32 0.0, %v1365
  %v1367 = vpop.f32.mrf.mxu0
  %1368 = vmatprep.mubr.f32.mxu0 0.0
  %1369 = vmatmul.mubr.f32.gmra.mxu0 %v1113
  %v1370 = vpop.f32.mrf.mxu0
  %v1371 = vadd.f32 0.0, %v1370
  %v1372 = vpop.f32.mrf.mxu0
  %1373 = vmatprep.mubr.f32.mxu0 0.0
  %1374 = vmatmul.mubr.f32.gmra.mxu0 %v1116
  %v1375 = vpop.f32.mrf.mxu0
  %v1376 = vadd.f32 0.0, %v1375
  %v1377 = vpop.f32.mrf.mxu0
  %1378 = vmatprep.mubr.f32.mxu0 0.0
  %1379 = vmatmul.mubr.f32.gmra.mxu0 %v1119
  %v1380 = vpop.f32.mrf.mxu0
  %v1381 = vadd.f32 0.0, %v1380
  %v1382 = vpop.f32.mrf.mxu0
  %1383 = vmatprep.mubr.f32.mxu0 0.0
  %1384 = vmatmul.mubr.f32.gmra.mxu0 %v1122
  %v1385 = vpop.f32.mrf.mxu0
  %v1386 = vadd.f32 0.0, %v1385
  %v1387 = vpop.f32.mrf.mxu0
  %1388 = vmatprep.mubr.f32.mxu0 0.0
  %1389 = vmatmul.mubr.f32.gmra.mxu0 %v1125
  %v1390 = vpop.f32.mrf.mxu0
  %v1391 = vadd.f32 0.0, %v1390
  %v1392 = vpop.f32.mrf.mxu0
  %1393 = vmatprep.mubr.f32.mxu0 0.0
  %1394 = vmatmul.mubr.f32.gmra.mxu0 %v1128
  %v1395 = vpop.f32.mrf.mxu0
  %v1396 = vadd.f32 0.0, %v1395
  %v1397 = vpop.f32.mrf.mxu0
  %1398 = vmatprep.mubr.f32.mxu0 0.0
  %1399 = vmatmul.mubr.f32.gmra.mxu0 %v1131
  %v1400 = vpop.f32.mrf.mxu0
  %v1401 = vadd.f32 0.0, %v1400
  %v1402 = vpop.f32.mrf.mxu0
  %1403 = vmatprep.mubr.f32.mxu0 0.0
  %1404 = vmatmul.mubr.f32.gmra.mxu0 %v1134
  %v1405 = vpop.f32.mrf.mxu0
  %v1406 = vadd.f32 0.0, %v1405
  %v1407 = vpop.f32.mrf.mxu0
  %1408 = vmatprep.mubr.f32.mxu0 0.0
  %1409 = vmatmul.mubr.f32.gmra.mxu0 %v1137
  %v1410 = vpop.f32.mrf.mxu0
  %v1411 = vadd.f32 0.0, %v1410
  %v1412 = vpop.f32.mrf.mxu0
  %1413 = vmatprep.mubr.f32.mxu0 0.0
  %1414 = vmatmul.mubr.f32.gmra.mxu0 %v1140
  %v1415 = vpop.f32.mrf.mxu0
  %v1416 = vadd.f32 0.0, %v1415
  %v1417 = vpop.f32.mrf.mxu0
  %1418 = vmatprep.mubr.f32.mxu0 0.0
  %1419 = vmatmul.mubr.f32.gmra.mxu0 %v1143
  %v1420 = vpop.f32.mrf.mxu0
  %v1421 = vadd.f32 0.0, %v1420
  %v1422 = vpop.f32.mrf.mxu0
  %1423 = vmatprep.mubr.f32.mxu0 0.0
  %1424 = vmatmul.mubr.f32.gmra.mxu0 %v1146
  %v1425 = vpop.f32.mrf.mxu0
  %v1426 = vadd.f32 0.0, %v1425
  %v1427 = vpop.f32.mrf.mxu0
  %1428 = vmatprep.mubr.f32.mxu0 0.0
  %1429 = vmatmul.mubr.f32.gmra.mxu0 %v1149
  %v1430 = vpop.f32.mrf.mxu0
  %v1431 = vadd.f32 0.0, %v1430
  %v1432 = vpop.f32.mrf.mxu0
  %1433 = vmatprep.mubr.f32.mxu0 0.0
  %1434 = vmatmul.mubr.f32.gmra.mxu0 %v1152
  %v1435 = vpop.f32.mrf.mxu0
  %v1436 = vadd.f32 0.0, %v1435
  %v1437 = vpop.f32.mrf.mxu0
  %1438 = vmatprep.mubr.f32.mxu0 0.0
  %1439 = vmatmul.mubr.f32.gmra.mxu0 %v1155
  %v1440 = vpop.f32.mrf.mxu0
  %v1441 = vadd.f32 0.0, %v1440
  %v1442 = vpop.f32.mrf.mxu0
  %1443 = vmatprep.mubr.f32.mxu0 0.0
  %1444 = vmatmul.mubr.f32.gmra.mxu0 %v1158
  %v1445 = vpop.f32.mrf.mxu0
  %v1446 = vadd.f32 0.0, %v1445
  %v1447 = vpop.f32.mrf.mxu0
  %1448 = vmatprep.mubr.f32.mxu0 0.0
  %1449 = vmatmul.mubr.f32.gmra.mxu0 %v1161
  %v1450 = vpop.f32.mrf.mxu0
  %v1451 = vadd.f32 0.0, %v1450
  %v1452 = vpop.f32.mrf.mxu0
  %1453 = vmatprep.mubr.f32.mxu0 0.0
  %1454 = vmatmul.mubr.f32.gmra.mxu0 %v1164
  %v1455 = vpop.f32.mrf.mxu0
  %v1456 = vadd.f32 0.0, %v1455
  %v1457 = vpop.f32.mrf.mxu0
  %1458 = vmatprep.mubr.f32.mxu0 0.0
  %1459 = vmatmul.mubr.f32.gmra.mxu0 %v1167
  %v1460 = vpop.f32.mrf.mxu0
  %v1461 = vadd.f32 0.0, %v1460
  %v1462 = vpop.f32.mrf.mxu0
  %1463 = vmatprep.mubr.f32.mxu0 0.0
  %1464 = vmatmul.mubr.f32.gmra.mxu0 %v1170
  %v1465 = vpop.f32.mrf.mxu0
  %v1466 = vadd.f32 0.0, %v1465
  %v1467 = vpop.f32.mrf.mxu0
  %1468 = vmatprep.mubr.f32.mxu0 0.0
  %1469 = vmatmul.mubr.f32.gmra.mxu0 %v1173
  %v1470 = vpop.f32.mrf.mxu0
  %v1471 = vadd.f32 0.0, %v1470
  %v1472 = vpop.f32.mrf.mxu0
  %1473 = vmatprep.mubr.f32.mxu0 0.0
  %1474 = vmatmul.mubr.f32.gmra.mxu0 %v1176
  %v1475 = vpop.f32.mrf.mxu0
  %v1476 = vadd.f32 0.0, %v1475
  %v1477 = vpop.f32.mrf.mxu0
  %1478 = vmatprep.mubr.f32.mxu0 0.0
  %1479 = vmatmul.mubr.f32.gmra.mxu0 %v1179
  %v1480 = vpop.f32.mrf.mxu0
  %v1481 = vadd.f32 0.0, %v1480
  %v1482 = vpop.f32.mrf.mxu0
  %1483 = vmatprep.mubr.f32.mxu0 0.0
  %1484 = vmatmul.mubr.f32.gmra.mxu0 %v1182
  %v1485 = vpop.f32.mrf.mxu0
  %v1486 = vadd.f32 0.0, %v1485
  %v1487 = vpop.f32.mrf.mxu0
  %1488 = vmatprep.mubr.f32.mxu0 0.0
  %1489 = vmatmul.mubr.f32.gmra.mxu0 %v1185
  %v1490 = vpop.f32.mrf.mxu0
  %v1491 = vadd.f32 0.0, %v1490
  %v1492 = vpop.f32.mrf.mxu0
  %1493 = vmatprep.mubr.f32.mxu0 0.0
  %1494 = vmatmul.mubr.f32.gmra.mxu0 %v1188
  %v1495 = vpop.f32.mrf.mxu0
  %v1496 = vadd.f32 0.0, %v1495
  %v1497 = vpop.f32.mrf.mxu0
  %1498 = vmatprep.mubr.f32.mxu0 0.0
  %1499 = vmatmul.mubr.f32.gmra.mxu0 %v1191
  %v1500 = vpop.f32.mrf.mxu0
  %v1501 = vadd.f32 0.0, %v1500
  %v1502 = vpop.f32.mrf.mxu0
  %1503 = vmatprep.mubr.f32.mxu0 0.0
  %1504 = vmatmul.mubr.f32.gmra.mxu0 %v1194
  %v1505 = vpop.f32.mrf.mxu0
  %v1506 = vadd.f32 0.0, %v1505
  %v1507 = vpop.f32.mrf.mxu0
  %1508 = vmatprep.mubr.f32.mxu0 0.0
  %1509 = vmatmul.mubr.f32.gmra.mxu0 %v1197
  %v1510 = vpop.f32.mrf.mxu0
  %v1511 = vadd.f32 0.0, %v1510
  %v1512 = vpop.f32.mrf.mxu0
  %1513 = vmatprep.mubr.f32.mxu0 0.0
  %1514 = vmatmul.mubr.f32.gmra.mxu0 %v1200
  %v1515 = vpop.f32.mrf.mxu0
  %v1516 = vadd.f32 0.0, %v1515
  %v1517 = vpop.f32.mrf.mxu0
  %1518 = vmatprep.mubr.f32.mxu0 0.0
  %1519 = vmatmul.mubr.f32.gmra.mxu0 %v1203
  %v1520 = vpop.f32.mrf.mxu0
  %v1521 = vadd.f32 0.0, %v1520
  %v1522 = vpop.f32.mrf.mxu0
  %1523 = vmatprep.mubr.f32.mxu0 0.0
  %1524 = vmatmul.mubr.f32.gmra.mxu0 %v1206
  %v1525 = vpop.f32.mrf.mxu0
  %v1526 = vadd.f32 0.0, %v1525
  %v1527 = vpop.f32.mrf.mxu0
  %1528 = vmatprep.mubr.f32.mxu0 0.0
  %1529 = vmatmul.mubr.f32.gmra.mxu0 %v1209
  %v1530 = vpop.f32.mrf.mxu0
  %v1531 = vadd.f32 0.0, %v1530
  %v1532 = vpop.f32.mrf.mxu0
  %1533 = vmatprep.mubr.f32.mxu0 0.0
  %1534 = vmatmul.mubr.f32.gmra.mxu0 %v1212
  %v1535 = vpop.f32.mrf.mxu0
  %v1536 = vadd.f32 0.0, %v1535
  %v1537 = vpop.f32.mrf.mxu0
  %1538 = vdwg.mxu0
  %1552 = vrot.lane.b32.xlu0 %v1346, 96
  %v1553 = vpop.permute.xlu0 %1552
  %1554 = vrot.lane.b32.xlu0 %v1351, 96
  %v1555 = vpop.permute.xlu0 %1554
  %1556 = vrot.lane.b32.xlu0 %v1356, 96
  %v1557 = vpop.permute.xlu0 %1556
  %1558 = vrot.lane.b32.xlu0 %v1361, 96
  %v1559 = vpop.permute.xlu0 %1558
  %1560 = vrot.lane.b32.xlu0 %v1366, 96
  %v1561 = vpop.permute.xlu0 %1560
  %1562 = vrot.lane.b32.xlu0 %v1371, 96
  %v1563 = vpop.permute.xlu0 %1562
  %1564 = vrot.lane.b32.xlu0 %v1376, 96
  %v1565 = vpop.permute.xlu0 %1564
  %1566 = vrot.lane.b32.xlu0 %v1381, 96
  %v1567 = vpop.permute.xlu0 %1566
  %1568 = vrot.lane.b32.xlu0 %v1386, 96
  %v1569 = vpop.permute.xlu0 %1568
  %1570 = vrot.lane.b32.xlu0 %v1391, 96
  %v1571 = vpop.permute.xlu0 %1570
  %1572 = vrot.lane.b32.xlu0 %v1396, 96
  %v1573 = vpop.permute.xlu0 %1572
  %1574 = vrot.lane.b32.xlu0 %v1401, 96
  %v1575 = vpop.permute.xlu0 %1574
  %1576 = vrot.lane.b32.xlu0 %v1406, 96
  %v1577 = vpop.permute.xlu0 %1576
  %v1591 = vadd.f32 %v1281, %v1553
  %v1592 = vadd.f32 %v1286, %v1555
  %v1593 = vadd.f32 %v1291, %v1557
  %v1594 = vadd.f32 %v1296, %v1559
  %v1595 = vadd.f32 %v1301, %v1561
  %v1596 = vadd.f32 %v1306, %v1563
  %v1597 = vadd.f32 %v1311, %v1565
  %v1598 = vadd.f32 %v1316, %v1567
  %v1599 = vadd.f32 %v1321, %v1569
  %v1600 = vadd.f32 %v1326, %v1571
  %v1601 = vadd.f32 %v1331, %v1573
  %v1602 = vadd.f32 %v1336, %v1575
  %v1603 = vadd.f32 %v1341, %v1577
  %1617 = vrot.lane.b32.xlu0 %v1411, 64
  %v1618 = vpop.permute.xlu0 %1617
  %1619 = vrot.lane.b32.xlu0 %v1416, 64
  %v1620 = vpop.permute.xlu0 %1619
  %1621 = vrot.lane.b32.xlu0 %v1421, 64
  %v1622 = vpop.permute.xlu0 %1621
  %1623 = vrot.lane.b32.xlu0 %v1426, 64
  %v1624 = vpop.permute.xlu0 %1623
  %1625 = vrot.lane.b32.xlu0 %v1431, 64
  %v1626 = vpop.permute.xlu0 %1625
  %1627 = vrot.lane.b32.xlu0 %v1436, 64
  %v1628 = vpop.permute.xlu0 %1627
  %1629 = vrot.lane.b32.xlu0 %v1441, 64
  %v1630 = vpop.permute.xlu0 %1629
  %1631 = vrot.lane.b32.xlu0 %v1446, 64
  %v1632 = vpop.permute.xlu0 %1631
  %1633 = vrot.lane.b32.xlu0 %v1451, 64
  %v1634 = vpop.permute.xlu0 %1633
  %1635 = vrot.lane.b32.xlu0 %v1456, 64
  %v1636 = vpop.permute.xlu0 %1635
  %1637 = vrot.lane.b32.xlu0 %v1461, 64
  %v1638 = vpop.permute.xlu0 %1637
  %1639 = vrot.lane.b32.xlu0 %v1466, 64
  %v1640 = vpop.permute.xlu0 %1639
  %1641 = vrot.lane.b32.xlu0 %v1471, 64
  %v1642 = vpop.permute.xlu0 %1641
  %v1656 = vadd.f32 %v1591, %v1618
  %v1657 = vadd.f32 %v1592, %v1620
  %v1658 = vadd.f32 %v1593, %v1622
  %v1659 = vadd.f32 %v1594, %v1624
  %v1660 = vadd.f32 %v1595, %v1626
  %v1661 = vadd.f32 %v1596, %v1628
  %v1662 = vadd.f32 %v1597, %v1630
  %v1663 = vadd.f32 %v1598, %v1632
  %v1664 = vadd.f32 %v1599, %v1634
  %v1665 = vadd.f32 %v1600, %v1636
  %v1666 = vadd.f32 %v1601, %v1638
  %v1667 = vadd.f32 %v1602, %v1640
  %v1668 = vadd.f32 %v1603, %v1642
  %1682 = vrot.lane.b32.xlu0 %v1476, 32
  %v1683 = vpop.permute.xlu0 %1682
  %1684 = vrot.lane.b32.xlu0 %v1481, 32
  %v1685 = vpop.permute.xlu0 %1684
  %1686 = vrot.lane.b32.xlu0 %v1486, 32
  %v1687 = vpop.permute.xlu0 %1686
  %1688 = vrot.lane.b32.xlu0 %v1491, 32
  %v1689 = vpop.permute.xlu0 %1688
  %1690 = vrot.lane.b32.xlu0 %v1496, 32
  %v1691 = vpop.permute.xlu0 %1690
  %1692 = vrot.lane.b32.xlu0 %v1501, 32
  %v1693 = vpop.permute.xlu0 %1692
  %1694 = vrot.lane.b32.xlu0 %v1506, 32
  %v1695 = vpop.permute.xlu0 %1694
  %1696 = vrot.lane.b32.xlu0 %v1511, 32
  %v1697 = vpop.permute.xlu0 %1696
  %1698 = vrot.lane.b32.xlu0 %v1516, 32
  %v1699 = vpop.permute.xlu0 %1698
  %1700 = vrot.lane.b32.xlu0 %v1521, 32
  %v1701 = vpop.permute.xlu0 %1700
  %1702 = vrot.lane.b32.xlu0 %v1526, 32
  %v1703 = vpop.permute.xlu0 %1702
  %1704 = vrot.lane.b32.xlu0 %v1531, 32
  %v1705 = vpop.permute.xlu0 %1704
  %1706 = vrot.lane.b32.xlu0 %v1536, 32
  %v1707 = vpop.permute.xlu0 %1706
  %v1721 = vadd.f32 %v1656, %v1683
  %v1722 = vadd.f32 %v1657, %v1685
  %v1723 = vadd.f32 %v1658, %v1687
  %v1724 = vadd.f32 %v1659, %v1689
  %v1725 = vadd.f32 %v1660, %v1691
  %v1726 = vadd.f32 %v1661, %v1693
  %v1727 = vadd.f32 %v1662, %v1695
  %v1728 = vadd.f32 %v1663, %v1697
  %v1729 = vadd.f32 %v1664, %v1699
  %v1730 = vadd.f32 %v1665, %v1701
  %v1731 = vadd.f32 %v1666, %v1703
  %v1732 = vadd.f32 %v1667, %v1705
  %v1733 = vadd.f32 %v1668, %v1707
  %v1734 = vld [vmem:[%s5] sm:$0x1]
  %v1736 = vlaneseq
  %v1737 = vshrl.u32 %v1736, 7
  %v1738 = vsub.s32 0, %v1737
  %v1739 = vrot.slane %v1734, %v1738
  %v1741 = vadd.f32 %v1721, %v1739
  %v1742 = vadd.f32 %v1722, %v1739
  %v1743 = vadd.f32 %v1723, %v1739
  %v1744 = vadd.f32 %v1724, %v1739
  %v1745 = vadd.f32 %v1725, %v1739
  %v1746 = vadd.f32 %v1726, %v1739
  %v1747 = vadd.f32 %v1727, %v1739
  %v1748 = vadd.f32 %v1728, %v1739
  %v1749 = vadd.f32 %v1729, %v1739
  %v1750 = vadd.f32 %v1730, %v1739
  %v1751 = vadd.f32 %v1731, %v1739
  %v1752 = vadd.f32 %v1732, %v1739
  %v1753 = vadd.f32 %v1733, %v1739
  %v1754 = vmul.f32 %v1741, 0.5
  %v1755 = vmul.f32 %v1742, 0.5
  %v1756 = vmul.f32 %v1743, 0.5
  %v1757 = vmul.f32 %v1744, 0.5
  %v1758 = vmul.f32 %v1745, 0.5
  %v1759 = vmul.f32 %v1746, 0.5
  %v1760 = vmul.f32 %v1747, 0.5
  %v1761 = vmul.f32 %v1748, 0.5
  %v1762 = vmul.f32 %v1749, 0.5
  %v1763 = vmul.f32 %v1750, 0.5
  %v1764 = vmul.f32 %v1751, 0.5
  %v1765 = vmul.f32 %v1752, 0.5
  %v1766 = vmul.f32 %v1753, 0.5
  %v1767 = vrcp.pop 1.4142135
  %v1768 = vmul.f32 %v1741, %v1767
  %v1769 = vmul.f32 %v1742, %v1767
  %v1770 = vmul.f32 %v1743, %v1767
  %v1771 = vmul.f32 %v1744, %v1767
  %v1772 = vmul.f32 %v1745, %v1767
  %v1773 = vmul.f32 %v1746, %v1767
  %v1774 = vmul.f32 %v1747, %v1767
  %v1775 = vmul.f32 %v1748, %v1767
  %v1776 = vmul.f32 %v1749, %v1767
  %v1777 = vmul.f32 %v1750, %v1767
  %v1778 = vmul.f32 %v1751, %v1767
  %v1779 = vmul.f32 %v1752, %v1767
  %v1780 = vmul.f32 %v1753, %v1767
  %v1781 = verf.f32.pop %v1768
  %v1782 = verf.f32.pop %v1769
  %v1783 = verf.f32.pop %v1770
  %v1784 = verf.f32.pop %v1771
  %v1785 = verf.f32.pop %v1772
  %v1786 = verf.f32.pop %v1773
  %v1787 = verf.f32.pop %v1774
  %v1788 = verf.f32.pop %v1775
  %v1789 = verf.f32.pop %v1776
  %v1790 = verf.f32.pop %v1777
  %v1791 = verf.f32.pop %v1778
  %v1792 = verf.f32.pop %v1779
  %v1793 = verf.f32.pop %v1780
  %v1794 = vadd.f32 %v1781, 1.0
  %v1795 = vadd.f32 %v1782, 1.0
  %v1796 = vadd.f32 %v1783, 1.0
  %v1797 = vadd.f32 %v1784, 1.0
  %v1798 = vadd.f32 %v1785, 1.0
  %v1799 = vadd.f32 %v1786, 1.0
  %v1800 = vadd.f32 %v1787, 1.0
  %v1801 = vadd.f32 %v1788, 1.0
  %v1802 = vadd.f32 %v1789, 1.0
  %v1803 = vadd.f32 %v1790, 1.0
  %v1804 = vadd.f32 %v1791, 1.0
  %v1805 = vadd.f32 %v1792, 1.0
  %v1806 = vadd.f32 %v1793, 1.0
  %v1807 = vmul.f32 %v1754, %v1794
  %v1808 = vmul.f32 %v1755, %v1795
  %v1809 = vmul.f32 %v1756, %v1796
  %v1810 = vmul.f32 %v1757, %v1797
  %v1811 = vmul.f32 %v1758, %v1798
  %v1812 = vmul.f32 %v1759, %v1799
  %v1813 = vmul.f32 %v1760, %v1800
  %v1814 = vmul.f32 %v1761, %v1801
  %v1815 = vmul.f32 %v1762, %v1802
  %v1816 = vmul.f32 %v1763, %v1803
  %v1817 = vmul.f32 %v1764, %v1804
  %v1818 = vmul.f32 %v1765, %v1805
  %v1819 = vmul.f32 %v1766, %v1806
  %v1820 = vld [vmem:[%s6] sm:$0xf]
  %v1821 = vld [vmem:[%s6 + $0x4] sm:$0xf]
  %v1822 = vld [vmem:[%s6 + $0x8] sm:$0xf]
  %v1823 = vld [vmem:[%s6 + $0xc] sm:$0xf]
  %v1824 = vld [vmem:[%s6 + $0x10] sm:$0xf]
  %v1825 = vld [vmem:[%s6 + $0x14] sm:$0xf]
  %v1826 = vld [vmem:[%s6 + $0x18] sm:$0xf]
  %v1827 = vld [vmem:[%s6 + $0x1c] sm:$0xf]
  %v1828 = vld [vmem:[%s6 + $0x20] sm:$0xf]
  %v1829 = vld [vmem:[%s6 + $0x24] sm:$0xf]
  %v1830 = vld [vmem:[%s6 + $0x28] sm:$0xf]
  %v1831 = vld [vmem:[%s6 + $0x2c] sm:$0xf]
  %v1832 = vld [vmem:[%s6 + $0x30] sm:$0xf]
  %v1833 = vld [vmem:[%s6 + $0x34] sm:$0xf]
  %v1834 = vld [vmem:[%s6 + $0x38] sm:$0xf]
  %v1835 = vld [vmem:[%s6 + $0x3c] sm:$0xf]
  %v1836 = vld [vmem:[%s6 + $0x40] sm:$0xf]
  %v1837 = vld [vmem:[%s6 + $0x44] sm:$0xf]
  %v1838 = vld [vmem:[%s6 + $0x48] sm:$0xf]
  %v1839 = vld [vmem:[%s6 + $0x4c] sm:$0xf]
  %v1840 = vld [vmem:[%s6 + $0x50] sm:$0xf]
  %v1841 = vld [vmem:[%s6 + $0x54] sm:$0xf]
  %v1842 = vld [vmem:[%s6 + $0x58] sm:$0xf]
  %v1843 = vld [vmem:[%s6 + $0x5c] sm:$0xf]
  %v1844 = vld [vmem:[%s6 + $0x60] sm:$0xf]
  %v1845 = vld [vmem:[%s6 + $0x64] sm:$0xf]
  %v1846 = vld [vmem:[%s6 + $0x68] sm:$0xf]
  %v1847 = vld [vmem:[%s6 + $0x6c] sm:$0xf]
  %v1848 = vpack.c.bf16 %v1808, %v1807
  %v1849 = vpack.c.bf16 %v1810, %v1809
  %v1850 = vpack.c.bf16 %v1812, %v1811
  %v1851 = vpack.c.bf16 %v1814, %v1813
  %v1852 = vpack.c.bf16 %v1816, %v1815
  %v1853 = vpack.c.bf16 %v1818, %v1817
  %v1854 = vpack.c.bf16 %v1819, %v1819
  %v1883 = vunpack.c.l.b16 %v1820
  %v1884 = vunpack.c.l.b16 %v1821
  %v1885 = vunpack.c.l.b16 %v1822
  %v1886 = vunpack.c.l.b16 %v1823
  %v1887 = vunpack.c.l.b16 %v1824
  %v1888 = vunpack.c.l.b16 %v1825
  %v1889 = vunpack.c.l.b16 %v1826
  %v1890 = vunpack.c.l.b16 %v1827
  %v1891 = vunpack.c.l.b16 %v1828
  %v1892 = vunpack.c.l.b16 %v1829
  %v1893 = vunpack.c.l.b16 %v1830
  %v1894 = vunpack.c.l.b16 %v1831
  %v1895 = vunpack.c.l.b16 %v1832
  %v1896 = vunpack.c.l.b16 %v1833
  %v1897 = vunpack.c.l.b16 %v1834
  %v1898 = vunpack.c.l.b16 %v1835
  %v1899 = vunpack.c.l.b16 %v1836
  %v1900 = vunpack.c.l.b16 %v1837
  %v1901 = vunpack.c.l.b16 %v1838
  %v1902 = vunpack.c.l.b16 %v1839
  %v1903 = vunpack.c.l.b16 %v1840
  %v1904 = vunpack.c.l.b16 %v1841
  %v1905 = vunpack.c.l.b16 %v1842
  %v1906 = vunpack.c.l.b16 %v1843
  %v1907 = vunpack.c.l.b16 %v1844
  %v1908 = vunpack.c.l.b16 %v1845
  %v1909 = vunpack.c.l.b16 %v1846
  %v1910 = vunpack.c.l.b16 %v1847
  %v1911 = vpack.c.b16 %v1884, %v1883
  %v1912 = vpack.c.b16 %v1886, %v1885
  %v1913 = vpack.c.b16 %v1888, %v1887
  %v1914 = vpack.c.b16 %v1890, %v1889
  %v1915 = vpack.c.b16 %v1892, %v1891
  %v1916 = vpack.c.b16 %v1894, %v1893
  %v1917 = vpack.c.b16 %v1896, %v1895
  %v1918 = vpack.c.b16 %v1898, %v1897
  %v1919 = vpack.c.b16 %v1900, %v1899
  %v1920 = vpack.c.b16 %v1902, %v1901
  %v1921 = vpack.c.b16 %v1904, %v1903
  %v1922 = vpack.c.b16 %v1906, %v1905
  %v1923 = vpack.c.b16 %v1908, %v1907
  %v1924 = vpack.c.b16 %v1910, %v1909
  %vm1925 = vcmask 850944
  %v1927 = vsel %vm1925, %v1911, 0
  %v1930 = vsel %vm1925, %v1912, 0
  %v1933 = vsel %vm1925, %v1913, 0
  %v1936 = vsel %vm1925, %v1914, 0
  %v1939 = vsel %vm1925, %v1915, 0
  %v1942 = vsel %vm1925, %v1916, 0
  %v1945 = vsel %vm1925, %v1917, 0
  %v1948 = vsel %vm1925, %v1918, 0
  %v1951 = vsel %vm1925, %v1919, 0
  %v1954 = vsel %vm1925, %v1920, 0
  %v1957 = vsel %vm1925, %v1921, 0
  %v1960 = vsel %vm1925, %v1922, 0
  %v1963 = vsel %vm1925, %v1923, 0
  %v1966 = vsel %vm1925, %v1924, 0
  %v1969 = vsel %vm804, %v1854, 0
  %1971 = vmatprep.subr.bf16.mxu0 0
  %1972 = vmatpush1.bf16.msra.mxu0 0
  %1973 = vmatprep.subr.bf16.mxu0 0
  %1974 = vmatpush1.bf16.msra.mxu0 %v1969
  %1975 = vmatprep.subr.bf16.mxu0 0
  %1976 = vmatpush1.bf16.msra.mxu0 %v1853
  %1977 = vmatprep.subr.bf16.mxu0 0
  %1978 = vmatpush1.bf16.msra.mxu0 %v1852
  %1979 = vmatprep.subr.bf16.mxu0 0
  %1980 = vmatpush1.bf16.msra.mxu0 %v1851
  %1981 = vmatprep.subr.bf16.mxu0 0
  %1982 = vmatpush1.bf16.msra.mxu0 %v1850
  %1983 = vmatprep.subr.bf16.mxu0 0
  %1984 = vmatpush1.bf16.msra.mxu0 %v1849
  %1985 = vmatprep.subr.bf16.mxu0 0
  %1986 = vmatpush1.bf16.msra.mxu0 %v1848
  %1987 = vmatprep.subr.bf16.mxu0 0
  %1988 = vmatpush2.bf16.msra.mxu0 0
  %1989 = vmatprep.subr.bf16.mxu0 0
  %1990 = vmatpush2.bf16.msra.mxu0 0
  %1991 = vmatprep.subr.bf16.mxu0 0
  %1992 = vmatpush2.bf16.msra.mxu0 0
  %1993 = vmatprep.subr.bf16.mxu0 0
  %1994 = vmatpush2.bf16.msra.mxu0 0
  %1995 = vmatprep.subr.bf16.mxu0 0
  %1996 = vmatpush2.bf16.msra.mxu0 0
  %1997 = vmatprep.subr.bf16.mxu0 0
  %1998 = vmatpush2.bf16.msra.mxu0 0
  %1999 = vmatprep.subr.bf16.mxu0 0
  %2000 = vmatpush2.bf16.msra.mxu0 0
  %2001 = vmatprep.subr.bf16.mxu0 0
  %2002 = vmatpush2.bf16.msra.mxu0 0
  %2003 = vmatprep.mubr.bf16.mxu0 0
  %2004 = vmatmul.mubr.bf16.gmra.mxu0 %v1927
  %v2005 = vpop.f32.mrf.mxu0
  %v2006 = vadd.f32 0.0, %v2005
  %v2007 = vpop.f32.mrf.mxu0
  %v2008 = vpop.f32.mrf.mxu0
  %v2009 = vadd.f32 0.0, %v2008
  %v2010 = vpop.f32.mrf.mxu0
  %2011 = vmatprep.mubr.bf16.mxu0 0
  %2012 = vmatmul.mubr.bf16.gmra.mxu0 %v1930
  %v2013 = vpop.f32.mrf.mxu0
  %v2014 = vadd.f32 0.0, %v2013
  %v2015 = vpop.f32.mrf.mxu0
  %v2016 = vpop.f32.mrf.mxu0
  %v2017 = vadd.f32 0.0, %v2016
  %v2018 = vpop.f32.mrf.mxu0
  %2019 = vmatprep.mubr.bf16.mxu0 0
  %2020 = vmatmul.mubr.bf16.gmra.mxu0 %v1933
  %v2021 = vpop.f32.mrf.mxu0
  %v2022 = vadd.f32 0.0, %v2021
  %v2023 = vpop.f32.mrf.mxu0
  %v2024 = vpop.f32.mrf.mxu0
  %v2025 = vadd.f32 0.0, %v2024
  %v2026 = vpop.f32.mrf.mxu0
  %2027 = vmatprep.mubr.bf16.mxu0 0
  %2028 = vmatmul.mubr.bf16.gmra.mxu0 %v1936
  %v2029 = vpop.f32.mrf.mxu0
  %v2030 = vadd.f32 0.0, %v2029
  %v2031 = vpop.f32.mrf.mxu0
  %v2032 = vpop.f32.mrf.mxu0
  %v2033 = vadd.f32 0.0, %v2032
  %v2034 = vpop.f32.mrf.mxu0
  %2035 = vmatprep.mubr.bf16.mxu0 0
  %2036 = vmatmul.mubr.bf16.gmra.mxu0 %v1939
  %v2037 = vpop.f32.mrf.mxu0
  %v2038 = vadd.f32 0.0, %v2037
  %v2039 = vpop.f32.mrf.mxu0
  %v2040 = vpop.f32.mrf.mxu0
  %v2041 = vadd.f32 0.0, %v2040
  %v2042 = vpop.f32.mrf.mxu0
  %2043 = vmatprep.mubr.bf16.mxu0 0
  %2044 = vmatmul.mubr.bf16.gmra.mxu0 %v1942
  %v2045 = vpop.f32.mrf.mxu0
  %v2046 = vadd.f32 0.0, %v2045
  %v2047 = vpop.f32.mrf.mxu0
  %v2048 = vpop.f32.mrf.mxu0
  %v2049 = vadd.f32 0.0, %v2048
  %v2050 = vpop.f32.mrf.mxu0
  %2051 = vmatprep.mubr.bf16.mxu0 0
  %2052 = vmatmul.mubr.bf16.gmra.mxu0 %v1945
  %v2053 = vpop.f32.mrf.mxu0
  %v2054 = vadd.f32 0.0, %v2053
  %v2055 = vpop.f32.mrf.mxu0
  %v2056 = vpop.f32.mrf.mxu0
  %v2057 = vadd.f32 0.0, %v2056
  %v2058 = vpop.f32.mrf.mxu0
  %2059 = vmatprep.mubr.bf16.mxu0 0
  %2060 = vmatmul.mubr.bf16.gmra.mxu0 %v1948
  %v2061 = vpop.f32.mrf.mxu0
  %v2062 = vadd.f32 0.0, %v2061
  %v2063 = vpop.f32.mrf.mxu0
  %v2064 = vpop.f32.mrf.mxu0
  %v2065 = vadd.f32 0.0, %v2064
  %v2066 = vpop.f32.mrf.mxu0
  %2067 = vmatprep.mubr.bf16.mxu0 0
  %2068 = vmatmul.mubr.bf16.gmra.mxu0 %v1951
  %v2069 = vpop.f32.mrf.mxu0
  %v2070 = vadd.f32 0.0, %v2069
  %v2071 = vpop.f32.mrf.mxu0
  %v2072 = vpop.f32.mrf.mxu0
  %v2073 = vadd.f32 0.0, %v2072
  %v2074 = vpop.f32.mrf.mxu0
  %2075 = vmatprep.mubr.bf16.mxu0 0
  %2076 = vmatmul.mubr.bf16.gmra.mxu0 %v1954
  %v2077 = vpop.f32.mrf.mxu0
  %v2078 = vadd.f32 0.0, %v2077
  %v2079 = vpop.f32.mrf.mxu0
  %v2080 = vpop.f32.mrf.mxu0
  %v2081 = vadd.f32 0.0, %v2080
  %v2082 = vpop.f32.mrf.mxu0
  %2083 = vmatprep.mubr.bf16.mxu0 0
  %2084 = vmatmul.mubr.bf16.gmra.mxu0 %v1957
  %v2085 = vpop.f32.mrf.mxu0
  %v2086 = vadd.f32 0.0, %v2085
  %v2087 = vpop.f32.mrf.mxu0
  %v2088 = vpop.f32.mrf.mxu0
  %v2089 = vadd.f32 0.0, %v2088
  %v2090 = vpop.f32.mrf.mxu0
  %2091 = vmatprep.mubr.bf16.mxu0 0
  %2092 = vmatmul.mubr.bf16.gmra.mxu0 %v1960
  %v2093 = vpop.f32.mrf.mxu0
  %v2094 = vadd.f32 0.0, %v2093
  %v2095 = vpop.f32.mrf.mxu0
  %v2096 = vpop.f32.mrf.mxu0
  %v2097 = vadd.f32 0.0, %v2096
  %v2098 = vpop.f32.mrf.mxu0
  %2099 = vmatprep.mubr.bf16.mxu0 0
  %2100 = vmatmul.mubr.bf16.gmra.mxu0 %v1963
  %v2101 = vpop.f32.mrf.mxu0
  %v2102 = vadd.f32 0.0, %v2101
  %v2103 = vpop.f32.mrf.mxu0
  %v2104 = vpop.f32.mrf.mxu0
  %v2105 = vadd.f32 0.0, %v2104
  %v2106 = vpop.f32.mrf.mxu0
  %2107 = vmatprep.mubr.bf16.mxu0 0
  %2108 = vmatmul.mubr.bf16.gmra.mxu0 %v1966
  %v2109 = vpop.f32.mrf.mxu0
  %v2110 = vadd.f32 0.0, %v2109
  %v2111 = vpop.f32.mrf.mxu0
  %v2112 = vpop.f32.mrf.mxu0
  %v2113 = vadd.f32 0.0, %v2112
  %v2114 = vpop.f32.mrf.mxu0
  %2115 = vdwg.mxu0
  %v2116 = vld [vmem:[%s7] sm:$0xff]
  %v2117 = vld [vmem:[%s7 + $0x8] sm:$0xff]
  %v2118 = vld [vmem:[%s7 + $0x10] sm:$0xff]
  %v2119 = vld [vmem:[%s7 + $0x18] sm:$0xff]
  %vm2120 = vcmask 261120
  %v2122 = vsel %vm2120, %v2006, 0
  %v2125 = vsel %vm2120, %v2009, 0
  %v2128 = vsel %vm2120, %v2014, 0
  %v2131 = vsel %vm2120, %v2017, 0
  %v2134 = vsel %vm2120, %v2022, 0
  %v2137 = vsel %vm2120, %v2025, 0
  %v2140 = vsel %vm2120, %v2030, 0
  %v2143 = vsel %vm2120, %v2033, 0
  %v2146 = vsel %vm2120, %v2038, 0
  %v2149 = vsel %vm2120, %v2041, 0
  %v2152 = vsel %vm2120, %v2046, 0
  %v2155 = vsel %vm2120, %v2049, 0
  %v2158 = vsel %vm2120, %v2054, 0
  %v2161 = vsel %vm2120, %v2057, 0
  %v2164 = vsel %vm2120, %v2062, 0
  %v2167 = vsel %vm2120, %v2065, 0
  %v2170 = vsel %vm2120, %v2070, 0
  %v2173 = vsel %vm2120, %v2073, 0
  %v2176 = vsel %vm2120, %v2078, 0
  %v2179 = vsel %vm2120, %v2081, 0
  %v2182 = vsel %vm2120, %v2086, 0
  %v2185 = vsel %vm2120, %v2089, 0
  %v2188 = vsel %vm2120, %v2094, 0
  %v2191 = vsel %vm2120, %v2097, 0
  %v2194 = vsel %vm2120, %v2102, 0
  %v2197 = vsel %vm2120, %v2105, 0
  %v2200 = vsel %vm2120, %v2110, 0
  %v2203 = vsel %vm2120, %v2113, 0
  %2205 = vmatprep.subr.mxu0 0.0
  %2206 = vmatpush1.msra.mxu0 0.0
  %2207 = vmatprep.subr.mxu0 0.0
  %2208 = vmatpush1.msra.mxu0 0.0
  %2209 = vmatprep.subr.mxu0 0.0
  %2210 = vmatpush1.msra.mxu0 0.0
  %2211 = vmatprep.subr.mxu0 0.0
  %2212 = vmatpush1.msra.mxu0 0.0
  %2213 = vmatprep.subr.mxu0 0.0
  %2214 = vmatpush1.msra.mxu0 0.0
  %2215 = vmatprep.subr.mxu0 0.0
  %2216 = vmatpush1.msra.mxu0 0.0
  %2217 = vmatprep.subr.mxu0 0.0
  %2218 = vmatpush1.msra.mxu0 0.0
  %2219 = vmatprep.subr.mxu0 0.0
  %2220 = vmatpush1.msra.mxu0 0.0
  %2221 = vmatprep.subr.mxu0 0.0
  %2222 = vmatpush1.msra.mxu0 0.0
  %2223 = vmatprep.subr.mxu0 0.0
  %2224 = vmatpush1.msra.mxu0 0.0
  %2225 = vmatprep.subr.mxu0 0.0
  %2226 = vmatpush1.msra.mxu0 0.0
  %2227 = vmatprep.subr.mxu0 0.0
  %2228 = vmatpush1.msra.mxu0 0.0
  %2229 = vmatprep.subr.mxu0 0.0
  %2230 = vmatpush1.msra.mxu0 %v2119
  %2231 = vmatprep.subr.mxu0 0.0
  %2232 = vmatpush1.msra.mxu0 %v2118
  %2233 = vmatprep.subr.mxu0 0.0
  %2234 = vmatpush1.msra.mxu0 %v2117
  %2235 = vmatprep.subr.mxu0 0.0
  %2236 = vmatpush1.msra.mxu0 %v2116
  %2237 = vmatprep.subr.mxu0 0.0
  %2238 = vmatpush2.msra.mxu0 0.0
  %2239 = vmatprep.subr.mxu0 0.0
  %2240 = vmatpush2.msra.mxu0 0.0
  %2241 = vmatprep.subr.mxu0 0.0
  %2242 = vmatpush2.msra.mxu0 0.0
  %2243 = vmatprep.subr.mxu0 0.0
  %2244 = vmatpush2.msra.mxu0 0.0
  %2245 = vmatprep.subr.mxu0 0.0
  %2246 = vmatpush2.msra.mxu0 0.0
  %2247 = vmatprep.subr.mxu0 0.0
  %2248 = vmatpush2.msra.mxu0 0.0
  %2249 = vmatprep.subr.mxu0 0.0
  %2250 = vmatpush2.msra.mxu0 0.0
  %2251 = vmatprep.subr.mxu0 0.0
  %2252 = vmatpush2.msra.mxu0 0.0
  %2253 = vmatprep.subr.mxu0 0.0
  %2254 = vmatpush2.msra.mxu0 0.0
  %2255 = vmatprep.subr.mxu0 0.0
  %2256 = vmatpush2.msra.mxu0 0.0
  %2257 = vmatprep.subr.mxu0 0.0
  %2258 = vmatpush2.msra.mxu0 0.0
  %2259 = vmatprep.subr.mxu0 0.0
  %2260 = vmatpush2.msra.mxu0 0.0
  %2261 = vmatprep.subr.mxu0 0.0
  %2262 = vmatpush2.msra.mxu0 0.0
  %2263 = vmatprep.subr.mxu0 0.0
  %2264 = vmatpush2.msra.mxu0 0.0
  %2265 = vmatprep.subr.mxu0 0.0
  %2266 = vmatpush2.msra.mxu0 0.0
  %2267 = vmatprep.subr.mxu0 0.0
  %2268 = vmatpush2.msra.mxu0 0.0
  %2269 = vmatprep.mubr.f32.mxu0 0.0
  %2270 = vmatmul.mubr.f32.gmra.mxu0 %v2122
  %v2271 = vpop.f32.mrf.mxu0
  %v2272 = vadd.f32 0.0, %v2271
  %v2273 = vpop.f32.mrf.mxu0
  %2274 = vmatprep.mubr.f32.mxu0 0.0
  %2275 = vmatmul.mubr.f32.gmra.mxu0 %v2125
  %v2276 = vpop.f32.mrf.mxu0
  %v2277 = vadd.f32 0.0, %v2276
  %v2278 = vpop.f32.mrf.mxu0
  %2279 = vmatprep.mubr.f32.mxu0 0.0
  %2280 = vmatmul.mubr.f32.gmra.mxu0 %v2128
  %v2281 = vpop.f32.mrf.mxu0
  %v2282 = vadd.f32 0.0, %v2281
  %v2283 = vpop.f32.mrf.mxu0
  %2284 = vmatprep.mubr.f32.mxu0 0.0
  %2285 = vmatmul.mubr.f32.gmra.mxu0 %v2131
  %v2286 = vpop.f32.mrf.mxu0
  %v2287 = vadd.f32 0.0, %v2286
  %v2288 = vpop.f32.mrf.mxu0
  %2289 = vmatprep.mubr.f32.mxu0 0.0
  %2290 = vmatmul.mubr.f32.gmra.mxu0 %v2134
  %v2291 = vpop.f32.mrf.mxu0
  %v2292 = vadd.f32 0.0, %v2291
  %v2293 = vpop.f32.mrf.mxu0
  %2294 = vmatprep.mubr.f32.mxu0 0.0
  %2295 = vmatmul.mubr.f32.gmra.mxu0 %v2137
  %v2296 = vpop.f32.mrf.mxu0
  %v2297 = vadd.f32 0.0, %v2296
  %v2298 = vpop.f32.mrf.mxu0
  %2299 = vmatprep.mubr.f32.mxu0 0.0
  %2300 = vmatmul.mubr.f32.gmra.mxu0 %v2140
  %v2301 = vpop.f32.mrf.mxu0
  %v2302 = vadd.f32 0.0, %v2301
  %v2303 = vpop.f32.mrf.mxu0
  %2304 = vmatprep.mubr.f32.mxu0 0.0
  %2305 = vmatmul.mubr.f32.gmra.mxu0 %v2143
  %v2306 = vpop.f32.mrf.mxu0
  %v2307 = vadd.f32 0.0, %v2306
  %v2308 = vpop.f32.mrf.mxu0
  %2309 = vmatprep.mubr.f32.mxu0 0.0
  %2310 = vmatmul.mubr.f32.gmra.mxu0 %v2146
  %v2311 = vpop.f32.mrf.mxu0
  %v2312 = vadd.f32 0.0, %v2311
  %v2313 = vpop.f32.mrf.mxu0
  %2314 = vmatprep.mubr.f32.mxu0 0.0
  %2315 = vmatmul.mubr.f32.gmra.mxu0 %v2149
  %v2316 = vpop.f32.mrf.mxu0
  %v2317 = vadd.f32 0.0, %v2316
  %v2318 = vpop.f32.mrf.mxu0
  %2319 = vmatprep.mubr.f32.mxu0 0.0
  %2320 = vmatmul.mubr.f32.gmra.mxu0 %v2152
  %v2321 = vpop.f32.mrf.mxu0
  %v2322 = vadd.f32 0.0, %v2321
  %v2323 = vpop.f32.mrf.mxu0
  %2324 = vmatprep.mubr.f32.mxu0 0.0
  %2325 = vmatmul.mubr.f32.gmra.mxu0 %v2155
  %v2326 = vpop.f32.mrf.mxu0
  %v2327 = vadd.f32 0.0, %v2326
  %v2328 = vpop.f32.mrf.mxu0
  %2329 = vmatprep.mubr.f32.mxu0 0.0
  %2330 = vmatmul.mubr.f32.gmra.mxu0 %v2158
  %v2331 = vpop.f32.mrf.mxu0
  %v2332 = vadd.f32 0.0, %v2331
  %v2333 = vpop.f32.mrf.mxu0
  %2334 = vmatprep.mubr.f32.mxu0 0.0
  %2335 = vmatmul.mubr.f32.gmra.mxu0 %v2161
  %v2336 = vpop.f32.mrf.mxu0
  %v2337 = vadd.f32 0.0, %v2336
  %v2338 = vpop.f32.mrf.mxu0
  %2339 = vmatprep.mubr.f32.mxu0 0.0
  %2340 = vmatmul.mubr.f32.gmra.mxu0 %v2164
  %v2341 = vpop.f32.mrf.mxu0
  %v2342 = vadd.f32 0.0, %v2341
  %v2343 = vpop.f32.mrf.mxu0
  %2344 = vmatprep.mubr.f32.mxu0 0.0
  %2345 = vmatmul.mubr.f32.gmra.mxu0 %v2167
  %v2346 = vpop.f32.mrf.mxu0
  %v2347 = vadd.f32 0.0, %v2346
  %v2348 = vpop.f32.mrf.mxu0
  %2349 = vmatprep.mubr.f32.mxu0 0.0
  %2350 = vmatmul.mubr.f32.gmra.mxu0 %v2170
  %v2351 = vpop.f32.mrf.mxu0
  %v2352 = vadd.f32 0.0, %v2351
  %v2353 = vpop.f32.mrf.mxu0
  %2354 = vmatprep.mubr.f32.mxu0 0.0
  %2355 = vmatmul.mubr.f32.gmra.mxu0 %v2173
  %v2356 = vpop.f32.mrf.mxu0
  %v2357 = vadd.f32 0.0, %v2356
  %v2358 = vpop.f32.mrf.mxu0
  %2359 = vmatprep.mubr.f32.mxu0 0.0
  %2360 = vmatmul.mubr.f32.gmra.mxu0 %v2176
  %v2361 = vpop.f32.mrf.mxu0
  %v2362 = vadd.f32 0.0, %v2361
  %v2363 = vpop.f32.mrf.mxu0
  %2364 = vmatprep.mubr.f32.mxu0 0.0
  %2365 = vmatmul.mubr.f32.gmra.mxu0 %v2179
  %v2366 = vpop.f32.mrf.mxu0
  %v2367 = vadd.f32 0.0, %v2366
  %v2368 = vpop.f32.mrf.mxu0
  %2369 = vmatprep.mubr.f32.mxu0 0.0
  %2370 = vmatmul.mubr.f32.gmra.mxu0 %v2182
  %v2371 = vpop.f32.mrf.mxu0
  %v2372 = vadd.f32 0.0, %v2371
  %v2373 = vpop.f32.mrf.mxu0
  %2374 = vmatprep.mubr.f32.mxu0 0.0
  %2375 = vmatmul.mubr.f32.gmra.mxu0 %v2185
  %v2376 = vpop.f32.mrf.mxu0
  %v2377 = vadd.f32 0.0, %v2376
  %v2378 = vpop.f32.mrf.mxu0
  %2379 = vmatprep.mubr.f32.mxu0 0.0
  %2380 = vmatmul.mubr.f32.gmra.mxu0 %v2188
  %v2381 = vpop.f32.mrf.mxu0
  %v2382 = vadd.f32 0.0, %v2381
  %v2383 = vpop.f32.mrf.mxu0
  %2384 = vmatprep.mubr.f32.mxu0 0.0
  %2385 = vmatmul.mubr.f32.gmra.mxu0 %v2191
  %v2386 = vpop.f32.mrf.mxu0
  %v2387 = vadd.f32 0.0, %v2386
  %v2388 = vpop.f32.mrf.mxu0
  %2389 = vmatprep.mubr.f32.mxu0 0.0
  %2390 = vmatmul.mubr.f32.gmra.mxu0 %v2194
  %v2391 = vpop.f32.mrf.mxu0
  %v2392 = vadd.f32 0.0, %v2391
  %v2393 = vpop.f32.mrf.mxu0
  %2394 = vmatprep.mubr.f32.mxu0 0.0
  %2395 = vmatmul.mubr.f32.gmra.mxu0 %v2197
  %v2396 = vpop.f32.mrf.mxu0
  %v2397 = vadd.f32 0.0, %v2396
  %v2398 = vpop.f32.mrf.mxu0
  %2399 = vmatprep.mubr.f32.mxu0 0.0
  %2400 = vmatmul.mubr.f32.gmra.mxu0 %v2200
  %v2401 = vpop.f32.mrf.mxu0
  %v2402 = vadd.f32 0.0, %v2401
  %v2403 = vpop.f32.mrf.mxu0
  %2404 = vmatprep.mubr.f32.mxu0 0.0
  %2405 = vmatmul.mubr.f32.gmra.mxu0 %v2203
  %v2406 = vpop.f32.mrf.mxu0
  %v2407 = vadd.f32 0.0, %v2406
  %v2408 = vpop.f32.mrf.mxu0
  %2409 = vdwg.mxu0
  %2417 = vrot.lane.b32.xlu0 %v2307, 112
  %v2418 = vpop.permute.xlu0 %2417
  %2419 = vrot.lane.b32.xlu0 %v2312, 112
  %v2420 = vpop.permute.xlu0 %2419
  %2421 = vrot.lane.b32.xlu0 %v2317, 112
  %v2422 = vpop.permute.xlu0 %2421
  %2423 = vrot.lane.b32.xlu0 %v2322, 112
  %v2424 = vpop.permute.xlu0 %2423
  %2425 = vrot.lane.b32.xlu0 %v2327, 112
  %v2426 = vpop.permute.xlu0 %2425
  %2427 = vrot.lane.b32.xlu0 %v2332, 112
  %v2428 = vpop.permute.xlu0 %2427
  %2429 = vrot.lane.b32.xlu0 %v2337, 112
  %v2430 = vpop.permute.xlu0 %2429
  %v2438 = vadd.f32 %v2272, %v2418
  %v2439 = vadd.f32 %v2277, %v2420
  %v2440 = vadd.f32 %v2282, %v2422
  %v2441 = vadd.f32 %v2287, %v2424
  %v2442 = vadd.f32 %v2292, %v2426
  %v2443 = vadd.f32 %v2297, %v2428
  %v2444 = vadd.f32 %v2302, %v2430
  %2452 = vrot.lane.b32.xlu0 %v2342, 96
  %v2453 = vpop.permute.xlu0 %2452
  %2454 = vrot.lane.b32.xlu0 %v2347, 96
  %v2455 = vpop.permute.xlu0 %2454
  %2456 = vrot.lane.b32.xlu0 %v2352, 96
  %v2457 = vpop.permute.xlu0 %2456
  %2458 = vrot.lane.b32.xlu0 %v2357, 96
  %v2459 = vpop.permute.xlu0 %2458
  %2460 = vrot.lane.b32.xlu0 %v2362, 96
  %v2461 = vpop.permute.xlu0 %2460
  %2462 = vrot.lane.b32.xlu0 %v2367, 96
  %v2463 = vpop.permute.xlu0 %2462
  %2464 = vrot.lane.b32.xlu0 %v2372, 96
  %v2465 = vpop.permute.xlu0 %2464
  %v2473 = vadd.f32 %v2438, %v2453
  %v2474 = vadd.f32 %v2439, %v2455
  %v2475 = vadd.f32 %v2440, %v2457
  %v2476 = vadd.f32 %v2441, %v2459
  %v2477 = vadd.f32 %v2442, %v2461
  %v2478 = vadd.f32 %v2443, %v2463
  %v2479 = vadd.f32 %v2444, %v2465
  %2487 = vrot.lane.b32.xlu0 %v2377, 80
  %v2488 = vpop.permute.xlu0 %2487
  %2489 = vrot.lane.b32.xlu0 %v2382, 80
  %v2490 = vpop.permute.xlu0 %2489
  %2491 = vrot.lane.b32.xlu0 %v2387, 80
  %v2492 = vpop.permute.xlu0 %2491
  %2493 = vrot.lane.b32.xlu0 %v2392, 80
  %v2494 = vpop.permute.xlu0 %2493
  %2495 = vrot.lane.b32.xlu0 %v2397, 80
  %v2496 = vpop.permute.xlu0 %2495
  %2497 = vrot.lane.b32.xlu0 %v2402, 80
  %v2498 = vpop.permute.xlu0 %2497
  %2499 = vrot.lane.b32.xlu0 %v2407, 80
  %v2500 = vpop.permute.xlu0 %2499
  %v2508 = vadd.f32 %v2473, %v2488
  %v2509 = vadd.f32 %v2474, %v2490
  %v2510 = vadd.f32 %v2475, %v2492
  %v2511 = vadd.f32 %v2476, %v2494
  %v2512 = vadd.f32 %v2477, %v2496
  %v2513 = vadd.f32 %v2478, %v2498
  %v2514 = vadd.f32 %v2479, %v2500
  %v2515 = vld [vmem:[%s8] sm:$0x1]
  %v2517 = vlaneseq
  %v2518 = vshrl.u32 %v2517, 7
  %v2519 = vsub.s32 0, %v2518
  %v2520 = vrot.slane %v2515, %v2519
  %v2522 = vadd.f32 %v2508, %v2520
  %v2523 = vadd.f32 %v2509, %v2520
  %v2524 = vadd.f32 %v2510, %v2520
  %v2525 = vadd.f32 %v2511, %v2520
  %v2526 = vadd.f32 %v2512, %v2520
  %v2527 = vadd.f32 %v2513, %v2520
  %v2528 = vadd.f32 %v2514, %v2520
  %v2529 = vtanh.pop %v2522
  %v2530 = vtanh.pop %v2523
  %v2531 = vtanh.pop %v2524
  %v2532 = vtanh.pop %v2525
  %v2533 = vtanh.pop %v2526
  %v2534 = vtanh.pop %v2527
  %v2535 = vtanh.pop %v2528
  %v2536 = vsub.f32 %v2522, %v2529
  %v2537 = vsub.f32 %v2523, %v2530
  %v2538 = vsub.f32 %v2524, %v2531
  %v2539 = vsub.f32 %v2525, %v2532
  %v2540 = vsub.f32 %v2526, %v2533
  %v2541 = vsub.f32 %v2527, %v2534
  %v2542 = vsub.f32 %v2528, %v2535
  %v2543 = vld [vmem:[%s9] sm:$0xf]
  %v2544 = vld [vmem:[%s9 + $0x4] sm:$0xf]
  %v2545 = vld [vmem:[%s9 + $0x8] sm:$0xf]
  %v2546 = vld [vmem:[%s9 + $0xc] sm:$0xf]
  %v2547 = vld [vmem:[%s9 + $0x10] sm:$0xf]
  %v2548 = vld [vmem:[%s9 + $0x14] sm:$0xf]
  %v2549 = vld [vmem:[%s9 + $0x18] sm:$0xf]
  %v2550 = vld [vmem:[%s9 + $0x1c] sm:$0xf]
  %v2551 = vld [vmem:[%s9 + $0x20] sm:$0xf]
  %v2552 = vld [vmem:[%s9 + $0x24] sm:$0xf]
  %v2553 = vld [vmem:[%s9 + $0x28] sm:$0xf]
  %v2554 = vld [vmem:[%s9 + $0x2c] sm:$0xf]
  %v2555 = vld [vmem:[%s9 + $0x30] sm:$0xf]
  %v2556 = vld [vmem:[%s9 + $0x34] sm:$0xf]
  %v2557 = vld [vmem:[%s9 + $0x38] sm:$0xf]
  %v2558 = vld [vmem:[%s9 + $0x3c] sm:$0xf]
  %v2559 = vpack.c.bf16 %v2537, %v2536
  %v2560 = vpack.c.bf16 %v2539, %v2538
  %v2561 = vpack.c.bf16 %v2541, %v2540
  %v2562 = vpack.c.bf16 %v2542, %v2542
  %v2579 = vunpack.c.l.b16 %v2543
  %v2580 = vunpack.c.l.b16 %v2544
  %v2581 = vunpack.c.l.b16 %v2545
  %v2582 = vunpack.c.l.b16 %v2546
  %v2583 = vunpack.c.l.b16 %v2547
  %v2584 = vunpack.c.l.b16 %v2548
  %v2585 = vunpack.c.l.b16 %v2549
  %v2586 = vunpack.c.l.b16 %v2550
  %v2587 = vunpack.c.l.b16 %v2551
  %v2588 = vunpack.c.l.b16 %v2552
  %v2589 = vunpack.c.l.b16 %v2553
  %v2590 = vunpack.c.l.b16 %v2554
  %v2591 = vunpack.c.l.b16 %v2555
  %v2592 = vunpack.c.l.b16 %v2556
  %v2593 = vunpack.c.l.b16 %v2557
  %v2594 = vunpack.c.l.b16 %v2558
  %v2595 = vpack.c.b16 %v2580, %v2579
  %v2596 = vpack.c.b16 %v2582, %v2581
  %v2597 = vpack.c.b16 %v2584, %v2583
  %v2598 = vpack.c.b16 %v2586, %v2585
  %v2599 = vpack.c.b16 %v2588, %v2587
  %v2600 = vpack.c.b16 %v2590, %v2589
  %v2601 = vpack.c.b16 %v2592, %v2591
  %v2602 = vpack.c.b16 %v2594, %v2593
  %vm2603 = vcmask 457728
  %v2605 = vsel %vm2603, %v2595, 0
  %v2608 = vsel %vm2603, %v2596, 0
  %v2611 = vsel %vm2603, %v2597, 0
  %v2614 = vsel %vm2603, %v2598, 0
  %v2617 = vsel %vm2603, %v2599, 0
  %v2620 = vsel %vm2603, %v2600, 0
  %v2623 = vsel %vm2603, %v2601, 0
  %v2626 = vsel %vm2603, %v2602, 0
  %v2629 = vsel %vm804, %v2562, 0
  %2631 = vmatprep.subr.bf16.mxu0 0
  %2632 = vmatpush1.bf16.msra.mxu0 0
  %2633 = vmatprep.subr.bf16.mxu0 0
  %2634 = vmatpush1.bf16.msra.mxu0 0
  %2635 = vmatprep.subr.bf16.mxu0 0
  %2636 = vmatpush1.bf16.msra.mxu0 0
  %2637 = vmatprep.subr.bf16.mxu0 0
  %2638 = vmatpush1.bf16.msra.mxu0 0
  %2639 = vmatprep.subr.bf16.mxu0 0
  %2640 = vmatpush1.bf16.msra.mxu0 %v2629
  %2641 = vmatprep.subr.bf16.mxu0 0
  %2642 = vmatpush1.bf16.msra.mxu0 %v2561
  %2643 = vmatprep.subr.bf16.mxu0 0
  %2644 = vmatpush1.bf16.msra.mxu0 %v2560
  %2645 = vmatprep.subr.bf16.mxu0 0
  %2646 = vmatpush1.bf16.msra.mxu0 %v2559
  %2647 = vmatprep.subr.bf16.mxu0 0
  %2648 = vmatpush2.bf16.msra.mxu0 0
  %2649 = vmatprep.subr.bf16.mxu0 0
  %2650 = vmatpush2.bf16.msra.mxu0 0
  %2651 = vmatprep.subr.bf16.mxu0 0
  %2652 = vmatpush2.bf16.msra.mxu0 0
  %2653 = vmatprep.subr.bf16.mxu0 0
  %2654 = vmatpush2.bf16.msra.mxu0 0
  %2655 = vmatprep.subr.bf16.mxu0 0
  %2656 = vmatpush2.bf16.msra.mxu0 0
  %2657 = vmatprep.subr.bf16.mxu0 0
  %2658 = vmatpush2.bf16.msra.mxu0 0
  %2659 = vmatprep.subr.bf16.mxu0 0
  %2660 = vmatpush2.bf16.msra.mxu0 0
  %2661 = vmatprep.subr.bf16.mxu0 0
  %2662 = vmatpush2.bf16.msra.mxu0 0
  %2663 = vmatprep.mubr.bf16.mxu0 0
  %2664 = vmatmul.mubr.bf16.gmra.mxu0 %v2605
  %v2665 = vpop.f32.mrf.mxu0
  %v2666 = vadd.f32 0.0, %v2665
  %v2667 = vpop.f32.mrf.mxu0
  %v2668 = vpop.f32.mrf.mxu0
  %v2669 = vadd.f32 0.0, %v2668
  %v2670 = vpop.f32.mrf.mxu0
  %2671 = vmatprep.mubr.bf16.mxu0 0
  %2672 = vmatmul.mubr.bf16.gmra.mxu0 %v2608
  %v2673 = vpop.f32.mrf.mxu0
  %v2674 = vadd.f32 0.0, %v2673
  %v2675 = vpop.f32.mrf.mxu0
  %v2676 = vpop.f32.mrf.mxu0
  %v2677 = vadd.f32 0.0, %v2676
  %v2678 = vpop.f32.mrf.mxu0
  %2679 = vmatprep.mubr.bf16.mxu0 0
  %2680 = vmatmul.mubr.bf16.gmra.mxu0 %v2611
  %v2681 = vpop.f32.mrf.mxu0
  %v2682 = vadd.f32 0.0, %v2681
  %v2683 = vpop.f32.mrf.mxu0
  %v2684 = vpop.f32.mrf.mxu0
  %v2685 = vadd.f32 0.0, %v2684
  %v2686 = vpop.f32.mrf.mxu0
  %2687 = vmatprep.mubr.bf16.mxu0 0
  %2688 = vmatmul.mubr.bf16.gmra.mxu0 %v2614
  %v2689 = vpop.f32.mrf.mxu0
  %v2690 = vadd.f32 0.0, %v2689
  %v2691 = vpop.f32.mrf.mxu0
  %v2692 = vpop.f32.mrf.mxu0
  %v2693 = vadd.f32 0.0, %v2692
  %v2694 = vpop.f32.mrf.mxu0
  %2695 = vmatprep.mubr.bf16.mxu0 0
  %2696 = vmatmul.mubr.bf16.gmra.mxu0 %v2617
  %v2697 = vpop.f32.mrf.mxu0
  %v2698 = vadd.f32 0.0, %v2697
  %v2699 = vpop.f32.mrf.mxu0
  %v2700 = vpop.f32.mrf.mxu0
  %v2701 = vadd.f32 0.0, %v2700
  %v2702 = vpop.f32.mrf.mxu0
  %2703 = vmatprep.mubr.bf16.mxu0 0
  %2704 = vmatmul.mubr.bf16.gmra.mxu0 %v2620
  %v2705 = vpop.f32.mrf.mxu0
  %v2706 = vadd.f32 0.0, %v2705
  %v2707 = vpop.f32.mrf.mxu0
  %v2708 = vpop.f32.mrf.mxu0
  %v2709 = vadd.f32 0.0, %v2708
  %v2710 = vpop.f32.mrf.mxu0
  %2711 = vmatprep.mubr.bf16.mxu0 0
  %2712 = vmatmul.mubr.bf16.gmra.mxu0 %v2623
  %v2713 = vpop.f32.mrf.mxu0
  %v2714 = vadd.f32 0.0, %v2713
  %v2715 = vpop.f32.mrf.mxu0
  %v2716 = vpop.f32.mrf.mxu0
  %v2717 = vadd.f32 0.0, %v2716
  %v2718 = vpop.f32.mrf.mxu0
  %2719 = vmatprep.mubr.bf16.mxu0 0
  %2720 = vmatmul.mubr.bf16.gmra.mxu0 %v2626
  %v2721 = vpop.f32.mrf.mxu0
  %v2722 = vadd.f32 0.0, %v2721
  %v2723 = vpop.f32.mrf.mxu0
  %v2724 = vpop.f32.mrf.mxu0
  %v2725 = vadd.f32 0.0, %v2724
  %v2726 = vpop.f32.mrf.mxu0
  %2727 = vdwg.mxu0
  %v2728 = vld [vmem:[%s10] sm:$0xff]
  %v2729 = vld [vmem:[%s10 + $0x8] sm:$0xff]
  %v2731 = vsel %vm85, %v2666, 0
  %v2734 = vsel %vm85, %v2669, 0
  %v2737 = vsel %vm85, %v2674, 0
  %v2740 = vsel %vm85, %v2677, 0
  %v2743 = vsel %vm85, %v2682, 0
  %v2746 = vsel %vm85, %v2685, 0
  %v2749 = vsel %vm85, %v2690, 0
  %v2752 = vsel %vm85, %v2693, 0
  %v2755 = vsel %vm85, %v2698, 0
  %v2758 = vsel %vm85, %v2701, 0
  %v2761 = vsel %vm85, %v2706, 0
  %v2764 = vsel %vm85, %v2709, 0
  %v2767 = vsel %vm85, %v2714, 0
  %v2770 = vsel %vm85, %v2717, 0
  %v2773 = vsel %vm85, %v2722, 0
  %v2776 = vsel %vm85, %v2725, 0
  %2778 = vmatprep.subr.mxu0 0.0
  %2779 = vmatpush1.msra.mxu0 0.0
  %2780 = vmatprep.subr.mxu0 0.0
  %2781 = vmatpush1.msra.mxu0 0.0
  %2782 = vmatprep.subr.mxu0 0.0
  %2783 = vmatpush1.msra.mxu0 0.0
  %2784 = vmatprep.subr.mxu0 0.0
  %2785 = vmatpush1.msra.mxu0 0.0
  %2786 = vmatprep.subr.mxu0 0.0
  %2787 = vmatpush1.msra.mxu0 0.0
  %2788 = vmatprep.subr.mxu0 0.0
  %2789 = vmatpush1.msra.mxu0 0.0
  %2790 = vmatprep.subr.mxu0 0.0
  %2791 = vmatpush1.msra.mxu0 0.0
  %2792 = vmatprep.subr.mxu0 0.0
  %2793 = vmatpush1.msra.mxu0 0.0
  %2794 = vmatprep.subr.mxu0 0.0
  %2795 = vmatpush1.msra.mxu0 0.0
  %2796 = vmatprep.subr.mxu0 0.0
  %2797 = vmatpush1.msra.mxu0 0.0
  %2798 = vmatprep.subr.mxu0 0.0
  %2799 = vmatpush1.msra.mxu0 0.0
  %2800 = vmatprep.subr.mxu0 0.0
  %2801 = vmatpush1.msra.mxu0 0.0
  %2802 = vmatprep.subr.mxu0 0.0
  %2803 = vmatpush1.msra.mxu0 0.0
  %2804 = vmatprep.subr.mxu0 0.0
  %2805 = vmatpush1.msra.mxu0 0.0
  %2806 = vmatprep.subr.mxu0 0.0
  %2807 = vmatpush1.msra.mxu0 %v2729
  %2808 = vmatprep.subr.mxu0 0.0
  %2809 = vmatpush1.msra.mxu0 %v2728
  %2810 = vmatprep.subr.mxu0 0.0
  %2811 = vmatpush2.msra.mxu0 0.0
  %2812 = vmatprep.subr.mxu0 0.0
  %2813 = vmatpush2.msra.mxu0 0.0
  %2814 = vmatprep.subr.mxu0 0.0
  %2815 = vmatpush2.msra.mxu0 0.0
  %2816 = vmatprep.subr.mxu0 0.0
  %2817 = vmatpush2.msra.mxu0 0.0
  %2818 = vmatprep.subr.mxu0 0.0
  %2819 = vmatpush2.msra.mxu0 0.0
  %2820 = vmatprep.subr.mxu0 0.0
  %2821 = vmatpush2.msra.mxu0 0.0
  %2822 = vmatprep.subr.mxu0 0.0
  %2823 = vmatpush2.msra.mxu0 0.0
  %2824 = vmatprep.subr.mxu0 0.0
  %2825 = vmatpush2.msra.mxu0 0.0
  %2826 = vmatprep.subr.mxu0 0.0
  %2827 = vmatpush2.msra.mxu0 0.0
  %2828 = vmatprep.subr.mxu0 0.0
  %2829 = vmatpush2.msra.mxu0 0.0
  %2830 = vmatprep.subr.mxu0 0.0
  %2831 = vmatpush2.msra.mxu0 0.0
  %2832 = vmatprep.subr.mxu0 0.0
  %2833 = vmatpush2.msra.mxu0 0.0
  %2834 = vmatprep.subr.mxu0 0.0
  %2835 = vmatpush2.msra.mxu0 0.0
  %2836 = vmatprep.subr.mxu0 0.0
  %2837 = vmatpush2.msra.mxu0 0.0
  %2838 = vmatprep.subr.mxu0 0.0
  %2839 = vmatpush2.msra.mxu0 0.0
  %2840 = vmatprep.subr.mxu0 0.0
  %2841 = vmatpush2.msra.mxu0 0.0
  %2842 = vmatprep.mubr.f32.mxu0 0.0
  %2843 = vmatmul.mubr.f32.gmra.mxu0 %v2731
  %v2844 = vpop.f32.mrf.mxu0
  %v2845 = vadd.f32 0.0, %v2844
  %v2846 = vpop.f32.mrf.mxu0
  %2847 = vmatprep.mubr.f32.mxu0 0.0
  %2848 = vmatmul.mubr.f32.gmra.mxu0 %v2734
  %v2849 = vpop.f32.mrf.mxu0
  %v2850 = vadd.f32 0.0, %v2849
  %v2851 = vpop.f32.mrf.mxu0
  %2852 = vmatprep.mubr.f32.mxu0 0.0
  %2853 = vmatmul.mubr.f32.gmra.mxu0 %v2737
  %v2854 = vpop.f32.mrf.mxu0
  %v2855 = vadd.f32 0.0, %v2854
  %v2856 = vpop.f32.mrf.mxu0
  %2857 = vmatprep.mubr.f32.mxu0 0.0
  %2858 = vmatmul.mubr.f32.gmra.mxu0 %v2740
  %v2859 = vpop.f32.mrf.mxu0
  %v2860 = vadd.f32 0.0, %v2859
  %v2861 = vpop.f32.mrf.mxu0
  %2862 = vmatprep.mubr.f32.mxu0 0.0
  %2863 = vmatmul.mubr.f32.gmra.mxu0 %v2743
  %v2864 = vpop.f32.mrf.mxu0
  %v2865 = vadd.f32 0.0, %v2864
  %v2866 = vpop.f32.mrf.mxu0
  %2867 = vmatprep.mubr.f32.mxu0 0.0
  %2868 = vmatmul.mubr.f32.gmra.mxu0 %v2746
  %v2869 = vpop.f32.mrf.mxu0
  %v2870 = vadd.f32 0.0, %v2869
  %v2871 = vpop.f32.mrf.mxu0
  %2872 = vmatprep.mubr.f32.mxu0 0.0
  %2873 = vmatmul.mubr.f32.gmra.mxu0 %v2749
  %v2874 = vpop.f32.mrf.mxu0
  %v2875 = vadd.f32 0.0, %v2874
  %v2876 = vpop.f32.mrf.mxu0
  %2877 = vmatprep.mubr.f32.mxu0 0.0
  %2878 = vmatmul.mubr.f32.gmra.mxu0 %v2752
  %v2879 = vpop.f32.mrf.mxu0
  %v2880 = vadd.f32 0.0, %v2879
  %v2881 = vpop.f32.mrf.mxu0
  %2882 = vmatprep.mubr.f32.mxu0 0.0
  %2883 = vmatmul.mubr.f32.gmra.mxu0 %v2755
  %v2884 = vpop.f32.mrf.mxu0
  %v2885 = vadd.f32 0.0, %v2884
  %v2886 = vpop.f32.mrf.mxu0
  %2887 = vmatprep.mubr.f32.mxu0 0.0
  %2888 = vmatmul.mubr.f32.gmra.mxu0 %v2758
  %v2889 = vpop.f32.mrf.mxu0
  %v2890 = vadd.f32 0.0, %v2889
  %v2891 = vpop.f32.mrf.mxu0
  %2892 = vmatprep.mubr.f32.mxu0 0.0
  %2893 = vmatmul.mubr.f32.gmra.mxu0 %v2761
  %v2894 = vpop.f32.mrf.mxu0
  %v2895 = vadd.f32 0.0, %v2894
  %v2896 = vpop.f32.mrf.mxu0
  %2897 = vmatprep.mubr.f32.mxu0 0.0
  %2898 = vmatmul.mubr.f32.gmra.mxu0 %v2764
  %v2899 = vpop.f32.mrf.mxu0
  %v2900 = vadd.f32 0.0, %v2899
  %v2901 = vpop.f32.mrf.mxu0
  %2902 = vmatprep.mubr.f32.mxu0 0.0
  %2903 = vmatmul.mubr.f32.gmra.mxu0 %v2767
  %v2904 = vpop.f32.mrf.mxu0
  %v2905 = vadd.f32 0.0, %v2904
  %v2906 = vpop.f32.mrf.mxu0
  %2907 = vmatprep.mubr.f32.mxu0 0.0
  %2908 = vmatmul.mubr.f32.gmra.mxu0 %v2770
  %v2909 = vpop.f32.mrf.mxu0
  %v2910 = vadd.f32 0.0, %v2909
  %v2911 = vpop.f32.mrf.mxu0
  %2912 = vmatprep.mubr.f32.mxu0 0.0
  %2913 = vmatmul.mubr.f32.gmra.mxu0 %v2773
  %v2914 = vpop.f32.mrf.mxu0
  %v2915 = vadd.f32 0.0, %v2914
  %v2916 = vpop.f32.mrf.mxu0
  %2917 = vmatprep.mubr.f32.mxu0 0.0
  %2918 = vmatmul.mubr.f32.gmra.mxu0 %v2776
  %v2919 = vpop.f32.mrf.mxu0
  %v2920 = vadd.f32 0.0, %v2919
  %v2921 = vpop.f32.mrf.mxu0
  %2922 = vdwg.mxu0
  %2927 = vrot.lane.b32.xlu0 %v2865, 120
  %v2928 = vpop.permute.xlu0 %2927
  %2929 = vrot.lane.b32.xlu0 %v2870, 120
  %v2930 = vpop.permute.xlu0 %2929
  %2931 = vrot.lane.b32.xlu0 %v2875, 120
  %v2932 = vpop.permute.xlu0 %2931
  %2933 = vrot.lane.b32.xlu0 %v2880, 120
  %v2934 = vpop.permute.xlu0 %2933
  %v2939 = vadd.f32 %v2845, %v2928
  %v2940 = vadd.f32 %v2850, %v2930
  %v2941 = vadd.f32 %v2855, %v2932
  %v2942 = vadd.f32 %v2860, %v2934
  %2947 = vrot.lane.b32.xlu0 %v2885, 112
  %v2948 = vpop.permute.xlu0 %2947
  %2949 = vrot.lane.b32.xlu0 %v2890, 112
  %v2950 = vpop.permute.xlu0 %2949
  %2951 = vrot.lane.b32.xlu0 %v2895, 112
  %v2952 = vpop.permute.xlu0 %2951
  %2953 = vrot.lane.b32.xlu0 %v2900, 112
  %v2954 = vpop.permute.xlu0 %2953
  %v2959 = vadd.f32 %v2939, %v2948
  %v2960 = vadd.f32 %v2940, %v2950
  %v2961 = vadd.f32 %v2941, %v2952
  %v2962 = vadd.f32 %v2942, %v2954
  %2967 = vrot.lane.b32.xlu0 %v2905, 104
  %v2968 = vpop.permute.xlu0 %2967
  %2969 = vrot.lane.b32.xlu0 %v2910, 104
  %v2970 = vpop.permute.xlu0 %2969
  %2971 = vrot.lane.b32.xlu0 %v2915, 104
  %v2972 = vpop.permute.xlu0 %2971
  %2973 = vrot.lane.b32.xlu0 %v2920, 104
  %v2974 = vpop.permute.xlu0 %2973
  %v2979 = vadd.f32 %v2959, %v2968
  %v2980 = vadd.f32 %v2960, %v2970
  %v2981 = vadd.f32 %v2961, %v2972
  %v2982 = vadd.f32 %v2962, %v2974
  %v2983 = vld [vmem:[%s11] sm:$0x1]
  %v2985 = vlaneseq
  %v2986 = vshrl.u32 %v2985, 7
  %v2987 = vsub.s32 0, %v2986
  %v2988 = vrot.slane %v2983, %v2987
  %v2990 = vadd.f32 %v2979, %v2988
  %v2991 = vadd.f32 %v2980, %v2988
  %v2992 = vadd.f32 %v2981, %v2988
  %v2993 = vadd.f32 %v2982, %v2988
  %v2994 = vmax.f32 %v2990, 0.0
  %v2995 = vmax.f32 %v2991, 0.0
  %v2996 = vmax.f32 %v2992, 0.0
  %v2997 = vmax.f32 %v2993, 0.0
  %vm2998 = vcmp.ne.f32.partialorder %v2990, %v2990
  %vm2999 = vcmp.ne.f32.partialorder %v2991, %v2991
  %vm3000 = vcmp.ne.f32.partialorder %v2992, %v2992
  %vm3001 = vcmp.ne.f32.partialorder %v2993, %v2993
  %v3002 = vadd.f32 %v2990, 0.0
  %v3003 = vadd.f32 %v2991, 0.0
  %v3004 = vadd.f32 %v2992, 0.0
  %v3005 = vadd.f32 %v2993, 0.0
  %v3006 = vand.u32 2147483647, %v2990
  %v3007 = vand.u32 2147483647, %v2991
  %v3008 = vand.u32 2147483647, %v2992
  %v3009 = vand.u32 2147483647, %v2993
  %v3010 = vsub.f32 0.0, %v3006
  %v3011 = vsub.f32 0.0, %v3007
  %v3012 = vsub.f32 0.0, %v3008
  %v3013 = vsub.f32 0.0, %v3009
  %v3014 = vmul.f32 %v3010, 1.442695
  %v3015 = vpow.pop %v3014
  %v3016 = vmul.f32 %v3011, 1.442695
  %v3017 = vpow.pop %v3016
  %v3018 = vmul.f32 %v3012, 1.442695
  %v3019 = vpow.pop %v3018
  %v3020 = vmul.f32 %v3013, 1.442695
  %v3021 = vpow.pop %v3020
  %v3022 = vadd.f32 %v3015, 1.0
  %v3023 = vlog2.pop %v3022
  %v3024 = vmul.f32 %v3023, 0.6931472
  %v3025 = vmul.f32 -0.5, %v3015
  %v3026 = vadd.f32 %v3025, 1.0
  %v3027 = vmul.f32 %v3026, %v3015
  %v3028 = vand.u32 2147483647, %v3015
  %vm3029 = vcmp.lt.f32.partialorder %v3028, 0.0004427343
  %v3030 = vsel %vm3029, %v3027, %v3024
  %v3031 = vadd.f32 %v3017, 1.0
  %v3032 = vlog2.pop %v3031
  %v3033 = vmul.f32 %v3032, 0.6931472
  %v3034 = vmul.f32 -0.5, %v3017
  %v3035 = vadd.f32 %v3034, 1.0
  %v3036 = vmul.f32 %v3035, %v3017
  %v3037 = vand.u32 2147483647, %v3017
  %vm3038 = vcmp.lt.f32.partialorder %v3037, 0.0004427343
  %v3039 = vsel %vm3038, %v3036, %v3033
  %v3040 = vadd.f32 %v3019, 1.0
  %v3041 = vlog2.pop %v3040
  %v3042 = vmul.f32 %v3041, 0.6931472
  %v3043 = vmul.f32 -0.5, %v3019
  %v3044 = vadd.f32 %v3043, 1.0
  %v3045 = vmul.f32 %v3044, %v3019
  %v3046 = vand.u32 2147483647, %v3019
  %vm3047 = vcmp.lt.f32.partialorder %v3046, 0.0004427343
  %v3048 = vsel %vm3047, %v3045, %v3042
  %v3049 = vadd.f32 %v3021, 1.0
  %v3050 = vlog2.pop %v3049
  %v3051 = vmul.f32 %v3050, 0.6931472
  %v3052 = vmul.f32 -0.5, %v3021
  %v3053 = vadd.f32 %v3052, 1.0
  %v3054 = vmul.f32 %v3053, %v3021
  %v3055 = vand.u32 2147483647, %v3021
  %vm3056 = vcmp.lt.f32.partialorder %v3055, 0.0004427343
  %v3057 = vsel %vm3056, %v3054, %v3051
  %v3058 = vadd.f32 %v2994, %v3030
  %v3059 = vadd.f32 %v2995, %v3039
  %v3060 = vadd.f32 %v2996, %v3048
  %v3061 = vadd.f32 %v2997, %v3057
  %v3062 = vsel %vm2998, %v3002, %v3058
  %v3063 = vsel %vm2999, %v3003, %v3059
  %v3064 = vsel %vm3000, %v3004, %v3060
  %v3065 = vsel %vm3001, %v3005, %v3061
  %v3066 = vtanh.pop %v3062
  %v3067 = vtanh.pop %v3063
  %v3068 = vtanh.pop %v3064
  %v3069 = vtanh.pop %v3065
  %v3070 = vmul.f32 %v2990, %v3066
  %v3071 = vmul.f32 %v2991, %v3067
  %v3072 = vmul.f32 %v2992, %v3068
  %v3073 = vmul.f32 %v2993, %v3069
  %v3074 = vld [vmem:[%s12] sm:$0xf]
  %v3075 = vld [vmem:[%s12 + $0x4] sm:$0xf]
  %v3076 = vld [vmem:[%s12 + $0x8] sm:$0xf]
  %v3077 = vld [vmem:[%s12 + $0xc] sm:$0xf]
  %v3078 = vld [vmem:[%s12 + $0x10] sm:$0xf]
  %v3079 = vld [vmem:[%s12 + $0x14] sm:$0xf]
  %v3080 = vld [vmem:[%s12 + $0x18] sm:$0xf]
  %v3081 = vld [vmem:[%s12 + $0x1c] sm:$0xf]
  %v3082 = vld [vmem:[%s12 + $0x20] sm:$0xf]
  %v3083 = vld [vmem:[%s12 + $0x24] sm:$0xf]
  %v3084 = vld [vmem:[%s12 + $0x28] sm:$0xf]
  %v3085 = vld [vmem:[%s12 + $0x2c] sm:$0xf]
  %v3086 = vld [vmem:[%s12 + $0x30] sm:$0xf]
  %v3087 = vld [vmem:[%s12 + $0x34] sm:$0xf]
  %v3088 = vld [vmem:[%s12 + $0x38] sm:$0xf]
  %v3089 = vld [vmem:[%s12 + $0x3c] sm:$0xf]
  %v3090 = vpack.c.bf16 %v3071, %v3070
  %v3091 = vpack.c.bf16 %v3073, %v3072
  %v3108 = vunpack.c.l.b16 %v3074
  %v3109 = vunpack.c.l.b16 %v3075
  %v3110 = vunpack.c.l.b16 %v3076
  %v3111 = vunpack.c.l.b16 %v3077
  %v3112 = vunpack.c.l.b16 %v3078
  %v3113 = vunpack.c.l.b16 %v3079
  %v3114 = vunpack.c.l.b16 %v3080
  %v3115 = vunpack.c.l.b16 %v3081
  %v3116 = vunpack.c.l.b16 %v3082
  %v3117 = vunpack.c.l.b16 %v3083
  %v3118 = vunpack.c.l.b16 %v3084
  %v3119 = vunpack.c.l.b16 %v3085
  %v3120 = vunpack.c.l.b16 %v3086
  %v3121 = vunpack.c.l.b16 %v3087
  %v3122 = vunpack.c.l.b16 %v3088
  %v3123 = vunpack.c.l.b16 %v3089
  %v3124 = vpack.c.b16 %v3109, %v3108
  %v3125 = vpack.c.b16 %v3111, %v3110
  %v3126 = vpack.c.b16 %v3113, %v3112
  %v3127 = vpack.c.b16 %v3115, %v3114
  %v3128 = vpack.c.b16 %v3117, %v3116
  %v3129 = vpack.c.b16 %v3119, %v3118
  %v3130 = vpack.c.b16 %v3121, %v3120
  %v3131 = vpack.c.b16 %v3123, %v3122
  %v3133 = vsel %vm2120, %v3124, 0
  %v3136 = vsel %vm2120, %v3125, 0
  %v3139 = vsel %vm2120, %v3126, 0
  %v3142 = vsel %vm2120, %v3127, 0
  %v3145 = vsel %vm2120, %v3128, 0
  %v3148 = vsel %vm2120, %v3129, 0
  %v3151 = vsel %vm2120, %v3130, 0
  %v3154 = vsel %vm2120, %v3131, 0
  %3156 = vmatprep.subr.bf16.mxu0 0
  %3157 = vmatpush1.bf16.msra.mxu0 0
  %3158 = vmatprep.subr.bf16.mxu0 0
  %3159 = vmatpush1.bf16.msra.mxu0 0
  %3160 = vmatprep.subr.bf16.mxu0 0
  %3161 = vmatpush1.bf16.msra.mxu0 0
  %3162 = vmatprep.subr.bf16.mxu0 0
  %3163 = vmatpush1.bf16.msra.mxu0 0
  %3164 = vmatprep.subr.bf16.mxu0 0
  %3165 = vmatpush1.bf16.msra.mxu0 0
  %3166 = vmatprep.subr.bf16.mxu0 0
  %3167 = vmatpush1.bf16.msra.mxu0 0
  %3168 = vmatprep.subr.bf16.mxu0 0
  %3169 = vmatpush1.bf16.msra.mxu0 %v3091
  %3170 = vmatprep.subr.bf16.mxu0 0
  %3171 = vmatpush1.bf16.msra.mxu0 %v3090
  %3172 = vmatprep.subr.bf16.mxu0 0
  %3173 = vmatpush2.bf16.msra.mxu0 0
  %3174 = vmatprep.subr.bf16.mxu0 0
  %3175 = vmatpush2.bf16.msra.mxu0 0
  %3176 = vmatprep.subr.bf16.mxu0 0
  %3177 = vmatpush2.bf16.msra.mxu0 0
  %3178 = vmatprep.subr.bf16.mxu0 0
  %3179 = vmatpush2.bf16.msra.mxu0 0
  %3180 = vmatprep.subr.bf16.mxu0 0
  %3181 = vmatpush2.bf16.msra.mxu0 0
  %3182 = vmatprep.subr.bf16.mxu0 0
  %3183 = vmatpush2.bf16.msra.mxu0 0
  %3184 = vmatprep.subr.bf16.mxu0 0
  %3185 = vmatpush2.bf16.msra.mxu0 0
  %3186 = vmatprep.subr.bf16.mxu0 0
  %3187 = vmatpush2.bf16.msra.mxu0 0
  %3188 = vmatprep.mubr.bf16.mxu0 0
  %3189 = vmatmul.mubr.bf16.gmra.mxu0 %v3133
  %v3190 = vpop.f32.mrf.mxu0
  %v3191 = vadd.f32 0.0, %v3190
  %v3192 = vpop.f32.mrf.mxu0
  %v3193 = vpop.f32.mrf.mxu0
  %v3194 = vadd.f32 0.0, %v3193
  %v3195 = vpop.f32.mrf.mxu0
  %3196 = vmatprep.mubr.bf16.mxu0 0
  %3197 = vmatmul.mubr.bf16.gmra.mxu0 %v3136
  %v3198 = vpop.f32.mrf.mxu0
  %v3199 = vadd.f32 0.0, %v3198
  %v3200 = vpop.f32.mrf.mxu0
  %v3201 = vpop.f32.mrf.mxu0
  %v3202 = vadd.f32 0.0, %v3201
  %v3203 = vpop.f32.mrf.mxu0
  %3204 = vmatprep.mubr.bf16.mxu0 0
  %3205 = vmatmul.mubr.bf16.gmra.mxu0 %v3139
  %v3206 = vpop.f32.mrf.mxu0
  %v3207 = vadd.f32 0.0, %v3206
  %v3208 = vpop.f32.mrf.mxu0
  %v3209 = vpop.f32.mrf.mxu0
  %v3210 = vadd.f32 0.0, %v3209
  %v3211 = vpop.f32.mrf.mxu0
  %3212 = vmatprep.mubr.bf16.mxu0 0
  %3213 = vmatmul.mubr.bf16.gmra.mxu0 %v3142
  %v3214 = vpop.f32.mrf.mxu0
  %v3215 = vadd.f32 0.0, %v3214
  %v3216 = vpop.f32.mrf.mxu0
  %v3217 = vpop.f32.mrf.mxu0
  %v3218 = vadd.f32 0.0, %v3217
  %v3219 = vpop.f32.mrf.mxu0
  %3220 = vmatprep.mubr.bf16.mxu0 0
  %3221 = vmatmul.mubr.bf16.gmra.mxu0 %v3145
  %v3222 = vpop.f32.mrf.mxu0
  %v3223 = vadd.f32 0.0, %v3222
  %v3224 = vpop.f32.mrf.mxu0
  %v3225 = vpop.f32.mrf.mxu0
  %v3226 = vadd.f32 0.0, %v3225
  %v3227 = vpop.f32.mrf.mxu0
  %3228 = vmatprep.mubr.bf16.mxu0 0
  %3229 = vmatmul.mubr.bf16.gmra.mxu0 %v3148
  %v3230 = vpop.f32.mrf.mxu0
  %v3231 = vadd.f32 0.0, %v3230
  %v3232 = vpop.f32.mrf.mxu0
  %v3233 = vpop.f32.mrf.mxu0
  %v3234 = vadd.f32 0.0, %v3233
  %v3235 = vpop.f32.mrf.mxu0
  %3236 = vmatprep.mubr.bf16.mxu0 0
  %3237 = vmatmul.mubr.bf16.gmra.mxu0 %v3151
  %v3238 = vpop.f32.mrf.mxu0
  %v3239 = vadd.f32 0.0, %v3238
  %v3240 = vpop.f32.mrf.mxu0
  %v3241 = vpop.f32.mrf.mxu0
  %v3242 = vadd.f32 0.0, %v3241
  %v3243 = vpop.f32.mrf.mxu0
  %3244 = vmatprep.mubr.bf16.mxu0 0
  %3245 = vmatmul.mubr.bf16.gmra.mxu0 %v3154
  %v3246 = vpop.f32.mrf.mxu0
  %v3247 = vadd.f32 0.0, %v3246
  %v3248 = vpop.f32.mrf.mxu0
  %v3249 = vpop.f32.mrf.mxu0
  %v3250 = vadd.f32 0.0, %v3249
  %v3251 = vpop.f32.mrf.mxu0
  %3252 = vdwg.mxu0
  %v3253 = vld [vmem:[%s13] sm:$0xff]
  %vm3254 = vcmask 64512
  %v3256 = vsel %vm3254, %v3191, 0
  %v3259 = vsel %vm3254, %v3194, 0
  %v3262 = vsel %vm3254, %v3199, 0
  %v3265 = vsel %vm3254, %v3202, 0
  %v3268 = vsel %vm3254, %v3207, 0
  %v3271 = vsel %vm3254, %v3210, 0
  %v3274 = vsel %vm3254, %v3215, 0
  %v3277 = vsel %vm3254, %v3218, 0
  %v3280 = vsel %vm3254, %v3223, 0
  %v3283 = vsel %vm3254, %v3226, 0
  %v3286 = vsel %vm3254, %v3231, 0
  %v3289 = vsel %vm3254, %v3234, 0
  %v3292 = vsel %vm3254, %v3239, 0
  %v3295 = vsel %vm3254, %v3242, 0
  %v3298 = vsel %vm3254, %v3247, 0
  %v3301 = vsel %vm3254, %v3250, 0
  %3303 = vmatprep.subr.mxu0 0.0
  %3304 = vmatpush1.msra.mxu0 0.0
  %3305 = vmatprep.subr.mxu0 0.0
  %3306 = vmatpush1.msra.mxu0 0.0
  %3307 = vmatprep.subr.mxu0 0.0
  %3308 = vmatpush1.msra.mxu0 0.0
  %3309 = vmatprep.subr.mxu0 0.0
  %3310 = vmatpush1.msra.mxu0 0.0
  %3311 = vmatprep.subr.mxu0 0.0
  %3312 = vmatpush1.msra.mxu0 0.0
  %3313 = vmatprep.subr.mxu0 0.0
  %3314 = vmatpush1.msra.mxu0 0.0
  %3315 = vmatprep.subr.mxu0 0.0
  %3316 = vmatpush1.msra.mxu0 0.0
  %3317 = vmatprep.subr.mxu0 0.0
  %3318 = vmatpush1.msra.mxu0 0.0
  %3319 = vmatprep.subr.mxu0 0.0
  %3320 = vmatpush1.msra.mxu0 0.0
  %3321 = vmatprep.subr.mxu0 0.0
  %3322 = vmatpush1.msra.mxu0 0.0
  %3323 = vmatprep.subr.mxu0 0.0
  %3324 = vmatpush1.msra.mxu0 0.0
  %3325 = vmatprep.subr.mxu0 0.0
  %3326 = vmatpush1.msra.mxu0 0.0
  %3327 = vmatprep.subr.mxu0 0.0
  %3328 = vmatpush1.msra.mxu0 0.0
  %3329 = vmatprep.subr.mxu0 0.0
  %3330 = vmatpush1.msra.mxu0 0.0
  %3331 = vmatprep.subr.mxu0 0.0
  %3332 = vmatpush1.msra.mxu0 0.0
  %3333 = vmatprep.subr.mxu0 0.0
  %3334 = vmatpush1.msra.mxu0 %v3253
  %3335 = vmatprep.subr.mxu0 0.0
  %3336 = vmatpush2.msra.mxu0 0.0
  %3337 = vmatprep.subr.mxu0 0.0
  %3338 = vmatpush2.msra.mxu0 0.0
  %3339 = vmatprep.subr.mxu0 0.0
  %3340 = vmatpush2.msra.mxu0 0.0
  %3341 = vmatprep.subr.mxu0 0.0
  %3342 = vmatpush2.msra.mxu0 0.0
  %3343 = vmatprep.subr.mxu0 0.0
  %3344 = vmatpush2.msra.mxu0 0.0
  %3345 = vmatprep.subr.mxu0 0.0
  %3346 = vmatpush2.msra.mxu0 0.0
  %3347 = vmatprep.subr.mxu0 0.0
  %3348 = vmatpush2.msra.mxu0 0.0
  %3349 = vmatprep.subr.mxu0 0.0
  %3350 = vmatpush2.msra.mxu0 0.0
  %3351 = vmatprep.subr.mxu0 0.0
  %3352 = vmatpush2.msra.mxu0 0.0
  %3353 = vmatprep.subr.mxu0 0.0
  %3354 = vmatpush2.msra.mxu0 0.0
  %3355 = vmatprep.subr.mxu0 0.0
  %3356 = vmatpush2.msra.mxu0 0.0
  %3357 = vmatprep.subr.mxu0 0.0
  %3358 = vmatpush2.msra.mxu0 0.0
  %3359 = vmatprep.subr.mxu0 0.0
  %3360 = vmatpush2.msra.mxu0 0.0
  %3361 = vmatprep.subr.mxu0 0.0
  %3362 = vmatpush2.msra.mxu0 0.0
  %3363 = vmatprep.subr.mxu0 0.0
  %3364 = vmatpush2.msra.mxu0 0.0
  %3365 = vmatprep.subr.mxu0 0.0
  %3366 = vmatpush2.msra.mxu0 0.0
  %3367 = vmatprep.mubr.f32.mxu0 0.0
  %3368 = vmatmul.mubr.f32.gmra.mxu0 %v3256
  %v3369 = vpop.f32.mrf.mxu0
  %v3370 = vadd.f32 0.0, %v3369
  %v3371 = vpop.f32.mrf.mxu0
  %3372 = vmatprep.mubr.f32.mxu0 0.0
  %3373 = vmatmul.mubr.f32.gmra.mxu0 %v3259
  %v3374 = vpop.f32.mrf.mxu0
  %v3375 = vadd.f32 0.0, %v3374
  %v3376 = vpop.f32.mrf.mxu0
  %3377 = vmatprep.mubr.f32.mxu0 0.0
  %3378 = vmatmul.mubr.f32.gmra.mxu0 %v3262
  %v3379 = vpop.f32.mrf.mxu0
  %v3380 = vadd.f32 0.0, %v3379
  %v3381 = vpop.f32.mrf.mxu0
  %3382 = vmatprep.mubr.f32.mxu0 0.0
  %3383 = vmatmul.mubr.f32.gmra.mxu0 %v3265
  %v3384 = vpop.f32.mrf.mxu0
  %v3385 = vadd.f32 0.0, %v3384
  %v3386 = vpop.f32.mrf.mxu0
  %3387 = vmatprep.mubr.f32.mxu0 0.0
  %3388 = vmatmul.mubr.f32.gmra.mxu0 %v3268
  %v3389 = vpop.f32.mrf.mxu0
  %v3390 = vadd.f32 0.0, %v3389
  %v3391 = vpop.f32.mrf.mxu0
  %3392 = vmatprep.mubr.f32.mxu0 0.0
  %3393 = vmatmul.mubr.f32.gmra.mxu0 %v3271
  %v3394 = vpop.f32.mrf.mxu0
  %v3395 = vadd.f32 0.0, %v3394
  %v3396 = vpop.f32.mrf.mxu0
  %3397 = vmatprep.mubr.f32.mxu0 0.0
  %3398 = vmatmul.mubr.f32.gmra.mxu0 %v3274
  %v3399 = vpop.f32.mrf.mxu0
  %v3400 = vadd.f32 0.0, %v3399
  %v3401 = vpop.f32.mrf.mxu0
  %3402 = vmatprep.mubr.f32.mxu0 0.0
  %3403 = vmatmul.mubr.f32.gmra.mxu0 %v3277
  %v3404 = vpop.f32.mrf.mxu0
  %v3405 = vadd.f32 0.0, %v3404
  %v3406 = vpop.f32.mrf.mxu0
  %3407 = vmatprep.mubr.f32.mxu0 0.0
  %3408 = vmatmul.mubr.f32.gmra.mxu0 %v3280
  %v3409 = vpop.f32.mrf.mxu0
  %v3410 = vadd.f32 0.0, %v3409
  %v3411 = vpop.f32.mrf.mxu0
  %3412 = vmatprep.mubr.f32.mxu0 0.0
  %3413 = vmatmul.mubr.f32.gmra.mxu0 %v3283
  %v3414 = vpop.f32.mrf.mxu0
  %v3415 = vadd.f32 0.0, %v3414
  %v3416 = vpop.f32.mrf.mxu0
  %3417 = vmatprep.mubr.f32.mxu0 0.0
  %3418 = vmatmul.mubr.f32.gmra.mxu0 %v3286
  %v3419 = vpop.f32.mrf.mxu0
  %v3420 = vadd.f32 0.0, %v3419
  %v3421 = vpop.f32.mrf.mxu0
  %3422 = vmatprep.mubr.f32.mxu0 0.0
  %3423 = vmatmul.mubr.f32.gmra.mxu0 %v3289
  %v3424 = vpop.f32.mrf.mxu0
  %v3425 = vadd.f32 0.0, %v3424
  %v3426 = vpop.f32.mrf.mxu0
  %3427 = vmatprep.mubr.f32.mxu0 0.0
  %3428 = vmatmul.mubr.f32.gmra.mxu0 %v3292
  %v3429 = vpop.f32.mrf.mxu0
  %v3430 = vadd.f32 0.0, %v3429
  %v3431 = vpop.f32.mrf.mxu0
  %3432 = vmatprep.mubr.f32.mxu0 0.0
  %3433 = vmatmul.mubr.f32.gmra.mxu0 %v3295
  %v3434 = vpop.f32.mrf.mxu0
  %v3435 = vadd.f32 0.0, %v3434
  %v3436 = vpop.f32.mrf.mxu0
  %3437 = vmatprep.mubr.f32.mxu0 0.0
  %3438 = vmatmul.mubr.f32.gmra.mxu0 %v3298
  %v3439 = vpop.f32.mrf.mxu0
  %v3440 = vadd.f32 0.0, %v3439
  %v3441 = vpop.f32.mrf.mxu0
  %3442 = vmatprep.mubr.f32.mxu0 0.0
  %3443 = vmatmul.mubr.f32.gmra.mxu0 %v3301
  %v3444 = vpop.f32.mrf.mxu0
  %v3445 = vadd.f32 0.0, %v3444
  %v3446 = vpop.f32.mrf.mxu0
  %3447 = vdwg.mxu0
  %3452 = vrot.lane.b32.xlu0 %v3390, 124
  %v3453 = vpop.permute.xlu0 %3452
  %3454 = vrot.lane.b32.xlu0 %v3395, 124
  %v3455 = vpop.permute.xlu0 %3454
  %3456 = vrot.lane.b32.xlu0 %v3400, 124
  %v3457 = vpop.permute.xlu0 %3456
  %3458 = vrot.lane.b32.xlu0 %v3405, 124
  %v3459 = vpop.permute.xlu0 %3458
  %v3464 = vadd.f32 %v3370, %v3453
  %v3465 = vadd.f32 %v3375, %v3455
  %v3466 = vadd.f32 %v3380, %v3457
  %v3467 = vadd.f32 %v3385, %v3459
  %3472 = vrot.lane.b32.xlu0 %v3410, 120
  %v3473 = vpop.permute.xlu0 %3472
  %3474 = vrot.lane.b32.xlu0 %v3415, 120
  %v3475 = vpop.permute.xlu0 %3474
  %3476 = vrot.lane.b32.xlu0 %v3420, 120
  %v3477 = vpop.permute.xlu0 %3476
  %3478 = vrot.lane.b32.xlu0 %v3425, 120
  %v3479 = vpop.permute.xlu0 %3478
  %v3484 = vadd.f32 %v3464, %v3473
  %v3485 = vadd.f32 %v3465, %v3475
  %v3486 = vadd.f32 %v3466, %v3477
  %v3487 = vadd.f32 %v3467, %v3479
  %3492 = vrot.lane.b32.xlu0 %v3430, 116
  %v3493 = vpop.permute.xlu0 %3492
  %3494 = vrot.lane.b32.xlu0 %v3435, 116
  %v3495 = vpop.permute.xlu0 %3494
  %3496 = vrot.lane.b32.xlu0 %v3440, 116
  %v3497 = vpop.permute.xlu0 %3496
  %3498 = vrot.lane.b32.xlu0 %v3445, 116
  %v3499 = vpop.permute.xlu0 %3498
  %v3504 = vadd.f32 %v3484, %v3493
  %v3505 = vadd.f32 %v3485, %v3495
  %v3506 = vadd.f32 %v3486, %v3497
  %v3507 = vadd.f32 %v3487, %v3499
  %v3508 = vld [vmem:[%s14] sm:$0x1]
  %v3510 = vlaneseq
  %v3511 = vshrl.u32 %v3510, 7
  %v3512 = vsub.s32 0, %v3511
  %v3513 = vrot.slane %v3508, %v3512
  %v3515 = vadd.f32 %v3504, %v3513
  %v3516 = vadd.f32 %v3505, %v3513
  %v3517 = vadd.f32 %v3506, %v3513
  %v3518 = vadd.f32 %v3507, %v3513
  %vm3519 = vcmask 31744
  %v3520 = vsel %vm3519, %v3515, -inf
  %3521 = vmax.xlane.f32.xlu0 %v3520
  %v3522 = vpop.xlane.xlu0 %3521
  %v3523 = vsel %vm3519, %v3516, -inf
  %3524 = vmax.xlane.f32.xlu0 %v3523
  %v3525 = vpop.xlane.xlu0 %3524
  %v3526 = vsel %vm3519, %v3517, -inf
  %3527 = vmax.xlane.f32.xlu0 %v3526
  %v3528 = vpop.xlane.xlu0 %3527
  %v3529 = vsel %vm3519, %v3518, -inf
  %3530 = vmax.xlane.f32.xlu0 %v3529
  %v3531 = vpop.xlane.xlu0 %3530
  %v3532 = vsub.f32 %v3515, %v3522
  %v3533 = vsub.f32 %v3516, %v3525
  %v3534 = vsub.f32 %v3517, %v3528
  %v3535 = vsub.f32 %v3518, %v3531
  %v3536 = vmul.f32 %v3532, 1.442695
  %v3537 = vpow.pop %v3536
  %v3538 = vmul.f32 %v3533, 1.442695
  %v3539 = vpow.pop %v3538
  %v3540 = vmul.f32 %v3534, 1.442695
  %v3541 = vpow.pop %v3540
  %v3542 = vmul.f32 %v3535, 1.442695
  %v3543 = vpow.pop %v3542
  %v3544 = vsel %vm3519, %v3537, 0.0
  %3545 = vadd.xlane.f32.xlu0 %v3544
  %v3546 = vpop.xlane.xlu0 %3545
  %v3547 = vsel %vm3519, %v3539, 0.0
  %3548 = vadd.xlane.f32.xlu0 %v3547
  %v3549 = vpop.xlane.xlu0 %3548
  %v3550 = vsel %vm3519, %v3541, 0.0
  %3551 = vadd.xlane.f32.xlu0 %v3550
  %v3552 = vpop.xlane.xlu0 %3551
  %v3553 = vsel %vm3519, %v3543, 0.0
  %3554 = vadd.xlane.f32.xlu0 %v3553
  %v3555 = vpop.xlane.xlu0 %3554
  %v3556 = vrcp.pop %v3546
  %v3557 = vmul.f32 %v3537, %v3556
  %v3558 = vrcp.pop %v3549
  %v3559 = vmul.f32 %v3539, %v3558
  %v3560 = vrcp.pop %v3552
  %v3561 = vmul.f32 %v3541, %v3560
  %v3562 = vrcp.pop %v3555
  %v3563 = vmul.f32 %v3543, %v3562
  %3564 = vst.msk [vmem:[%s15] sm:$0xff] %vm3519, %v3557
  %3565 = vst.msk [vmem:[%s15 + $0x8] sm:$0xff] %vm3519, %v3559
  %3566 = vst.msk [vmem:[%s15 + $0x10] sm:$0xff] %vm3519, %v3561
  %3567 = vst.msk [vmem:[%s15 + $0x18] sm:$0xff] %vm3519, %v3563
  // Predicated region
  $region62: #{model_forward.1} parent=0 // pred_check
    _
  $region63: #{model_forward.1} parent=0 // pred_check_branch
    %3569 = sbr.rel (0) target = $region65
  $region64: #{model_forward.1} parent=0 // pred_region
    _
  $region65: #{model_forward.1} parent=0 // pred_fallthru
    _
  // Predicated region
  $region66: #{model_forward.1} parent=0 // pred_check
    _
  $region67: #{model_forward.1} parent=0 // pred_check_branch
    %3571 = sbr.rel (0) target = $region69
  $region68: #{model_forward.1} parent=0 // pred_region
    _
  $region69: #{model_forward.1} parent=0 // pred_fallthru
    _

</llo_original>
